<compile_context>
chip_gen: v5e
topology: v5e:2x2
jax: 0.10.0
libtpu: 0.0.40
codegen_flags: <defaults>
</compile_context>

<pallas_src>
import functools
import math

import jax
import jax.numpy as jnp
from jax.experimental import pallas as pl
from jax.experimental.pallas import tpu as pltpu


# ----------------------------------------------------------------------------
# In-kernel helpers
# ----------------------------------------------------------------------------

def _gelu_tanh(x):
    # TODO(synk): get_feed_forward_operator / ff_config internals are not in the
    # provided source; a pointwise 2-layer MLP with tanh-approx GELU is used
    # (PyTorch nn.GELU default is the exact erf form).
    c = math.sqrt(2.0 / math.pi)
    return 0.5 * x * (1.0 + jnp.tanh(c * (x + 0.044715 * x * x * x)))


def _group_norm_rows(x, gamma, beta, gmat, *, tokens, spatial, eps=1e-5):
    """GroupNorm(G, C) applied per token (SequenceGroupNorm2d).

    x:     [tokens * spatial, C] f32, rows ordered (token, spatial position).
    gamma: [1, C], beta: [1, C], gmat: [G, C] {0,1} grouping matrix (const input).
    Normalization is over (C/G, spatial) per (token, group), matching
    nn.GroupNorm applied to each [C, sub_h, sub_w] token.
    """
    rows, c = x.shape
    groups = gmat.shape[0]
    cg = c // groups
    xt = x.reshape(tokens, spatial, c)

    s1 = jnp.sum(xt, axis=1)                        # [T, C]
    s2 = jnp.sum(xt * xt, axis=1)                   # [T, C]

    contract_last = (((1,), (1,)), ((), ()))
    gs1 = jax.lax.dot_general(s1, gmat, contract_last,
                              preferred_element_type=jnp.float32)  # [T, G]
    gs2 = jax.lax.dot_general(s2, gmat, contract_last,
                              preferred_element_type=jnp.float32)  # [T, G]

    cnt = float(spatial * cg)
    mean = gs1 / cnt
    var = jnp.maximum(gs2 / cnt - mean * mean, 0.0)
    inv = jax.lax.rsqrt(var + eps)                  # [T, G]

    mean_c = jnp.dot(mean, gmat, preferred_element_type=jnp.float32)  # [T, C]
    inv_c = jnp.dot(inv, gmat, preferred_element_type=jnp.float32)    # [T, C]
    scale_c = inv_c * gamma                         # [T, C]
    shift_c = beta - mean_c * scale_c               # [T, C]
    xn = xt * scale_c[:, None, :] + shift_c[:, None, :]
    return xn.reshape(rows, c)


# ----------------------------------------------------------------------------
# Fused encoder-layer kernel (one batch element per grid step)
# ----------------------------------------------------------------------------

def _encoder_kernel(x_ref, gmat_ref, gc_ref, gct_ref, gr_ref, grt_ref,
                    g1_ref, be1_ref, wq_ref, wk_ref, wv_ref, wo_ref,
                    g2_ref, be2_ref, w1_ref, b1_ref, w2_ref, b2_ref,
                    *rest, tokens, spatial, scale, has_mask):
    if has_mask:
        mask_ref, o_ref = rest
    else:
        (o_ref,) = rest

    x = x_ref[...]                                   # [ROWS, C] f32 residual
    gmat = gmat_ref[...]                             # [G, C]
    rows, c = x.shape

    # ---- GroupNorm1 -----------------------------------------------------
    xn1 = _group_norm_rows(x, g1_ref[...], be1_ref[...], gmat,
                           tokens=tokens, spatial=spatial)

    # ---- QKV projections (bias-free; bf16 MXU, f32 accumulate) -----------
    # TODO(synk): FuncSelfAttention / qkv_config internals are not in the
    # provided source; reconstructed as bias-free pointwise qkv + scaled
    # dot-product attention per (channel, y, x) head + pointwise out-proj.
    xnb = xn1.astype(jnp.bfloat16)
    q = jnp.dot(xnb, wq_ref[...], preferred_element_type=jnp.float32)   # [ROWS, C]
    k = jnp.dot(xnb, wk_ref[...], preferred_element_type=jnp.float32)
    vv = jnp.dot(xnb, wv_ref[...], preferred_element_type=jnp.float32)

    # ---- Attention, heads = (spatial sub-block, channel group) -----------
    # No head transpose: rows are ordered (token, sub-block, position) and
    # channels (head-group, in-group), so per-head reductions / broadcasts are
    # expressed with tiny {0,1} indicator matmuls on VMEM-resident data.
    gc = gc_ref[...]        # [C, CH]           lane -> channel-head reduce
    gct = gct_ref[...]      # [CH, C]           channel-head -> lane broadcast
    gr = gr_ref[...]        # [ROWS, T*SB]      row-block -> row broadcast
    grt = grt_ref[...]      # [T*SB, ROWS]      row -> row-block reduce
    q3 = q.reshape(tokens, spatial, c)

    scores = []
    for t in range(tokens):                          # static, tokens is small
        kt = k[t * spatial:(t + 1) * spatial, :]     # [spatial, C]
        e = (q3 * kt[None, :, :]).reshape(rows, c)   # [ROWS, C]
        ec = jnp.dot(e, gc, preferred_element_type=jnp.float32)    # [ROWS, CH]
        st = jnp.dot(grt, ec, preferred_element_type=jnp.float32)  # [T*SB, CH]
        st = st * scale
        if has_mask:
            st = st + mask_ref[...][:, t:t + 1]
        scores.append(st)

    m = scores[0]
    for t in range(1, tokens):
        m = jnp.maximum(m, scores[t])
    exps = [jnp.exp(s - m) for s in scores]
    denom = exps[0]
    for t in range(1, tokens):
        denom = denom + exps[t]
    inv = pl.reciprocal(denom, approx=True)          # [T*SB, CH]

    attn3 = None
    for t in range(tokens):
        p_t = exps[t] * inv                                              # [T*SB, CH]
        pc = jnp.dot(p_t, gct, preferred_element_type=jnp.float32)       # [T*SB, C]
        pb = jnp.dot(gr, pc, preferred_element_type=jnp.float32)         # [ROWS, C]
        pb3 = pb.reshape(tokens, spatial, c)
        vt = vv[t * spatial:(t + 1) * spatial, :]                        # [spatial, C]
        term = pb3 * vt[None, :, :]
        attn3 = term if attn3 is None else attn3 + term
    attn = attn3.reshape(rows, c)

    # ---- out-proj + residual + GroupNorm2 + MLP + residual ---------------
    wo_out = jnp.dot(attn.astype(jnp.bfloat16), wo_ref[...],
                     preferred_element_type=jnp.float32)
    d1 = wo_out + x                                   # attention residual (f32)

    xn2 = _group_norm_rows(d1, g2_ref[...], be2_ref[...], gmat,
                           tokens=tokens, spatial=spatial)
    h = jnp.dot(xn2.astype(jnp.bfloat16), w1_ref[...],
                preferred_element_type=jnp.float32) + b1_ref[...]
    h = _gelu_tanh(h)
    mo = jnp.dot(h.astype(jnp.bfloat16), w2_ref[...],
                 preferred_element_type=jnp.float32) + b2_ref[...]
    o_ref[...] = (mo + d1).astype(o_ref.dtype)        # MLP residual


# ----------------------------------------------------------------------------
# Encoder forward
# ----------------------------------------------------------------------------

def _make_neighborhood_mask(n_sub_y, n_sub_x, radius):
    s = n_sub_y * n_sub_x
    iy = jnp.arange(s) // n_sub_x
    ix = jnp.arange(s) % n_sub_x
    dy = jnp.abs(iy[:, None] - iy[None, :])
    dx = jnp.abs(ix[:, None] - ix[None, :])
    allowed = jnp.maximum(dy, dx) <= radius
    return jnp.where(allowed, 0.0, -1e9).astype(jnp.float32)


def encoder_forward(params, v, n_sub_x, n_sub_y, *, channel_heads, y_heads,
                    x_heads, attn_neighborhood_radius=None, num_groups=8):
    B, S, C, sh, sw = v.shape
    assert S == n_sub_x * n_sub_y, (S, n_sub_x, n_sub_y)
    assert C % num_groups == 0 and C % channel_heads == 0
    assert sh % y_heads == 0 and sw % x_heads == 0

    yh, xh, ch = y_heads, x_heads, channel_heads
    shh, sww = sh // yh, sw // xh
    SB = yh * xh                     # spatial sub-blocks per token
    POS = shh * sww                  # positions per sub-block
    CG = C // ch                     # channels per channel-head
    ROWS = S * SB * POS              # rows per batch element
    hd = CG * POS                    # per-head feature count
    scale = 1.0 / math.sqrt(hd)

    # Single input layout change: rows ordered (s, y_head, x_head, yy, xx),
    # channels last.  This is the only full-activation transpose on the way in.
    x = v.reshape(B, S, C, yh, shh, xh, sww)
    x = x.transpose(0, 1, 3, 5, 4, 6, 2)             # [B,S,yh,xh,shh,sww,C]
    x_rows = x.reshape(B * ROWS, C).astype(jnp.float32)

    # Tiny constant indicator matrices, built once (not per grid step).
    cgn = C // num_groups
    gmat = (jnp.arange(C)[None, :] // cgn
            == jnp.arange(num_groups)[:, None]).astype(jnp.float32)        # [G, C]
    gc = (jnp.arange(C)[:, None] // CG
          == jnp.arange(ch)[None, :]).astype(jnp.float32)                  # [C, CH]
    gct = gc.T                                                             # [CH, C]
    gr = (jnp.arange(ROWS)[:, None] // POS
          == jnp.arange(S * SB)[None, :]).astype(jnp.float32)              # [ROWS, T*SB]
    grt = gr.T                                                             # [T*SB, ROWS]

    mask = None
    if attn_neighborhood_radius is not None:
        m = _make_neighborhood_mask(n_sub_y, n_sub_x, attn_neighborhood_radius)
        mask = jnp.repeat(m, SB, axis=0)                                   # [T*SB, T]

    kern = functools.partial(_encoder_kernel, tokens=S, spatial=SB * POS,
                             scale=scale, has_mask=mask is not None)

    const2 = lambda i: (0, 0)
    row_spec = pl.BlockSpec((ROWS, C), lambda i: (i, 0))

    in_specs = [
        row_spec,                                    # x (residual stream)
        pl.BlockSpec((num_groups, C), const2),       # gmat
        pl.BlockSpec((C, ch), const2),               # gc
        pl.BlockSpec((ch, C), const2),               # gct
        pl.BlockSpec((ROWS, S * SB), const2),        # gr
        pl.BlockSpec((S * SB, ROWS), const2),        # grt
        pl.BlockSpec((1, C), const2),                # norm1 gamma
        pl.BlockSpec((1, C), const2),                # norm1 beta
        pl.BlockSpec((C, C), const2),                # w_q
        pl.BlockSpec((C, C), const2),                # w_k
        pl.BlockSpec((C, C), const2),                # w_v
        pl.BlockSpec((C, C), const2),                # w_o
        pl.BlockSpec((1, C), const2),                # norm2 gamma
        pl.BlockSpec((1, C), const2),                # norm2 beta
        pl.BlockSpec((C, C), const2),                # mlp w1
        pl.BlockSpec((1, C), const2),                # mlp b1
        pl.BlockSpec((C, C), const2),                # mlp w2
        pl.BlockSpec((1, C), const2),                # mlp b2
    ]
    args = [x_rows, gmat, gc, gct, gr, grt,
            params["norm1_gamma"].reshape(1, C), params["norm1_beta"].reshape(1, C),
            params["w_q"], params["w_k"], params["w_v"], params["w_o"],
            params["norm2_gamma"].reshape(1, C), params["norm2_beta"].reshape(1, C),
            params["mlp_w1"], params["mlp_b1"].reshape(1, C),
            params["mlp_w2"], params["mlp_b2"].reshape(1, C)]
    if mask is not None:
        in_specs.append(pl.BlockSpec((S * SB, S), const2))
        args.append(mask)

    out_rows = pl.pallas_call(
        kern,
        out_shape=jax.ShapeDtypeStruct((B * ROWS, C), jnp.float32),
        grid=(B,),
        in_specs=in_specs,
        out_specs=row_spec,
        compiler_params=pltpu.CompilerParams(dimension_semantics=("parallel",)),
    )(*args)

    out = out_rows.reshape(B, S, yh, xh, shh, sww, C)
    out = out.transpose(0, 1, 6, 2, 4, 3, 5)          # [B,S,C,yh,shh,xh,sww]
    return out.reshape(B, S, C, sh, sw)


# ----------------------------------------------------------------------------
# Parameter init (deterministic, synthetic)
# ----------------------------------------------------------------------------

def init_params(key, embed_dim):
    e = embed_dim
    ks = jax.random.split(key, 6)

    def dense(k, shape, scl=0.02):
        # Matmul operands stored bf16 (native MXU dtype); f32 accumulation
        # inside the kernel.
        return (scl * jax.random.normal(k, shape, jnp.float32)).astype(jnp.bfloat16)

    return {
        "norm1_gamma": jnp.ones((e,), jnp.float32),
        "norm1_beta": jnp.zeros((e,), jnp.float32),
        "norm2_gamma": jnp.ones((e,), jnp.float32),
        "norm2_beta": jnp.zeros((e,), jnp.float32),
        "w_q": dense(ks[0], (e, e)),      # use_bias=False -> no qkv/o bias
        "w_k": dense(ks[1], (e, e)),
        "w_v": dense(ks[2], (e, e)),
        "w_o": dense(ks[3], (e, e)),
        "mlp_w1": dense(ks[4], (e, e)),
        "mlp_b1": jnp.zeros((e,), jnp.float32),
        "mlp_w2": dense(ks[5], (e, e)),
        "mlp_b2": jnp.zeros((e,), jnp.float32),
    }


# ----------------------------------------------------------------------------
# Main
# ----------------------------------------------------------------------------

if __name__ == "__main__":
    embed_dim = 32
    channel_heads, y_heads, x_heads = 2, 2, 2
    n_sub_y, n_sub_x = 2, 2
    sub_h, sub_w = 8, 8
    batch = 2
    seq = n_sub_y * n_sub_x

    key = jax.random.PRNGKey(0)
    pkey, xkey = jax.random.split(key)
    params = init_params(pkey, embed_dim)

    # v: sequence of subdomain tokens, [B, S, E, sub_h, sub_w]
    v = jax.random.normal(xkey, (batch, seq, embed_dim, sub_h, sub_w), jnp.float32)

    fwd = jax.jit(functools.partial(
        encoder_forward,
        n_sub_x=n_sub_x, n_sub_y=n_sub_y,
        channel_heads=channel_heads, y_heads=y_heads, x_heads=x_heads,
        attn_neighborhood_radius=None))

    u = fwd(params, v)
    u = jax.block_until_ready(u)

    assert u.shape == (batch, seq, embed_dim, sub_h, sub_w), u.shape
    assert bool(jnp.all(jnp.isfinite(u)))
    print("KERNEL_OK")
</pallas_src>

<mosaic_0001>
module attributes {stable_mosaic.version = 11 : i64} {
  func.func @_encoder_kernel(%arg0: i32, %arg1: memref<256x32xf32, #tpu.memory_space<vmem>>, %arg2: memref<8x32xf32, #tpu.memory_space<vmem>>, %arg3: memref<32x2xf32, #tpu.memory_space<vmem>>, %arg4: memref<2x32xf32, #tpu.memory_space<vmem>>, %arg5: memref<256x16xf32, #tpu.memory_space<vmem>>, %arg6: memref<16x256xf32, #tpu.memory_space<vmem>>, %arg7: memref<1x32xf32, #tpu.memory_space<vmem>>, %arg8: memref<1x32xf32, #tpu.memory_space<vmem>>, %arg9: memref<32x32xbf16, #tpu.memory_space<vmem>>, %arg10: memref<32x32xbf16, #tpu.memory_space<vmem>>, %arg11: memref<32x32xbf16, #tpu.memory_space<vmem>>, %arg12: memref<32x32xbf16, #tpu.memory_space<vmem>>, %arg13: memref<1x32xf32, #tpu.memory_space<vmem>>, %arg14: memref<1x32xf32, #tpu.memory_space<vmem>>, %arg15: memref<32x32xbf16, #tpu.memory_space<vmem>>, %arg16: memref<1x32xf32, #tpu.memory_space<vmem>>, %arg17: memref<32x32xbf16, #tpu.memory_space<vmem>>, %arg18: memref<1x32xf32, #tpu.memory_space<vmem>>, %arg19: memref<256x32xf32, #tpu.memory_space<vmem>>) attributes {dimension_semantics = [#tpu.dimension_semantics<parallel>], iteration_bounds = array<i64: 2>, scalar_prefetch = 0 : i64, scratch_operands = 0 : i64, tpu.core_type = #tpu.core_type<tc>, window_params = [{transform_indices = @transform_0, window_bounds = array<i64: 256, 32>}, {pipeline_mode = #tpu.pipeline_mode<synchronous>, transform_indices = @transform_1, window_bounds = array<i64: 8, 32>}, {pipeline_mode = #tpu.pipeline_mode<synchronous>, transform_indices = @transform_2, window_bounds = array<i64: 32, 2>}, {pipeline_mode = #tpu.pipeline_mode<synchronous>, transform_indices = @transform_3, window_bounds = array<i64: 2, 32>}, {pipeline_mode = #tpu.pipeline_mode<synchronous>, transform_indices = @transform_4, window_bounds = array<i64: 256, 16>}, {pipeline_mode = #tpu.pipeline_mode<synchronous>, transform_indices = @transform_5, window_bounds = array<i64: 16, 256>}, {pipeline_mode = #tpu.pipeline_mode<synchronous>, transform_indices = @transform_6, window_bounds = array<i64: 1, 32>}, {pipeline_mode = #tpu.pipeline_mode<synchronous>, transform_indices = @transform_7, window_bounds = array<i64: 1, 32>}, {pipeline_mode = #tpu.pipeline_mode<synchronous>, transform_indices = @transform_8, window_bounds = array<i64: 32, 32>}, {pipeline_mode = #tpu.pipeline_mode<synchronous>, transform_indices = @transform_9, window_bounds = array<i64: 32, 32>}, {pipeline_mode = #tpu.pipeline_mode<synchronous>, transform_indices = @transform_10, window_bounds = array<i64: 32, 32>}, {pipeline_mode = #tpu.pipeline_mode<synchronous>, transform_indices = @transform_11, window_bounds = array<i64: 32, 32>}, {pipeline_mode = #tpu.pipeline_mode<synchronous>, transform_indices = @transform_12, window_bounds = array<i64: 1, 32>}, {pipeline_mode = #tpu.pipeline_mode<synchronous>, transform_indices = @transform_13, window_bounds = array<i64: 1, 32>}, {pipeline_mode = #tpu.pipeline_mode<synchronous>, transform_indices = @transform_14, window_bounds = array<i64: 32, 32>}, {pipeline_mode = #tpu.pipeline_mode<synchronous>, transform_indices = @transform_15, window_bounds = array<i64: 1, 32>}, {pipeline_mode = #tpu.pipeline_mode<synchronous>, transform_indices = @transform_16, window_bounds = array<i64: 32, 32>}, {pipeline_mode = #tpu.pipeline_mode<synchronous>, transform_indices = @transform_17, window_bounds = array<i64: 1, 32>}, {transform_indices = @transform_18, window_bounds = array<i64: 256, 32>}]} {
    %c0 = arith.constant 0 : index
    %c0_0 = arith.constant 0 : index
    %0 = vector.load %arg1[%c0, %c0_0] : memref<256x32xf32, #tpu.memory_space<vmem>>, vector<256x32xf32>
    %c0_1 = arith.constant 0 : index
    %c0_2 = arith.constant 0 : index
    %1 = vector.load %arg2[%c0_1, %c0_2] : memref<8x32xf32, #tpu.memory_space<vmem>>, vector<8x32xf32>
    %c0_3 = arith.constant 0 : index
    %c0_4 = arith.constant 0 : index
    %2 = vector.load %arg7[%c0_3, %c0_4] : memref<1x32xf32, #tpu.memory_space<vmem>>, vector<1x32xf32>
    %c0_5 = arith.constant 0 : index
    %c0_6 = arith.constant 0 : index
    %3 = vector.load %arg8[%c0_5, %c0_6] : memref<1x32xf32, #tpu.memory_space<vmem>>, vector<1x32xf32>
    %4 = vector.shape_cast %0 : vector<256x32xf32> to vector<4x64x32xf32>
    %cst = arith.constant dense<0.000000e+00> : vector<4x32xf32>
    %5 = vector.multi_reduction <add>, %4, %cst [1] : vector<4x64x32xf32> to vector<4x32xf32>
    %6 = arith.mulf %4, %4 : vector<4x64x32xf32>
    %cst_7 = arith.constant dense<0.000000e+00> : vector<4x32xf32>
    %7 = vector.multi_reduction <add>, %6, %cst_7 [1] : vector<4x64x32xf32> to vector<4x32xf32>
    %cst_8 = arith.constant dense<0.000000e+00> : vector<4x8xf32>
    %8 = tpu.matmul %5, %1, %cst_8 {dimension_numbers = #tpu.dot_dimension_numbers<[1], [1], [0], [0], [0, 0, 1, 0], [], []>} : vector<4x32xf32>, vector<8x32xf32>, vector<4x8xf32> -> vector<4x8xf32>
    %cst_9 = arith.constant dense<0.000000e+00> : vector<4x8xf32>
    %9 = tpu.matmul %7, %1, %cst_9 {dimension_numbers = #tpu.dot_dimension_numbers<[1], [1], [0], [0], [0, 0, 1, 0], [], []>} : vector<4x32xf32>, vector<8x32xf32>, vector<4x8xf32> -> vector<4x8xf32>
    %cst_10 = arith.constant 2.560000e+02 : f32
    %10 = vector.broadcast %cst_10 : f32 to vector<4x8xf32>
    %11 = arith.divf %8, %10 : vector<4x8xf32>
    %cst_11 = arith.constant 2.560000e+02 : f32
    %12 = vector.broadcast %cst_11 : f32 to vector<4x8xf32>
    %13 = arith.divf %9, %12 : vector<4x8xf32>
    %14 = arith.mulf %11, %11 : vector<4x8xf32>
    %15 = arith.subf %13, %14 : vector<4x8xf32>
    %cst_12 = arith.constant 0.000000e+00 : f32
    %16 = vector.broadcast %cst_12 : f32 to vector<4x8xf32>
    %17 = arith.maximumf %15, %16 : vector<4x8xf32>
    %cst_13 = arith.constant 9.99999974E-6 : f32
    %18 = vector.broadcast %cst_13 : f32 to vector<4x8xf32>
    %19 = arith.addf %17, %18 : vector<4x8xf32>
    %20 = math.rsqrt %19 : vector<4x8xf32>
    %cst_14 = arith.constant dense<0.000000e+00> : vector<4x32xf32>
    %21 = tpu.matmul %11, %1, %cst_14 {dimension_numbers = #tpu.dot_dimension_numbers<[1], [0], [0], [1], [0, 0, 1, 1], [], []>} : vector<4x8xf32>, vector<8x32xf32>, vector<4x32xf32> -> vector<4x32xf32>
    %cst_15 = arith.constant dense<0.000000e+00> : vector<4x32xf32>
    %22 = tpu.matmul %20, %1, %cst_15 {dimension_numbers = #tpu.dot_dimension_numbers<[1], [0], [0], [1], [0, 0, 1, 1], [], []>} : vector<4x8xf32>, vector<8x32xf32>, vector<4x32xf32> -> vector<4x32xf32>
    %23 = vector.broadcast %2 : vector<1x32xf32> to vector<4x32xf32>
    %24 = arith.mulf %22, %23 : vector<4x32xf32>
    %25 = arith.mulf %21, %24 : vector<4x32xf32>
    %26 = vector.broadcast %3 : vector<1x32xf32> to vector<4x32xf32>
    %27 = arith.subf %26, %25 : vector<4x32xf32>
    %28 = vector.shape_cast %24 : vector<4x32xf32> to vector<4x1x32xf32>
    %29 = vector.broadcast %28 : vector<4x1x32xf32> to vector<4x64x32xf32>
    %30 = arith.mulf %4, %29 : vector<4x64x32xf32>
    %31 = vector.shape_cast %27 : vector<4x32xf32> to vector<4x1x32xf32>
    %32 = vector.broadcast %31 : vector<4x1x32xf32> to vector<4x64x32xf32>
    %33 = arith.addf %30, %32 : vector<4x64x32xf32>
    %34 = vector.shape_cast %33 : vector<4x64x32xf32> to vector<256x32xf32>
    %35 = arith.truncf %34 : vector<256x32xf32> to vector<256x32xbf16>
    %c0_16 = arith.constant 0 : index
    %c0_17 = arith.constant 0 : index
    %36 = vector.load %arg9[%c0_16, %c0_17] : memref<32x32xbf16, #tpu.memory_space<vmem>>, vector<32x32xbf16>
    %cst_18 = arith.constant dense<0.000000e+00> : vector<256x32xf32>
    %37 = tpu.matmul %35, %36, %cst_18 {dimension_numbers = #tpu.dot_dimension_numbers<[1], [0], [0], [1], [0, 0, 1, 1], [], []>} : vector<256x32xbf16>, vector<32x32xbf16>, vector<256x32xf32> -> vector<256x32xf32>
    %c0_19 = arith.constant 0 : index
    %c0_20 = arith.constant 0 : index
    %38 = vector.load %arg10[%c0_19, %c0_20] : memref<32x32xbf16, #tpu.memory_space<vmem>>, vector<32x32xbf16>
    %cst_21 = arith.constant dense<0.000000e+00> : vector<256x32xf32>
    %39 = tpu.matmul %35, %38, %cst_21 {dimension_numbers = #tpu.dot_dimension_numbers<[1], [0], [0], [1], [0, 0, 1, 1], [], []>} : vector<256x32xbf16>, vector<32x32xbf16>, vector<256x32xf32> -> vector<256x32xf32>
    %c0_22 = arith.constant 0 : index
    %c0_23 = arith.constant 0 : index
    %40 = vector.load %arg11[%c0_22, %c0_23] : memref<32x32xbf16, #tpu.memory_space<vmem>>, vector<32x32xbf16>
    %cst_24 = arith.constant dense<0.000000e+00> : vector<256x32xf32>
    %41 = tpu.matmul %35, %40, %cst_24 {dimension_numbers = #tpu.dot_dimension_numbers<[1], [0], [0], [1], [0, 0, 1, 1], [], []>} : vector<256x32xbf16>, vector<32x32xbf16>, vector<256x32xf32> -> vector<256x32xf32>
    %c0_25 = arith.constant 0 : index
    %c0_26 = arith.constant 0 : index
    %42 = vector.load %arg3[%c0_25, %c0_26] : memref<32x2xf32, #tpu.memory_space<vmem>>, vector<32x2xf32>
    %c0_27 = arith.constant 0 : index
    %c0_28 = arith.constant 0 : index
    %43 = vector.load %arg4[%c0_27, %c0_28] : memref<2x32xf32, #tpu.memory_space<vmem>>, vector<2x32xf32>
    %c0_29 = arith.constant 0 : index
    %c0_30 = arith.constant 0 : index
    %44 = vector.load %arg5[%c0_29, %c0_30] : memref<256x16xf32, #tpu.memory_space<vmem>>, vector<256x16xf32>
    %c0_31 = arith.constant 0 : index
    %c0_32 = arith.constant 0 : index
    %45 = vector.load %arg6[%c0_31, %c0_32] : memref<16x256xf32, #tpu.memory_space<vmem>>, vector<16x256xf32>
    %46 = vector.shape_cast %37 : vector<256x32xf32> to vector<4x64x32xf32>
    %47 = vector.extract_strided_slice %39 {offsets = [0, 0], sizes = [64, 32], strides = [1, 1]} : vector<256x32xf32> to vector<64x32xf32>
    %48 = vector.shape_cast %47 : vector<64x32xf32> to vector<1x64x32xf32>
    %49 = vector.broadcast %48 : vector<1x64x32xf32> to vector<4x64x32xf32>
    %50 = arith.mulf %46, %49 : vector<4x64x32xf32>
    %51 = vector.shape_cast %50 : vector<4x64x32xf32> to vector<256x32xf32>
    %cst_33 = arith.constant dense<0.000000e+00> : vector<256x2xf32>
    %52 = tpu.matmul %51, %42, %cst_33 {dimension_numbers = #tpu.dot_dimension_numbers<[1], [0], [0], [1], [0, 0, 1, 1], [], []>} : vector<256x32xf32>, vector<32x2xf32>, vector<256x2xf32> -> vector<256x2xf32>
    %cst_34 = arith.constant dense<0.000000e+00> : vector<16x2xf32>
    %53 = tpu.matmul %45, %52, %cst_34 {dimension_numbers = #tpu.dot_dimension_numbers<[1], [0], [0], [1], [0, 0, 1, 1], [], []>} : vector<16x256xf32>, vector<256x2xf32>, vector<16x2xf32> -> vector<16x2xf32>
    %cst_35 = arith.constant 6.250000e-02 : f32
    %54 = vector.broadcast %cst_35 : f32 to vector<16x2xf32>
    %55 = arith.mulf %53, %54 : vector<16x2xf32>
    %56 = vector.extract_strided_slice %39 {offsets = [64, 0], sizes = [64, 32], strides = [1, 1]} : vector<256x32xf32> to vector<64x32xf32>
    %57 = vector.shape_cast %56 : vector<64x32xf32> to vector<1x64x32xf32>
    %58 = vector.broadcast %57 : vector<1x64x32xf32> to vector<4x64x32xf32>
    %59 = arith.mulf %46, %58 : vector<4x64x32xf32>
    %60 = vector.shape_cast %59 : vector<4x64x32xf32> to vector<256x32xf32>
    %cst_36 = arith.constant dense<0.000000e+00> : vector<256x2xf32>
    %61 = tpu.matmul %60, %42, %cst_36 {dimension_numbers = #tpu.dot_dimension_numbers<[1], [0], [0], [1], [0, 0, 1, 1], [], []>} : vector<256x32xf32>, vector<32x2xf32>, vector<256x2xf32> -> vector<256x2xf32>
    %cst_37 = arith.constant dense<0.000000e+00> : vector<16x2xf32>
    %62 = tpu.matmul %45, %61, %cst_37 {dimension_numbers = #tpu.dot_dimension_numbers<[1], [0], [0], [1], [0, 0, 1, 1], [], []>} : vector<16x256xf32>, vector<256x2xf32>, vector<16x2xf32> -> vector<16x2xf32>
    %cst_38 = arith.constant 6.250000e-02 : f32
    %63 = vector.broadcast %cst_38 : f32 to vector<16x2xf32>
    %64 = arith.mulf %62, %63 : vector<16x2xf32>
    %65 = vector.extract_strided_slice %39 {offsets = [128, 0], sizes = [64, 32], strides = [1, 1]} : vector<256x32xf32> to vector<64x32xf32>
    %66 = vector.shape_cast %65 : vector<64x32xf32> to vector<1x64x32xf32>
    %67 = vector.broadcast %66 : vector<1x64x32xf32> to vector<4x64x32xf32>
    %68 = arith.mulf %46, %67 : vector<4x64x32xf32>
    %69 = vector.shape_cast %68 : vector<4x64x32xf32> to vector<256x32xf32>
    %cst_39 = arith.constant dense<0.000000e+00> : vector<256x2xf32>
    %70 = tpu.matmul %69, %42, %cst_39 {dimension_numbers = #tpu.dot_dimension_numbers<[1], [0], [0], [1], [0, 0, 1, 1], [], []>} : vector<256x32xf32>, vector<32x2xf32>, vector<256x2xf32> -> vector<256x2xf32>
    %cst_40 = arith.constant dense<0.000000e+00> : vector<16x2xf32>
    %71 = tpu.matmul %45, %70, %cst_40 {dimension_numbers = #tpu.dot_dimension_numbers<[1], [0], [0], [1], [0, 0, 1, 1], [], []>} : vector<16x256xf32>, vector<256x2xf32>, vector<16x2xf32> -> vector<16x2xf32>
    %cst_41 = arith.constant 6.250000e-02 : f32
    %72 = vector.broadcast %cst_41 : f32 to vector<16x2xf32>
    %73 = arith.mulf %71, %72 : vector<16x2xf32>
    %74 = vector.extract_strided_slice %39 {offsets = [192, 0], sizes = [64, 32], strides = [1, 1]} : vector<256x32xf32> to vector<64x32xf32>
    %75 = vector.shape_cast %74 : vector<64x32xf32> to vector<1x64x32xf32>
    %76 = vector.broadcast %75 : vector<1x64x32xf32> to vector<4x64x32xf32>
    %77 = arith.mulf %46, %76 : vector<4x64x32xf32>
    %78 = vector.shape_cast %77 : vector<4x64x32xf32> to vector<256x32xf32>
    %cst_42 = arith.constant dense<0.000000e+00> : vector<256x2xf32>
    %79 = tpu.matmul %78, %42, %cst_42 {dimension_numbers = #tpu.dot_dimension_numbers<[1], [0], [0], [1], [0, 0, 1, 1], [], []>} : vector<256x32xf32>, vector<32x2xf32>, vector<256x2xf32> -> vector<256x2xf32>
    %cst_43 = arith.constant dense<0.000000e+00> : vector<16x2xf32>
    %80 = tpu.matmul %45, %79, %cst_43 {dimension_numbers = #tpu.dot_dimension_numbers<[1], [0], [0], [1], [0, 0, 1, 1], [], []>} : vector<16x256xf32>, vector<256x2xf32>, vector<16x2xf32> -> vector<16x2xf32>
    %cst_44 = arith.constant 6.250000e-02 : f32
    %81 = vector.broadcast %cst_44 : f32 to vector<16x2xf32>
    %82 = arith.mulf %80, %81 : vector<16x2xf32>
    %83 = arith.maximumf %55, %64 : vector<16x2xf32>
    %84 = arith.maximumf %83, %73 : vector<16x2xf32>
    %85 = arith.maximumf %84, %82 : vector<16x2xf32>
    %86 = arith.subf %55, %85 : vector<16x2xf32>
    %87 = math.exp %86 : vector<16x2xf32>
    %88 = arith.subf %64, %85 : vector<16x2xf32>
    %89 = math.exp %88 : vector<16x2xf32>
    %90 = arith.subf %73, %85 : vector<16x2xf32>
    %91 = math.exp %90 : vector<16x2xf32>
    %92 = arith.subf %82, %85 : vector<16x2xf32>
    %93 = math.exp %92 : vector<16x2xf32>
    %94 = arith.addf %87, %89 : vector<16x2xf32>
    %95 = arith.addf %94, %91 : vector<16x2xf32>
    %96 = arith.addf %95, %93 : vector<16x2xf32>
    %97 = tpu.reciprocal %96 {approx = true} : vector<16x2xf32> -> vector<16x2xf32>
    %98 = arith.mulf %87, %97 : vector<16x2xf32>
    %cst_45 = arith.constant dense<0.000000e+00> : vector<16x32xf32>
    %99 = tpu.matmul %98, %43, %cst_45 {dimension_numbers = #tpu.dot_dimension_numbers<[1], [0], [0], [1], [0, 0, 1, 1], [], []>} : vector<16x2xf32>, vector<2x32xf32>, vector<16x32xf32> -> vector<16x32xf32>
    %cst_46 = arith.constant dense<0.000000e+00> : vector<256x32xf32>
    %100 = tpu.matmul %44, %99, %cst_46 {dimension_numbers = #tpu.dot_dimension_numbers<[1], [0], [0], [1], [0, 0, 1, 1], [], []>} : vector<256x16xf32>, vector<16x32xf32>, vector<256x32xf32> -> vector<256x32xf32>
    %101 = vector.shape_cast %100 : vector<256x32xf32> to vector<4x64x32xf32>
    %102 = vector.extract_strided_slice %41 {offsets = [0, 0], sizes = [64, 32], strides = [1, 1]} : vector<256x32xf32> to vector<64x32xf32>
    %103 = vector.shape_cast %102 : vector<64x32xf32> to vector<1x64x32xf32>
    %104 = vector.broadcast %103 : vector<1x64x32xf32> to vector<4x64x32xf32>
    %105 = arith.mulf %101, %104 : vector<4x64x32xf32>
    %106 = arith.mulf %89, %97 : vector<16x2xf32>
    %cst_47 = arith.constant dense<0.000000e+00> : vector<16x32xf32>
    %107 = tpu.matmul %106, %43, %cst_47 {dimension_numbers = #tpu.dot_dimension_numbers<[1], [0], [0], [1], [0, 0, 1, 1], [], []>} : vector<16x2xf32>, vector<2x32xf32>, vector<16x32xf32> -> vector<16x32xf32>
    %cst_48 = arith.constant dense<0.000000e+00> : vector<256x32xf32>
    %108 = tpu.matmul %44, %107, %cst_48 {dimension_numbers = #tpu.dot_dimension_numbers<[1], [0], [0], [1], [0, 0, 1, 1], [], []>} : vector<256x16xf32>, vector<16x32xf32>, vector<256x32xf32> -> vector<256x32xf32>
    %109 = vector.shape_cast %108 : vector<256x32xf32> to vector<4x64x32xf32>
    %110 = vector.extract_strided_slice %41 {offsets = [64, 0], sizes = [64, 32], strides = [1, 1]} : vector<256x32xf32> to vector<64x32xf32>
    %111 = vector.shape_cast %110 : vector<64x32xf32> to vector<1x64x32xf32>
    %112 = vector.broadcast %111 : vector<1x64x32xf32> to vector<4x64x32xf32>
    %113 = arith.mulf %109, %112 : vector<4x64x32xf32>
    %114 = arith.addf %105, %113 : vector<4x64x32xf32>
    %115 = arith.mulf %91, %97 : vector<16x2xf32>
    %cst_49 = arith.constant dense<0.000000e+00> : vector<16x32xf32>
    %116 = tpu.matmul %115, %43, %cst_49 {dimension_numbers = #tpu.dot_dimension_numbers<[1], [0], [0], [1], [0, 0, 1, 1], [], []>} : vector<16x2xf32>, vector<2x32xf32>, vector<16x32xf32> -> vector<16x32xf32>
    %cst_50 = arith.constant dense<0.000000e+00> : vector<256x32xf32>
    %117 = tpu.matmul %44, %116, %cst_50 {dimension_numbers = #tpu.dot_dimension_numbers<[1], [0], [0], [1], [0, 0, 1, 1], [], []>} : vector<256x16xf32>, vector<16x32xf32>, vector<256x32xf32> -> vector<256x32xf32>
    %118 = vector.shape_cast %117 : vector<256x32xf32> to vector<4x64x32xf32>
    %119 = vector.extract_strided_slice %41 {offsets = [128, 0], sizes = [64, 32], strides = [1, 1]} : vector<256x32xf32> to vector<64x32xf32>
    %120 = vector.shape_cast %119 : vector<64x32xf32> to vector<1x64x32xf32>
    %121 = vector.broadcast %120 : vector<1x64x32xf32> to vector<4x64x32xf32>
    %122 = arith.mulf %118, %121 : vector<4x64x32xf32>
    %123 = arith.addf %114, %122 : vector<4x64x32xf32>
    %124 = arith.mulf %93, %97 : vector<16x2xf32>
    %cst_51 = arith.constant dense<0.000000e+00> : vector<16x32xf32>
    %125 = tpu.matmul %124, %43, %cst_51 {dimension_numbers = #tpu.dot_dimension_numbers<[1], [0], [0], [1], [0, 0, 1, 1], [], []>} : vector<16x2xf32>, vector<2x32xf32>, vector<16x32xf32> -> vector<16x32xf32>
    %cst_52 = arith.constant dense<0.000000e+00> : vector<256x32xf32>
    %126 = tpu.matmul %44, %125, %cst_52 {dimension_numbers = #tpu.dot_dimension_numbers<[1], [0], [0], [1], [0, 0, 1, 1], [], []>} : vector<256x16xf32>, vector<16x32xf32>, vector<256x32xf32> -> vector<256x32xf32>
    %127 = vector.shape_cast %126 : vector<256x32xf32> to vector<4x64x32xf32>
    %128 = vector.extract_strided_slice %41 {offsets = [192, 0], sizes = [64, 32], strides = [1, 1]} : vector<256x32xf32> to vector<64x32xf32>
    %129 = vector.shape_cast %128 : vector<64x32xf32> to vector<1x64x32xf32>
    %130 = vector.broadcast %129 : vector<1x64x32xf32> to vector<4x64x32xf32>
    %131 = arith.mulf %127, %130 : vector<4x64x32xf32>
    %132 = arith.addf %123, %131 : vector<4x64x32xf32>
    %133 = vector.shape_cast %132 : vector<4x64x32xf32> to vector<256x32xf32>
    %134 = arith.truncf %133 : vector<256x32xf32> to vector<256x32xbf16>
    %c0_53 = arith.constant 0 : index
    %c0_54 = arith.constant 0 : index
    %135 = vector.load %arg12[%c0_53, %c0_54] : memref<32x32xbf16, #tpu.memory_space<vmem>>, vector<32x32xbf16>
    %cst_55 = arith.constant dense<0.000000e+00> : vector<256x32xf32>
    %136 = tpu.matmul %134, %135, %cst_55 {dimension_numbers = #tpu.dot_dimension_numbers<[1], [0], [0], [1], [0, 0, 1, 1], [], []>} : vector<256x32xbf16>, vector<32x32xbf16>, vector<256x32xf32> -> vector<256x32xf32>
    %137 = arith.addf %136, %0 : vector<256x32xf32>
    %c0_56 = arith.constant 0 : index
    %c0_57 = arith.constant 0 : index
    %138 = vector.load %arg13[%c0_56, %c0_57] : memref<1x32xf32, #tpu.memory_space<vmem>>, vector<1x32xf32>
    %c0_58 = arith.constant 0 : index
    %c0_59 = arith.constant 0 : index
    %139 = vector.load %arg14[%c0_58, %c0_59] : memref<1x32xf32, #tpu.memory_space<vmem>>, vector<1x32xf32>
    %140 = vector.shape_cast %137 : vector<256x32xf32> to vector<4x64x32xf32>
    %cst_60 = arith.constant dense<0.000000e+00> : vector<4x32xf32>
    %141 = vector.multi_reduction <add>, %140, %cst_60 [1] : vector<4x64x32xf32> to vector<4x32xf32>
    %142 = arith.mulf %140, %140 : vector<4x64x32xf32>
    %cst_61 = arith.constant dense<0.000000e+00> : vector<4x32xf32>
    %143 = vector.multi_reduction <add>, %142, %cst_61 [1] : vector<4x64x32xf32> to vector<4x32xf32>
    %cst_62 = arith.constant dense<0.000000e+00> : vector<4x8xf32>
    %144 = tpu.matmul %141, %1, %cst_62 {dimension_numbers = #tpu.dot_dimension_numbers<[1], [1], [0], [0], [0, 0, 1, 0], [], []>} : vector<4x32xf32>, vector<8x32xf32>, vector<4x8xf32> -> vector<4x8xf32>
    %cst_63 = arith.constant dense<0.000000e+00> : vector<4x8xf32>
    %145 = tpu.matmul %143, %1, %cst_63 {dimension_numbers = #tpu.dot_dimension_numbers<[1], [1], [0], [0], [0, 0, 1, 0], [], []>} : vector<4x32xf32>, vector<8x32xf32>, vector<4x8xf32> -> vector<4x8xf32>
    %cst_64 = arith.constant 2.560000e+02 : f32
    %146 = vector.broadcast %cst_64 : f32 to vector<4x8xf32>
    %147 = arith.divf %144, %146 : vector<4x8xf32>
    %cst_65 = arith.constant 2.560000e+02 : f32
    %148 = vector.broadcast %cst_65 : f32 to vector<4x8xf32>
    %149 = arith.divf %145, %148 : vector<4x8xf32>
    %150 = arith.mulf %147, %147 : vector<4x8xf32>
    %151 = arith.subf %149, %150 : vector<4x8xf32>
    %cst_66 = arith.constant 0.000000e+00 : f32
    %152 = vector.broadcast %cst_66 : f32 to vector<4x8xf32>
    %153 = arith.maximumf %151, %152 : vector<4x8xf32>
    %cst_67 = arith.constant 9.99999974E-6 : f32
    %154 = vector.broadcast %cst_67 : f32 to vector<4x8xf32>
    %155 = arith.addf %153, %154 : vector<4x8xf32>
    %156 = math.rsqrt %155 : vector<4x8xf32>
    %cst_68 = arith.constant dense<0.000000e+00> : vector<4x32xf32>
    %157 = tpu.matmul %147, %1, %cst_68 {dimension_numbers = #tpu.dot_dimension_numbers<[1], [0], [0], [1], [0, 0, 1, 1], [], []>} : vector<4x8xf32>, vector<8x32xf32>, vector<4x32xf32> -> vector<4x32xf32>
    %cst_69 = arith.constant dense<0.000000e+00> : vector<4x32xf32>
    %158 = tpu.matmul %156, %1, %cst_69 {dimension_numbers = #tpu.dot_dimension_numbers<[1], [0], [0], [1], [0, 0, 1, 1], [], []>} : vector<4x8xf32>, vector<8x32xf32>, vector<4x32xf32> -> vector<4x32xf32>
    %159 = vector.broadcast %138 : vector<1x32xf32> to vector<4x32xf32>
    %160 = arith.mulf %158, %159 : vector<4x32xf32>
    %161 = arith.mulf %157, %160 : vector<4x32xf32>
    %162 = vector.broadcast %139 : vector<1x32xf32> to vector<4x32xf32>
    %163 = arith.subf %162, %161 : vector<4x32xf32>
    %164 = vector.shape_cast %160 : vector<4x32xf32> to vector<4x1x32xf32>
    %165 = vector.broadcast %164 : vector<4x1x32xf32> to vector<4x64x32xf32>
    %166 = arith.mulf %140, %165 : vector<4x64x32xf32>
    %167 = vector.shape_cast %163 : vector<4x32xf32> to vector<4x1x32xf32>
    %168 = vector.broadcast %167 : vector<4x1x32xf32> to vector<4x64x32xf32>
    %169 = arith.addf %166, %168 : vector<4x64x32xf32>
    %170 = vector.shape_cast %169 : vector<4x64x32xf32> to vector<256x32xf32>
    %171 = arith.truncf %170 : vector<256x32xf32> to vector<256x32xbf16>
    %c0_70 = arith.constant 0 : index
    %c0_71 = arith.constant 0 : index
    %172 = vector.load %arg15[%c0_70, %c0_71] : memref<32x32xbf16, #tpu.memory_space<vmem>>, vector<32x32xbf16>
    %cst_72 = arith.constant dense<0.000000e+00> : vector<256x32xf32>
    %173 = tpu.matmul %171, %172, %cst_72 {dimension_numbers = #tpu.dot_dimension_numbers<[1], [0], [0], [1], [0, 0, 1, 1], [], []>} : vector<256x32xbf16>, vector<32x32xbf16>, vector<256x32xf32> -> vector<256x32xf32>
    %c0_73 = arith.constant 0 : index
    %c0_74 = arith.constant 0 : index
    %174 = vector.load %arg16[%c0_73, %c0_74] : memref<1x32xf32, #tpu.memory_space<vmem>>, vector<1x32xf32>
    %175 = vector.broadcast %174 : vector<1x32xf32> to vector<256x32xf32>
    %176 = arith.addf %173, %175 : vector<256x32xf32>
    %cst_75 = arith.constant 5.000000e-01 : f32
    %177 = vector.broadcast %cst_75 : f32 to vector<256x32xf32>
    %178 = arith.mulf %177, %176 : vector<256x32xf32>
    %cst_76 = arith.constant 4.471500e-02 : f32
    %179 = vector.broadcast %cst_76 : f32 to vector<256x32xf32>
    %180 = arith.mulf %179, %176 : vector<256x32xf32>
    %181 = arith.mulf %180, %176 : vector<256x32xf32>
    %182 = arith.mulf %181, %176 : vector<256x32xf32>
    %183 = arith.addf %176, %182 : vector<256x32xf32>
    %cst_77 = arith.constant 0.797884583 : f32
    %184 = vector.broadcast %cst_77 : f32 to vector<256x32xf32>
    %185 = arith.mulf %184, %183 : vector<256x32xf32>
    %186 = math.tanh %185 : vector<256x32xf32>
    %cst_78 = arith.constant 1.000000e+00 : f32
    %187 = vector.broadcast %cst_78 : f32 to vector<256x32xf32>
    %188 = arith.addf %187, %186 : vector<256x32xf32>
    %189 = arith.mulf %178, %188 : vector<256x32xf32>
    %190 = arith.truncf %189 : vector<256x32xf32> to vector<256x32xbf16>
    %c0_79 = arith.constant 0 : index
    %c0_80 = arith.constant 0 : index
    %191 = vector.load %arg17[%c0_79, %c0_80] : memref<32x32xbf16, #tpu.memory_space<vmem>>, vector<32x32xbf16>
    %cst_81 = arith.constant dense<0.000000e+00> : vector<256x32xf32>
    %192 = tpu.matmul %190, %191, %cst_81 {dimension_numbers = #tpu.dot_dimension_numbers<[1], [0], [0], [1], [0, 0, 1, 1], [], []>} : vector<256x32xbf16>, vector<32x32xbf16>, vector<256x32xf32> -> vector<256x32xf32>
    %c0_82 = arith.constant 0 : index
    %c0_83 = arith.constant 0 : index
    %193 = vector.load %arg18[%c0_82, %c0_83] : memref<1x32xf32, #tpu.memory_space<vmem>>, vector<1x32xf32>
    %194 = vector.broadcast %193 : vector<1x32xf32> to vector<256x32xf32>
    %195 = arith.addf %192, %194 : vector<256x32xf32>
    %196 = arith.addf %195, %137 : vector<256x32xf32>
    %c0_84 = arith.constant 0 : index
    %c0_85 = arith.constant 0 : index
    %197 = vector.load %arg19[%c0_84, %c0_85] : memref<256x32xf32, #tpu.memory_space<vmem>>, vector<256x32xf32>
    tpu.vector_store %arg19[%c0_84, %c0_85], %196 {strides = array<i32>} : memref<256x32xf32, #tpu.memory_space<vmem>>, vector<256x32xf32>,
    return
  }
  func.func @transform_0(%arg0: i32) -> (i32, i32) {
    %c0_i32 = arith.constant 0 : i32
    %c0_i32_0 = arith.constant 0 : i32
    return %arg0, %c0_i32 : i32, i32
  }
  func.func @transform_1(%arg0: i32) -> (i32, i32) {
    %c0_i32 = arith.constant 0 : i32
    %c0_i32_0 = arith.constant 0 : i32
    %c0_i32_1 = arith.constant 0 : i32
    return %c0_i32, %c0_i32_0 : i32, i32
  }
  func.func @transform_2(%arg0: i32) -> (i32, i32) {
    %c0_i32 = arith.constant 0 : i32
    %c0_i32_0 = arith.constant 0 : i32
    %c0_i32_1 = arith.constant 0 : i32
    return %c0_i32, %c0_i32_0 : i32, i32
  }
  func.func @transform_3(%arg0: i32) -> (i32, i32) {
    %c0_i32 = arith.constant 0 : i32
    %c0_i32_0 = arith.constant 0 : i32
    %c0_i32_1 = arith.constant 0 : i32
    return %c0_i32, %c0_i32_0 : i32, i32
  }
  func.func @transform_4(%arg0: i32) -> (i32, i32) {
    %c0_i32 = arith.constant 0 : i32
    %c0_i32_0 = arith.constant 0 : i32
    %c0_i32_1 = arith.constant 0 : i32
    return %c0_i32, %c0_i32_0 : i32, i32
  }
  func.func @transform_5(%arg0: i32) -> (i32, i32) {
    %c0_i32 = arith.constant 0 : i32
    %c0_i32_0 = arith.constant 0 : i32
    %c0_i32_1 = arith.constant 0 : i32
    return %c0_i32, %c0_i32_0 : i32, i32
  }
  func.func @transform_6(%arg0: i32) -> (i32, i32) {
    %c0_i32 = arith.constant 0 : i32
    %c0_i32_0 = arith.constant 0 : i32
    %c0_i32_1 = arith.constant 0 : i32
    return %c0_i32, %c0_i32_0 : i32, i32
  }
  func.func @transform_7(%arg0: i32) -> (i32, i32) {
    %c0_i32 = arith.constant 0 : i32
    %c0_i32_0 = arith.constant 0 : i32
    %c0_i32_1 = arith.constant 0 : i32
    return %c0_i32, %c0_i32_0 : i32, i32
  }
  func.func @transform_8(%arg0: i32) -> (i32, i32) {
    %c0_i32 = arith.constant 0 : i32
    %c0_i32_0 = arith.constant 0 : i32
    %c0_i32_1 = arith.constant 0 : i32
    return %c0_i32, %c0_i32_0 : i32, i32
  }
  func.func @transform_9(%arg0: i32) -> (i32, i32) {
    %c0_i32 = arith.constant 0 : i32
    %c0_i32_0 = arith.constant 0 : i32
    %c0_i32_1 = arith.constant 0 : i32
    return %c0_i32, %c0_i32_0 : i32, i32
  }
  func.func @transform_10(%arg0: i32) -> (i32, i32) {
    %c0_i32 = arith.constant 0 : i32
    %c0_i32_0 = arith.constant 0 : i32
    %c0_i32_1 = arith.constant 0 : i32
    return %c0_i32, %c0_i32_0 : i32, i32
  }
  func.func @transform_11(%arg0: i32) -> (i32, i32) {
    %c0_i32 = arith.constant 0 : i32
    %c0_i32_0 = arith.constant 0 : i32
    %c0_i32_1 = arith.constant 0 : i32
    return %c0_i32, %c0_i32_0 : i32, i32
  }
  func.func @transform_12(%arg0: i32) -> (i32, i32) {
    %c0_i32 = arith.constant 0 : i32
    %c0_i32_0 = arith.constant 0 : i32
    %c0_i32_1 = arith.constant 0 : i32
    return %c0_i32, %c0_i32_0 : i32, i32
  }
  func.func @transform_13(%arg0: i32) -> (i32, i32) {
    %c0_i32 = arith.constant 0 : i32
    %c0_i32_0 = arith.constant 0 : i32
    %c0_i32_1 = arith.constant 0 : i32
    return %c0_i32, %c0_i32_0 : i32, i32
  }
  func.func @transform_14(%arg0: i32) -> (i32, i32) {
    %c0_i32 = arith.constant 0 : i32
    %c0_i32_0 = arith.constant 0 : i32
    %c0_i32_1 = arith.constant 0 : i32
    return %c0_i32, %c0_i32_0 : i32, i32
  }
  func.func @transform_15(%arg0: i32) -> (i32, i32) {
    %c0_i32 = arith.constant 0 : i32
    %c0_i32_0 = arith.constant 0 : i32
    %c0_i32_1 = arith.constant 0 : i32
    return %c0_i32, %c0_i32_0 : i32, i32
  }
  func.func @transform_16(%arg0: i32) -> (i32, i32) {
    %c0_i32 = arith.constant 0 : i32
    %c0_i32_0 = arith.constant 0 : i32
    %c0_i32_1 = arith.constant 0 : i32
    return %c0_i32, %c0_i32_0 : i32, i32
  }
  func.func @transform_17(%arg0: i32) -> (i32, i32) {
    %c0_i32 = arith.constant 0 : i32
    %c0_i32_0 = arith.constant 0 : i32
    %c0_i32_1 = arith.constant 0 : i32
    return %c0_i32, %c0_i32_0 : i32, i32
  }
  func.func @transform_18(%arg0: i32) -> (i32, i32) {
    %c0_i32 = arith.constant 0 : i32
    %c0_i32_0 = arith.constant 0 : i32
    return %arg0, %c0_i32 : i32, i32
  }
}

</mosaic_0001>

<llo_original>
// kernel: encoder_forward.1
$region0: #{encoder_forward.1}
  #allocation0 [shape = 'u32[]', space=smem, size = 0x4, offset = 0x4, fixed_abs, tag = 'smem constant byte address 0x4 - core index']
  #allocation1 [shape = 'u32[72,128]{1,0:T(1,128)}', space=vmem, size = 0x9000, scoped, tag = 'internal scratch']
  %s0 = inlined_call_operand.vmem [shape: f32[512,32], index: 0, kind: input, shape index: {}]
  %s1 = inlined_call_operand.vmem [shape: f32[8,32], index: 1, kind: input, shape index: {}]
  %s2 = inlined_call_operand.vmem [shape: f32[32,2], index: 2, kind: input, shape index: {}]
  %s3 = inlined_call_operand.vmem [shape: f32[2,32], index: 3, kind: input, shape index: {}]
  %s4 = inlined_call_operand.vmem [shape: f32[256,16], index: 4, kind: input, shape index: {}]
  %s5 = inlined_call_operand.vmem [shape: f32[16,256], index: 5, kind: input, shape index: {}]
  %s6 = inlined_call_operand.vmem [shape: f32[1,32], index: 6, kind: input, shape index: {}]
  %s7 = inlined_call_operand.vmem [shape: f32[1,32], index: 7, kind: input, shape index: {}]
  %s8 = inlined_call_operand.vmem [shape: bf16[32,32], index: 8, kind: input, shape index: {}]
  %s9 = inlined_call_operand.vmem [shape: bf16[32,32], index: 9, kind: input, shape index: {}]
  %s10 = inlined_call_operand.vmem [shape: bf16[32,32], index: 10, kind: input, shape index: {}]
  %s11 = inlined_call_operand.vmem [shape: bf16[32,32], index: 11, kind: input, shape index: {}]
  %s12 = inlined_call_operand.vmem [shape: f32[1,32], index: 12, kind: input, shape index: {}]
  %s13 = inlined_call_operand.vmem [shape: f32[1,32], index: 13, kind: input, shape index: {}]
  %s14 = inlined_call_operand.vmem [shape: bf16[32,32], index: 14, kind: input, shape index: {}]
  %s15 = inlined_call_operand.vmem [shape: f32[1,32], index: 15, kind: input, shape index: {}]
  %s16 = inlined_call_operand.vmem [shape: bf16[32,32], index: 16, kind: input, shape index: {}]
  %s17 = inlined_call_operand.vmem [shape: f32[1,32], index: 17, kind: input, shape index: {}]
  %s18 = inlined_call_operand.vmem [shape: f32[512,32], index: 18, kind: output, shape index: {}]
  %s19 = sld [smem:[#allocation0]]
  $region105: #{encoder_forward.1} parent=0
    _
  %s21 = ssub.s32 1, %s19
  %s22 = scalar_select 0, %s21, %s19
  loop: start=0, step=1, limit=4
  $region2: #{encoder_forward.1} parent=0 // loop_pre_header
    _
  $region3: #{encoder_forward.1} parent=0 // loop_header
    %s24 = sphi 0, %s28
    %p25 = scmp.ge.s32.totalorder %s24, 4
    %s34 = sphi 0, %s36
    %s37 = sphi 0, %s34
    %s38 = sphi 0, %s37
    %s54 = sphi 0, %s38
    %s58 = sphi 0, %s58
    %s60 = sphi 0, %s58
    %s61 = sphi 0, %s60
    %s75 = sphi 0, %s61
    %s79 = sphi 0, %s79
    %s81 = sphi 0, %s79
    %s82 = sphi 0, %s81
    %s96 = sphi 0, %s82
    %s100 = sphi 0, %s100
    %s102 = sphi 0, %s100
    %s103 = sphi 0, %s102
    %s117 = sphi 0, %s103
    %s121 = sphi 0, %s121
    %s123 = sphi 0, %s121
    %s124 = sphi 0, %s123
    %s138 = sphi 0, %s124
    %s142 = sphi 0, %s142
    %s144 = sphi 0, %s142
    %s145 = sphi 0, %s144
    %s159 = sphi 0, %s145
    %s163 = sphi 0, %s163
    %s165 = sphi 0, %s163
    %s166 = sphi 0, %s165
    %s180 = sphi 0, %s166
    %s184 = sphi 0, %s184
    %s186 = sphi 0, %s184
    %s187 = sphi 0, %s186
    %s201 = sphi 0, %s187
    %s205 = sphi 0, %s205
    %s207 = sphi 0, %s205
    %s208 = sphi 0, %s207
    %s222 = sphi 0, %s208
    %s226 = sphi 0, %s226
    %s228 = sphi 0, %s226
    %s229 = sphi 0, %s228
    %s243 = sphi 0, %s229
    %s247 = sphi 0, %s247
    %s249 = sphi 0, %s247
    %s250 = sphi 0, %s249
    %s264 = sphi 0, %s250
    %s268 = sphi 0, %s268
    %s270 = sphi 0, %s268
    %s271 = sphi 0, %s270
    %s285 = sphi 0, %s271
    %s289 = sphi 0, %s289
    %s291 = sphi 0, %s289
    %s292 = sphi 0, %s291
    %s306 = sphi 0, %s292
    %s310 = sphi 0, %s310
    %s312 = sphi 0, %s310
    %s313 = sphi 0, %s312
    %s327 = sphi 0, %s313
    %s331 = sphi 0, %s331
    %s333 = sphi 0, %s331
    %s334 = sphi 0, %s333
    %s348 = sphi 0, %s334
    %s352 = sphi 0, %s352
    %s354 = sphi 0, %s352
    %s355 = sphi 0, %s354
    %s369 = sphi 0, %s355
    %s373 = sphi 0, %s373
    %s375 = sphi 0, %s373
    %s376 = sphi 0, %s375
    %s390 = sphi 0, %s376
    %s394 = sphi 0, %s394
    %s396 = sphi 0, %s394
    %s397 = sphi 0, %s396
    %s411 = sphi 0, %s397
    %s417 = sphi 0, %s419
    %s420 = sphi 0, %s417
    %s421 = sphi 0, %s420
    %s437 = sphi 0, %s421
  $region4: #{encoder_forward.1} parent=0 // loop_header_branch
    %27 = sbr.rel (%p25) target = $region8
  $region5: #{encoder_forward.1} parent=0 // loop_body
    %s29 = ssub.s32 %s24, 1
    %s30 = ssub.s32 %s24, 2
    %s31 = sadd.s32 %s24, 1
    %s32 = ssub.s32 %s24, %s31
    %p33 = scmp.eq.s32.totalorder %s32, 0
    %s35 = sadd.s32 %s34, 1
    %s36 = scalar_select %p33, %s34, %s35
    %p39 = pneg %p33
    %p40 = scmp.eq.s32.totalorder %s24, 1
    %p41 = por %p39, %p40
    %p42 = scmp.ne.s32.totalorder %s34, %s37
    %p43 = scmp.eq.s32.totalorder %s24, 0
    %p44 = por %p42, %p43
    %p45 = scmp.ne.s32.totalorder %s34, %s37
    %p46 = scmp.eq.s32.totalorder %s29, 1
    %p47 = por %p45, %p46
    %p48 = scmp.ne.s32.totalorder %s37, %s38
    %p49 = scmp.eq.s32.totalorder %s29, 0
    %p50 = por %p48, %p49
    %p51 = scmp.ne.s32.totalorder %s37, %s38
    %p52 = scmp.eq.s32.totalorder %s30, 1
    %p53 = por %p51, %p52
    %p55 = scmp.ne.s32.totalorder %s38, %s54
    %p56 = scmp.eq.s32.totalorder %s30, 0
    %p57 = por %p55, %p56
    %s59 = sadd.s32 %s58, 1
    %p62 = scmp.eq.s32.totalorder %s24, 1
    %p63 = scmp.ne.s32.totalorder %s58, %s60
    %p64 = scmp.eq.s32.totalorder %s24, 0
    %p65 = por %p63, %p64
    %p66 = scmp.ne.s32.totalorder %s58, %s60
    %p67 = scmp.eq.s32.totalorder %s29, 1
    %p68 = por %p66, %p67
    %p69 = scmp.ne.s32.totalorder %s60, %s61
    %p70 = scmp.eq.s32.totalorder %s29, 0
    %p71 = por %p69, %p70
    %p72 = scmp.ne.s32.totalorder %s60, %s61
    %p73 = scmp.eq.s32.totalorder %s30, 1
    %p74 = por %p72, %p73
    %p76 = scmp.ne.s32.totalorder %s61, %s75
    %p77 = scmp.eq.s32.totalorder %s30, 0
    %p78 = por %p76, %p77
    %s80 = sadd.s32 %s79, 1
    %p83 = scmp.eq.s32.totalorder %s24, 1
    %p84 = scmp.ne.s32.totalorder %s79, %s81
    %p85 = scmp.eq.s32.totalorder %s24, 0
    %p86 = por %p84, %p85
    %p87 = scmp.ne.s32.totalorder %s79, %s81
    %p88 = scmp.eq.s32.totalorder %s29, 1
    %p89 = por %p87, %p88
    %p90 = scmp.ne.s32.totalorder %s81, %s82
    %p91 = scmp.eq.s32.totalorder %s29, 0
    %p92 = por %p90, %p91
    %p93 = scmp.ne.s32.totalorder %s81, %s82
    %p94 = scmp.eq.s32.totalorder %s30, 1
    %p95 = por %p93, %p94
    %p97 = scmp.ne.s32.totalorder %s82, %s96
    %p98 = scmp.eq.s32.totalorder %s30, 0
    %p99 = por %p97, %p98
    %s101 = sadd.s32 %s100, 1
    %p104 = scmp.eq.s32.totalorder %s24, 1
    %p105 = scmp.ne.s32.totalorder %s100, %s102
    %p106 = scmp.eq.s32.totalorder %s24, 0
    %p107 = por %p105, %p106
    %p108 = scmp.ne.s32.totalorder %s100, %s102
    %p109 = scmp.eq.s32.totalorder %s29, 1
    %p110 = por %p108, %p109
    %p111 = scmp.ne.s32.totalorder %s102, %s103
    %p112 = scmp.eq.s32.totalorder %s29, 0
    %p113 = por %p111, %p112
    %p114 = scmp.ne.s32.totalorder %s102, %s103
    %p115 = scmp.eq.s32.totalorder %s30, 1
    %p116 = por %p114, %p115
    %p118 = scmp.ne.s32.totalorder %s103, %s117
    %p119 = scmp.eq.s32.totalorder %s30, 0
    %p120 = por %p118, %p119
    %s122 = sadd.s32 %s121, 1
    %p125 = scmp.eq.s32.totalorder %s24, 1
    %p126 = scmp.ne.s32.totalorder %s121, %s123
    %p127 = scmp.eq.s32.totalorder %s24, 0
    %p128 = por %p126, %p127
    %p129 = scmp.ne.s32.totalorder %s121, %s123
    %p130 = scmp.eq.s32.totalorder %s29, 1
    %p131 = por %p129, %p130
    %p132 = scmp.ne.s32.totalorder %s123, %s124
    %p133 = scmp.eq.s32.totalorder %s29, 0
    %p134 = por %p132, %p133
    %p135 = scmp.ne.s32.totalorder %s123, %s124
    %p136 = scmp.eq.s32.totalorder %s30, 1
    %p137 = por %p135, %p136
    %p139 = scmp.ne.s32.totalorder %s124, %s138
    %p140 = scmp.eq.s32.totalorder %s30, 0
    %p141 = por %p139, %p140
    %s143 = sadd.s32 %s142, 1
    %p146 = scmp.eq.s32.totalorder %s24, 1
    %p147 = scmp.ne.s32.totalorder %s142, %s144
    %p148 = scmp.eq.s32.totalorder %s24, 0
    %p149 = por %p147, %p148
    %p150 = scmp.ne.s32.totalorder %s142, %s144
    %p151 = scmp.eq.s32.totalorder %s29, 1
    %p152 = por %p150, %p151
    %p153 = scmp.ne.s32.totalorder %s144, %s145
    %p154 = scmp.eq.s32.totalorder %s29, 0
    %p155 = por %p153, %p154
    %p156 = scmp.ne.s32.totalorder %s144, %s145
    %p157 = scmp.eq.s32.totalorder %s30, 1
    %p158 = por %p156, %p157
    %p160 = scmp.ne.s32.totalorder %s145, %s159
    %p161 = scmp.eq.s32.totalorder %s30, 0
    %p162 = por %p160, %p161
    %s164 = sadd.s32 %s163, 1
    %p167 = scmp.eq.s32.totalorder %s24, 1
    %p168 = scmp.ne.s32.totalorder %s163, %s165
    %p169 = scmp.eq.s32.totalorder %s24, 0
    %p170 = por %p168, %p169
    %p171 = scmp.ne.s32.totalorder %s163, %s165
    %p172 = scmp.eq.s32.totalorder %s29, 1
    %p173 = por %p171, %p172
    %p174 = scmp.ne.s32.totalorder %s165, %s166
    %p175 = scmp.eq.s32.totalorder %s29, 0
    %p176 = por %p174, %p175
    %p177 = scmp.ne.s32.totalorder %s165, %s166
    %p178 = scmp.eq.s32.totalorder %s30, 1
    %p179 = por %p177, %p178
    %p181 = scmp.ne.s32.totalorder %s166, %s180
    %p182 = scmp.eq.s32.totalorder %s30, 0
    %p183 = por %p181, %p182
    %s185 = sadd.s32 %s184, 1
    %p188 = scmp.eq.s32.totalorder %s24, 1
    %p189 = scmp.ne.s32.totalorder %s184, %s186
    %p190 = scmp.eq.s32.totalorder %s24, 0
    %p191 = por %p189, %p190
    %p192 = scmp.ne.s32.totalorder %s184, %s186
    %p193 = scmp.eq.s32.totalorder %s29, 1
    %p194 = por %p192, %p193
    %p195 = scmp.ne.s32.totalorder %s186, %s187
    %p196 = scmp.eq.s32.totalorder %s29, 0
    %p197 = por %p195, %p196
    %p198 = scmp.ne.s32.totalorder %s186, %s187
    %p199 = scmp.eq.s32.totalorder %s30, 1
    %p200 = por %p198, %p199
    %p202 = scmp.ne.s32.totalorder %s187, %s201
    %p203 = scmp.eq.s32.totalorder %s30, 0
    %p204 = por %p202, %p203
    %s206 = sadd.s32 %s205, 1
    %p209 = scmp.eq.s32.totalorder %s24, 1
    %p210 = scmp.ne.s32.totalorder %s205, %s207
    %p211 = scmp.eq.s32.totalorder %s24, 0
    %p212 = por %p210, %p211
    %p213 = scmp.ne.s32.totalorder %s205, %s207
    %p214 = scmp.eq.s32.totalorder %s29, 1
    %p215 = por %p213, %p214
    %p216 = scmp.ne.s32.totalorder %s207, %s208
    %p217 = scmp.eq.s32.totalorder %s29, 0
    %p218 = por %p216, %p217
    %p219 = scmp.ne.s32.totalorder %s207, %s208
    %p220 = scmp.eq.s32.totalorder %s30, 1
    %p221 = por %p219, %p220
    %p223 = scmp.ne.s32.totalorder %s208, %s222
    %p224 = scmp.eq.s32.totalorder %s30, 0
    %p225 = por %p223, %p224
    %s227 = sadd.s32 %s226, 1
    %p230 = scmp.eq.s32.totalorder %s24, 1
    %p231 = scmp.ne.s32.totalorder %s226, %s228
    %p232 = scmp.eq.s32.totalorder %s24, 0
    %p233 = por %p231, %p232
    %p234 = scmp.ne.s32.totalorder %s226, %s228
    %p235 = scmp.eq.s32.totalorder %s29, 1
    %p236 = por %p234, %p235
    %p237 = scmp.ne.s32.totalorder %s228, %s229
    %p238 = scmp.eq.s32.totalorder %s29, 0
    %p239 = por %p237, %p238
    %p240 = scmp.ne.s32.totalorder %s228, %s229
    %p241 = scmp.eq.s32.totalorder %s30, 1
    %p242 = por %p240, %p241
    %p244 = scmp.ne.s32.totalorder %s229, %s243
    %p245 = scmp.eq.s32.totalorder %s30, 0
    %p246 = por %p244, %p245
    %s248 = sadd.s32 %s247, 1
    %p251 = scmp.eq.s32.totalorder %s24, 1
    %p252 = scmp.ne.s32.totalorder %s247, %s249
    %p253 = scmp.eq.s32.totalorder %s24, 0
    %p254 = por %p252, %p253
    %p255 = scmp.ne.s32.totalorder %s247, %s249
    %p256 = scmp.eq.s32.totalorder %s29, 1
    %p257 = por %p255, %p256
    %p258 = scmp.ne.s32.totalorder %s249, %s250
    %p259 = scmp.eq.s32.totalorder %s29, 0
    %p260 = por %p258, %p259
    %p261 = scmp.ne.s32.totalorder %s249, %s250
    %p262 = scmp.eq.s32.totalorder %s30, 1
    %p263 = por %p261, %p262
    %p265 = scmp.ne.s32.totalorder %s250, %s264
    %p266 = scmp.eq.s32.totalorder %s30, 0
    %p267 = por %p265, %p266
    %s269 = sadd.s32 %s268, 1
    %p272 = scmp.eq.s32.totalorder %s24, 1
    %p273 = scmp.ne.s32.totalorder %s268, %s270
    %p274 = scmp.eq.s32.totalorder %s24, 0
    %p275 = por %p273, %p274
    %p276 = scmp.ne.s32.totalorder %s268, %s270
    %p277 = scmp.eq.s32.totalorder %s29, 1
    %p278 = por %p276, %p277
    %p279 = scmp.ne.s32.totalorder %s270, %s271
    %p280 = scmp.eq.s32.totalorder %s29, 0
    %p281 = por %p279, %p280
    %p282 = scmp.ne.s32.totalorder %s270, %s271
    %p283 = scmp.eq.s32.totalorder %s30, 1
    %p284 = por %p282, %p283
    %p286 = scmp.ne.s32.totalorder %s271, %s285
    %p287 = scmp.eq.s32.totalorder %s30, 0
    %p288 = por %p286, %p287
    %s290 = sadd.s32 %s289, 1
    %p293 = scmp.eq.s32.totalorder %s24, 1
    %p294 = scmp.ne.s32.totalorder %s289, %s291
    %p295 = scmp.eq.s32.totalorder %s24, 0
    %p296 = por %p294, %p295
    %p297 = scmp.ne.s32.totalorder %s289, %s291
    %p298 = scmp.eq.s32.totalorder %s29, 1
    %p299 = por %p297, %p298
    %p300 = scmp.ne.s32.totalorder %s291, %s292
    %p301 = scmp.eq.s32.totalorder %s29, 0
    %p302 = por %p300, %p301
    %p303 = scmp.ne.s32.totalorder %s291, %s292
    %p304 = scmp.eq.s32.totalorder %s30, 1
    %p305 = por %p303, %p304
    %p307 = scmp.ne.s32.totalorder %s292, %s306
    %p308 = scmp.eq.s32.totalorder %s30, 0
    %p309 = por %p307, %p308
    %s311 = sadd.s32 %s310, 1
    %p314 = scmp.eq.s32.totalorder %s24, 1
    %p315 = scmp.ne.s32.totalorder %s310, %s312
    %p316 = scmp.eq.s32.totalorder %s24, 0
    %p317 = por %p315, %p316
    %p318 = scmp.ne.s32.totalorder %s310, %s312
    %p319 = scmp.eq.s32.totalorder %s29, 1
    %p320 = por %p318, %p319
    %p321 = scmp.ne.s32.totalorder %s312, %s313
    %p322 = scmp.eq.s32.totalorder %s29, 0
    %p323 = por %p321, %p322
    %p324 = scmp.ne.s32.totalorder %s312, %s313
    %p325 = scmp.eq.s32.totalorder %s30, 1
    %p326 = por %p324, %p325
    %p328 = scmp.ne.s32.totalorder %s313, %s327
    %p329 = scmp.eq.s32.totalorder %s30, 0
    %p330 = por %p328, %p329
    %s332 = sadd.s32 %s331, 1
    %p335 = scmp.eq.s32.totalorder %s24, 1
    %p336 = scmp.ne.s32.totalorder %s331, %s333
    %p337 = scmp.eq.s32.totalorder %s24, 0
    %p338 = por %p336, %p337
    %p339 = scmp.ne.s32.totalorder %s331, %s333
    %p340 = scmp.eq.s32.totalorder %s29, 1
    %p341 = por %p339, %p340
    %p342 = scmp.ne.s32.totalorder %s333, %s334
    %p343 = scmp.eq.s32.totalorder %s29, 0
    %p344 = por %p342, %p343
    %p345 = scmp.ne.s32.totalorder %s333, %s334
    %p346 = scmp.eq.s32.totalorder %s30, 1
    %p347 = por %p345, %p346
    %p349 = scmp.ne.s32.totalorder %s334, %s348
    %p350 = scmp.eq.s32.totalorder %s30, 0
    %p351 = por %p349, %p350
    %s353 = sadd.s32 %s352, 1
    %p356 = scmp.eq.s32.totalorder %s24, 1
    %p357 = scmp.ne.s32.totalorder %s352, %s354
    %p358 = scmp.eq.s32.totalorder %s24, 0
    %p359 = por %p357, %p358
    %p360 = scmp.ne.s32.totalorder %s352, %s354
    %p361 = scmp.eq.s32.totalorder %s29, 1
    %p362 = por %p360, %p361
    %p363 = scmp.ne.s32.totalorder %s354, %s355
    %p364 = scmp.eq.s32.totalorder %s29, 0
    %p365 = por %p363, %p364
    %p366 = scmp.ne.s32.totalorder %s354, %s355
    %p367 = scmp.eq.s32.totalorder %s30, 1
    %p368 = por %p366, %p367
    %p370 = scmp.ne.s32.totalorder %s355, %s369
    %p371 = scmp.eq.s32.totalorder %s30, 0
    %p372 = por %p370, %p371
    %s374 = sadd.s32 %s373, 1
    %p377 = scmp.eq.s32.totalorder %s24, 1
    %p378 = scmp.ne.s32.totalorder %s373, %s375
    %p379 = scmp.eq.s32.totalorder %s24, 0
    %p380 = por %p378, %p379
    %p381 = scmp.ne.s32.totalorder %s373, %s375
    %p382 = scmp.eq.s32.totalorder %s29, 1
    %p383 = por %p381, %p382
    %p384 = scmp.ne.s32.totalorder %s375, %s376
    %p385 = scmp.eq.s32.totalorder %s29, 0
    %p386 = por %p384, %p385
    %p387 = scmp.ne.s32.totalorder %s375, %s376
    %p388 = scmp.eq.s32.totalorder %s30, 1
    %p389 = por %p387, %p388
    %p391 = scmp.ne.s32.totalorder %s376, %s390
    %p392 = scmp.eq.s32.totalorder %s30, 0
    %p393 = por %p391, %p392
    %s395 = sadd.s32 %s394, 1
    %p398 = scmp.eq.s32.totalorder %s24, 1
    %p399 = scmp.ne.s32.totalorder %s394, %s396
    %p400 = scmp.eq.s32.totalorder %s24, 0
    %p401 = por %p399, %p400
    %p402 = scmp.ne.s32.totalorder %s394, %s396
    %p403 = scmp.eq.s32.totalorder %s29, 1
    %p404 = por %p402, %p403
    %p405 = scmp.ne.s32.totalorder %s396, %s397
    %p406 = scmp.eq.s32.totalorder %s29, 0
    %p407 = por %p405, %p406
    %p408 = scmp.ne.s32.totalorder %s396, %s397
    %p409 = scmp.eq.s32.totalorder %s30, 1
    %p410 = por %p408, %p409
    %p412 = scmp.ne.s32.totalorder %s397, %s411
    %p413 = scmp.eq.s32.totalorder %s30, 0
    %p414 = por %p412, %p413
    %s415 = ssub.s32 %s24, %s31
    %p416 = scmp.eq.s32.totalorder %s415, 0
    %s418 = sadd.s32 %s417, 1
    %s419 = scalar_select %p416, %s417, %s418
    %p422 = pneg %p416
    %p423 = scmp.eq.s32.totalorder %s24, 1
    %p424 = por %p422, %p423
    %p425 = scmp.ne.s32.totalorder %s417, %s420
    %p426 = scmp.eq.s32.totalorder %s24, 0
    %p427 = por %p425, %p426
    %p428 = scmp.ne.s32.totalorder %s417, %s420
    %p429 = scmp.eq.s32.totalorder %s29, 1
    %p430 = por %p428, %p429
    %p431 = scmp.ne.s32.totalorder %s420, %s421
    %p432 = scmp.eq.s32.totalorder %s29, 0
    %p433 = por %p431, %p432
    %p434 = scmp.ne.s32.totalorder %s420, %s421
    %p435 = scmp.eq.s32.totalorder %s30, 1
    %p436 = por %p434, %p435
    %p438 = scmp.ne.s32.totalorder %s421, %s437
    %p439 = scmp.eq.s32.totalorder %s30, 0
    %p440 = por %p438, %p439
    %p441 = scmp.le.s32.totalorder 1, %s24
    %p442 = scmp.lt.s32.totalorder %s24, 3
    %p443 = pnand %p441, %p442
    %p444 = pneg %p443
    // Predicated region
    $region9: #{encoder_forward.1} parent=5 // pred_check
      _
    $region10: #{encoder_forward.1} parent=5 // pred_check_branch
      %446 = sbr.rel (%p443) target = $region12
    $region11: #{encoder_forward.1} parent=5 // pred_region
      %s447 = ssub.s32 %s24, 1
      // Predicated region
      $region13: #{encoder_forward.1} parent=11 // pred_check
        %p448 = pneg %p71
      $region14: #{encoder_forward.1} parent=11 // pred_check_branch
        %450 = sbr.rel (%p448) target = $region16
      $region15: #{encoder_forward.1} parent=11 // pred_region
        _
      $region16: #{encoder_forward.1} parent=11 // pred_fallthru
        _
      // Predicated region
      $region17: #{encoder_forward.1} parent=11 // pred_check
        %p451 = pneg %p92
      $region18: #{encoder_forward.1} parent=11 // pred_check_branch
        %453 = sbr.rel (%p451) target = $region20
      $region19: #{encoder_forward.1} parent=11 // pred_region
        _
      $region20: #{encoder_forward.1} parent=11 // pred_fallthru
        _
      // Predicated region
      $region21: #{encoder_forward.1} parent=11 // pred_check
        %p454 = pneg %p113
      $region22: #{encoder_forward.1} parent=11 // pred_check_branch
        %456 = sbr.rel (%p454) target = $region24
      $region23: #{encoder_forward.1} parent=11 // pred_region
        _
      $region24: #{encoder_forward.1} parent=11 // pred_fallthru
        _
      // Predicated region
      $region25: #{encoder_forward.1} parent=11 // pred_check
        %p457 = pneg %p134
      $region26: #{encoder_forward.1} parent=11 // pred_check_branch
        %459 = sbr.rel (%p457) target = $region28
      $region27: #{encoder_forward.1} parent=11 // pred_region
        _
      $region28: #{encoder_forward.1} parent=11 // pred_fallthru
        _
      // Predicated region
      $region29: #{encoder_forward.1} parent=11 // pred_check
        %p460 = pneg %p155
      $region30: #{encoder_forward.1} parent=11 // pred_check_branch
        %462 = sbr.rel (%p460) target = $region32
      $region31: #{encoder_forward.1} parent=11 // pred_region
        _
      $region32: #{encoder_forward.1} parent=11 // pred_fallthru
        _
      // Predicated region
      $region33: #{encoder_forward.1} parent=11 // pred_check
        %p463 = pneg %p176
      $region34: #{encoder_forward.1} parent=11 // pred_check_branch
        %465 = sbr.rel (%p463) target = $region36
      $region35: #{encoder_forward.1} parent=11 // pred_region
        _
      $region36: #{encoder_forward.1} parent=11 // pred_fallthru
        _
      // Predicated region
      $region37: #{encoder_forward.1} parent=11 // pred_check
        %p466 = pneg %p197
      $region38: #{encoder_forward.1} parent=11 // pred_check_branch
        %468 = sbr.rel (%p466) target = $region40
      $region39: #{encoder_forward.1} parent=11 // pred_region
        _
      $region40: #{encoder_forward.1} parent=11 // pred_fallthru
        _
      // Predicated region
      $region41: #{encoder_forward.1} parent=11 // pred_check
        %p469 = pneg %p218
      $region42: #{encoder_forward.1} parent=11 // pred_check_branch
        %471 = sbr.rel (%p469) target = $region44
      $region43: #{encoder_forward.1} parent=11 // pred_region
        _
      $region44: #{encoder_forward.1} parent=11 // pred_fallthru
        _
      // Predicated region
      $region45: #{encoder_forward.1} parent=11 // pred_check
        %p472 = pneg %p239
      $region46: #{encoder_forward.1} parent=11 // pred_check_branch
        %474 = sbr.rel (%p472) target = $region48
      $region47: #{encoder_forward.1} parent=11 // pred_region
        _
      $region48: #{encoder_forward.1} parent=11 // pred_fallthru
        _
      // Predicated region
      $region49: #{encoder_forward.1} parent=11 // pred_check
        %p475 = pneg %p260
      $region50: #{encoder_forward.1} parent=11 // pred_check_branch
        %477 = sbr.rel (%p475) target = $region52
      $region51: #{encoder_forward.1} parent=11 // pred_region
        _
      $region52: #{encoder_forward.1} parent=11 // pred_fallthru
        _
      // Predicated region
      $region53: #{encoder_forward.1} parent=11 // pred_check
        %p478 = pneg %p281
      $region54: #{encoder_forward.1} parent=11 // pred_check_branch
        %480 = sbr.rel (%p478) target = $region56
      $region55: #{encoder_forward.1} parent=11 // pred_region
        _
      $region56: #{encoder_forward.1} parent=11 // pred_fallthru
        _
      // Predicated region
      $region57: #{encoder_forward.1} parent=11 // pred_check
        %p481 = pneg %p302
      $region58: #{encoder_forward.1} parent=11 // pred_check_branch
        %483 = sbr.rel (%p481) target = $region60
      $region59: #{encoder_forward.1} parent=11 // pred_region
        _
      $region60: #{encoder_forward.1} parent=11 // pred_fallthru
        _
      // Predicated region
      $region61: #{encoder_forward.1} parent=11 // pred_check
        %p484 = pneg %p323
      $region62: #{encoder_forward.1} parent=11 // pred_check_branch
        %486 = sbr.rel (%p484) target = $region64
      $region63: #{encoder_forward.1} parent=11 // pred_region
        _
      $region64: #{encoder_forward.1} parent=11 // pred_fallthru
        _
      // Predicated region
      $region65: #{encoder_forward.1} parent=11 // pred_check
        %p487 = pneg %p344
      $region66: #{encoder_forward.1} parent=11 // pred_check_branch
        %489 = sbr.rel (%p487) target = $region68
      $region67: #{encoder_forward.1} parent=11 // pred_region
        _
      $region68: #{encoder_forward.1} parent=11 // pred_fallthru
        _
      // Predicated region
      $region69: #{encoder_forward.1} parent=11 // pred_check
        %p490 = pneg %p365
      $region70: #{encoder_forward.1} parent=11 // pred_check_branch
        %492 = sbr.rel (%p490) target = $region72
      $region71: #{encoder_forward.1} parent=11 // pred_region
        _
      $region72: #{encoder_forward.1} parent=11 // pred_fallthru
        _
      // Predicated region
      $region73: #{encoder_forward.1} parent=11 // pred_check
        %p493 = pneg %p386
      $region74: #{encoder_forward.1} parent=11 // pred_check_branch
        %495 = sbr.rel (%p493) target = $region76
      $region75: #{encoder_forward.1} parent=11 // pred_region
        _
      $region76: #{encoder_forward.1} parent=11 // pred_fallthru
        _
      // Predicated region
      $region77: #{encoder_forward.1} parent=11 // pred_check
        %p496 = pneg %p407
      $region78: #{encoder_forward.1} parent=11 // pred_check_branch
        %498 = sbr.rel (%p496) target = $region80
      $region79: #{encoder_forward.1} parent=11 // pred_region
        _
      $region80: #{encoder_forward.1} parent=11 // pred_fallthru
        _
    $region12: #{encoder_forward.1} parent=5 // pred_fallthru
      _
    %p499 = scmp.lt.s32.totalorder %s24, 2
    // Predicated region
    $region81: #{encoder_forward.1} parent=5 // pred_check
      %p500 = pneg %p499
    $region82: #{encoder_forward.1} parent=5 // pred_check_branch
      %502 = sbr.rel (%p500) target = $region84
    $region83: #{encoder_forward.1} parent=5 // pred_region
      // Predicated region
      $region85: #{encoder_forward.1} parent=83 // pred_check
        %p503 = pneg %p44
      $region86: #{encoder_forward.1} parent=83 // pred_check_branch
        %505 = sbr.rel (%p503) target = $region88
      $region87: #{encoder_forward.1} parent=83 // pred_region
        %s506 = smul.u32 32, %s24
        %p507 = scmp.lt.s32.totalorder %s506, 63
        %s508 = scalar_select %p507, %s506, 63
        %s509 = smul.addr %s508, 8
        %s510 = scalar_lea.vmem %s0, %s509
        %s511 = smul.u32 32, %s24
      $region88: #{encoder_forward.1} parent=83 // pred_fallthru
        _
    $region84: #{encoder_forward.1} parent=5 // pred_fallthru
      _
    %p512 = scmp.le.s32.totalorder 1, %s24
    %p513 = scmp.lt.s32.totalorder %s24, 3
    %p514 = pnand %p512, %p513
    %p515 = pneg %p514
    // Predicated region
    $region89: #{encoder_forward.1} parent=5 // pred_check
      _
    $region90: #{encoder_forward.1} parent=5 // pred_check_branch
      %517 = sbr.rel (%p514) target = $region92
    $region91: #{encoder_forward.1} parent=5 // pred_region
      %s518 = ssub.s32 %s24, 1
      %s519 = smul.u32 32, %s29
      %p520 = scmp.lt.s32.totalorder %s519, 63
      %s521 = scalar_select %p520, %s519, 63
      %s522 = smul.addr %s521, 8
      %s523 = scalar_lea.vmem %s0, %s522
      %p524 = pneg %p50
      %p525 = pneg %p47
      %p526 = pneg %p71
      %p527 = pneg %p68
      %p528 = pneg %p92
      %p529 = pneg %p89
      %p530 = pneg %p113
      %p531 = pneg %p110
      %p532 = pneg %p134
      %p533 = pneg %p131
      %p534 = pneg %p155
      %p535 = pneg %p152
      %p536 = pneg %p176
      %p537 = pneg %p173
      %p538 = pneg %p197
      %p539 = pneg %p194
      %p540 = pneg %p218
      %p541 = pneg %p215
      %p542 = pneg %p239
      %p543 = pneg %p236
      %p544 = pneg %p260
      %p545 = pneg %p257
      %p546 = pneg %p281
      %p547 = pneg %p278
      %p548 = pneg %p302
      %p549 = pneg %p299
      %p550 = pneg %p323
      %p551 = pneg %p320
      %p552 = pneg %p344
      %p553 = pneg %p341
      %p554 = pneg %p365
      %p555 = pneg %p362
      %p556 = pneg %p386
      %p557 = pneg %p383
      %p558 = pneg %p407
      %p559 = pneg %p404
      %p560 = pneg %p433
      %p561 = pneg %p430
      %s562 = smul.u32 32, %s29
      %p563 = scmp.lt.s32.totalorder %s562, 63
      %s564 = scalar_select %p563, %s562, 63
      %s565 = smul.addr %s564, 8
      %s566 = scalar_lea.vmem %s18, %s565
      %s567 = smul.u32 32, %s29
      %p568 = scmp.lt.s32.totalorder %s567, 63
      %s569 = scalar_select %p568, %s567, 63
      %s570 = smul.addr %s569, 8
      %s571 = scalar_lea.vmem %s0, %s570
      %s572 = smul.u32 32, %s29
      %s573 = smul.u32 32, %s29
      %p574 = scmp.lt.s32.totalorder %s573, 63
      %s575 = scalar_select %p574, %s573, 63
      %s576 = smul.addr %s575, 8
      %s577 = scalar_lea.vmem %s18, %s576
      %s578 = smul.u32 32, %s29
      %v580 = vld [vmem:[%s571] sm:$0xff]
      %v581 = vld [vmem:[%s571 + $0x8] sm:$0xff]
      %v582 = vld [vmem:[%s571 + $0x10] sm:$0xff]
      %v583 = vld [vmem:[%s571 + $0x18] sm:$0xff]
      %v584 = vld [vmem:[%s571 + $0x20] sm:$0xff]
      %v585 = vld [vmem:[%s571 + $0x28] sm:$0xff]
      %v586 = vld [vmem:[%s571 + $0x30] sm:$0xff]
      %v587 = vld [vmem:[%s571 + $0x38] sm:$0xff]
      %v588 = vld [vmem:[%s571 + $0x40] sm:$0xff]
      %v589 = vld [vmem:[%s571 + $0x48] sm:$0xff]
      %v590 = vld [vmem:[%s571 + $0x50] sm:$0xff]
      %v591 = vld [vmem:[%s571 + $0x58] sm:$0xff]
      %v592 = vld [vmem:[%s571 + $0x60] sm:$0xff]
      %v593 = vld [vmem:[%s571 + $0x68] sm:$0xff]
      %v594 = vld [vmem:[%s571 + $0x70] sm:$0xff]
      %v595 = vld [vmem:[%s571 + $0x78] sm:$0xff]
      %v596 = vld [vmem:[%s571 + $0x80] sm:$0xff]
      %v597 = vld [vmem:[%s571 + $0x88] sm:$0xff]
      %v598 = vld [vmem:[%s571 + $0x90] sm:$0xff]
      %v599 = vld [vmem:[%s571 + $0x98] sm:$0xff]
      %v600 = vld [vmem:[%s571 + $0xa0] sm:$0xff]
      %v601 = vld [vmem:[%s571 + $0xa8] sm:$0xff]
      %v602 = vld [vmem:[%s571 + $0xb0] sm:$0xff]
      %v603 = vld [vmem:[%s571 + $0xb8] sm:$0xff]
      %v604 = vld [vmem:[%s571 + $0xc0] sm:$0xff]
      %v605 = vld [vmem:[%s571 + $0xc8] sm:$0xff]
      %v606 = vld [vmem:[%s571 + $0xd0] sm:$0xff]
      %v607 = vld [vmem:[%s571 + $0xd8] sm:$0xff]
      %v608 = vld [vmem:[%s571 + $0xe0] sm:$0xff]
      %v609 = vld [vmem:[%s571 + $0xe8] sm:$0xff]
      %v610 = vld [vmem:[%s571 + $0xf0] sm:$0xff]
      %v611 = vld [vmem:[%s571 + $0xf8] sm:$0xff]
      %v612 = vld [vmem:[%s1] sm:$0xff]
      %v613 = vld [vmem:[%s6] sm:$0x1]
      %v614 = vld [vmem:[%s7] sm:$0x1]
      %vm615 = vcmask 261120
      %v616 = vsel %vm615, %v580, 0.0
      %v617 = vsel %vm615, %v581, 0.0
      %v618 = vadd.f32 %v616, %v617
      %v619 = vsel %vm615, %v582, 0.0
      %v620 = vadd.f32 %v618, %v619
      %v621 = vsel %vm615, %v583, 0.0
      %v622 = vadd.f32 %v620, %v621
      %v623 = vsel %vm615, %v584, 0.0
      %v624 = vadd.f32 %v622, %v623
      %v625 = vsel %vm615, %v585, 0.0
      %v626 = vadd.f32 %v624, %v625
      %v627 = vsel %vm615, %v586, 0.0
      %v628 = vadd.f32 %v626, %v627
      %v629 = vsel %vm615, %v587, 0.0
      %v630 = vadd.f32 %v628, %v629
      %v631 = vrot.slane %v630, 4
      %v632 = vadd.f32 %v630, %v631
      %v633 = vrot.slane %v632, 2
      %v634 = vadd.f32 %v632, %v633
      %v635 = vrot.slane %v634, 1
      %v636 = vadd.f32 %v634, %v635
      %v637 = vsel %vm615, %v588, 0.0
      %v638 = vsel %vm615, %v589, 0.0
      %v639 = vadd.f32 %v637, %v638
      %v640 = vsel %vm615, %v590, 0.0
      %v641 = vadd.f32 %v639, %v640
      %v642 = vsel %vm615, %v591, 0.0
      %v643 = vadd.f32 %v641, %v642
      %v644 = vsel %vm615, %v592, 0.0
      %v645 = vadd.f32 %v643, %v644
      %v646 = vsel %vm615, %v593, 0.0
      %v647 = vadd.f32 %v645, %v646
      %v648 = vsel %vm615, %v594, 0.0
      %v649 = vadd.f32 %v647, %v648
      %v650 = vsel %vm615, %v595, 0.0
      %v651 = vadd.f32 %v649, %v650
      %v652 = vrot.slane %v651, 4
      %v653 = vadd.f32 %v651, %v652
      %v654 = vrot.slane %v653, 2
      %v655 = vadd.f32 %v653, %v654
      %v656 = vrot.slane %v655, 1
      %v657 = vadd.f32 %v655, %v656
      %v658 = vsel %vm615, %v596, 0.0
      %v659 = vsel %vm615, %v597, 0.0
      %v660 = vadd.f32 %v658, %v659
      %v661 = vsel %vm615, %v598, 0.0
      %v662 = vadd.f32 %v660, %v661
      %v663 = vsel %vm615, %v599, 0.0
      %v664 = vadd.f32 %v662, %v663
      %v665 = vsel %vm615, %v600, 0.0
      %v666 = vadd.f32 %v664, %v665
      %v667 = vsel %vm615, %v601, 0.0
      %v668 = vadd.f32 %v666, %v667
      %v669 = vsel %vm615, %v602, 0.0
      %v670 = vadd.f32 %v668, %v669
      %v671 = vsel %vm615, %v603, 0.0
      %v672 = vadd.f32 %v670, %v671
      %v673 = vrot.slane %v672, 4
      %v674 = vadd.f32 %v672, %v673
      %v675 = vrot.slane %v674, 2
      %v676 = vadd.f32 %v674, %v675
      %v677 = vrot.slane %v676, 1
      %v678 = vadd.f32 %v676, %v677
      %v679 = vsel %vm615, %v604, 0.0
      %v680 = vsel %vm615, %v605, 0.0
      %v681 = vadd.f32 %v679, %v680
      %v682 = vsel %vm615, %v606, 0.0
      %v683 = vadd.f32 %v681, %v682
      %v684 = vsel %vm615, %v607, 0.0
      %v685 = vadd.f32 %v683, %v684
      %v686 = vsel %vm615, %v608, 0.0
      %v687 = vadd.f32 %v685, %v686
      %v688 = vsel %vm615, %v609, 0.0
      %v689 = vadd.f32 %v687, %v688
      %v690 = vsel %vm615, %v610, 0.0
      %v691 = vadd.f32 %v689, %v690
      %v692 = vsel %vm615, %v611, 0.0
      %v693 = vadd.f32 %v691, %v692
      %v694 = vrot.slane %v693, 4
      %v695 = vadd.f32 %v693, %v694
      %v696 = vrot.slane %v695, 2
      %v697 = vadd.f32 %v695, %v696
      %v698 = vrot.slane %v697, 1
      %v699 = vadd.f32 %v697, %v698
      %v700 = vmul.f32 %v580, %v580
      %v701 = vmul.f32 %v581, %v581
      %v702 = vmul.f32 %v582, %v582
      %v703 = vmul.f32 %v583, %v583
      %v704 = vmul.f32 %v584, %v584
      %v705 = vmul.f32 %v585, %v585
      %v706 = vmul.f32 %v586, %v586
      %v707 = vmul.f32 %v587, %v587
      %v708 = vmul.f32 %v588, %v588
      %v709 = vmul.f32 %v589, %v589
      %v710 = vmul.f32 %v590, %v590
      %v711 = vmul.f32 %v591, %v591
      %v712 = vmul.f32 %v592, %v592
      %v713 = vmul.f32 %v593, %v593
      %v714 = vmul.f32 %v594, %v594
      %v715 = vmul.f32 %v595, %v595
      %v716 = vmul.f32 %v596, %v596
      %v717 = vmul.f32 %v597, %v597
      %v718 = vmul.f32 %v598, %v598
      %v719 = vmul.f32 %v599, %v599
      %v720 = vmul.f32 %v600, %v600
      %v721 = vmul.f32 %v601, %v601
      %v722 = vmul.f32 %v602, %v602
      %v723 = vmul.f32 %v603, %v603
      %v724 = vmul.f32 %v604, %v604
      %v725 = vmul.f32 %v605, %v605
      %v726 = vmul.f32 %v606, %v606
      %v727 = vmul.f32 %v607, %v607
      %v728 = vmul.f32 %v608, %v608
      %v729 = vmul.f32 %v609, %v609
      %v730 = vmul.f32 %v610, %v610
      %v731 = vmul.f32 %v611, %v611
      %v732 = vsel %vm615, %v700, 0.0
      %v733 = vsel %vm615, %v701, 0.0
      %v734 = vadd.f32 %v732, %v733
      %v735 = vsel %vm615, %v702, 0.0
      %v736 = vadd.f32 %v734, %v735
      %v737 = vsel %vm615, %v703, 0.0
      %v738 = vadd.f32 %v736, %v737
      %v739 = vsel %vm615, %v704, 0.0
      %v740 = vadd.f32 %v738, %v739
      %v741 = vsel %vm615, %v705, 0.0
      %v742 = vadd.f32 %v740, %v741
      %v743 = vsel %vm615, %v706, 0.0
      %v744 = vadd.f32 %v742, %v743
      %v745 = vsel %vm615, %v707, 0.0
      %v746 = vadd.f32 %v744, %v745
      %v747 = vrot.slane %v746, 4
      %v748 = vadd.f32 %v746, %v747
      %v749 = vrot.slane %v748, 2
      %v750 = vadd.f32 %v748, %v749
      %v751 = vrot.slane %v750, 1
      %v752 = vadd.f32 %v750, %v751
      %v753 = vsel %vm615, %v708, 0.0
      %v754 = vsel %vm615, %v709, 0.0
      %v755 = vadd.f32 %v753, %v754
      %v756 = vsel %vm615, %v710, 0.0
      %v757 = vadd.f32 %v755, %v756
      %v758 = vsel %vm615, %v711, 0.0
      %v759 = vadd.f32 %v757, %v758
      %v760 = vsel %vm615, %v712, 0.0
      %v761 = vadd.f32 %v759, %v760
      %v762 = vsel %vm615, %v713, 0.0
      %v763 = vadd.f32 %v761, %v762
      %v764 = vsel %vm615, %v714, 0.0
      %v765 = vadd.f32 %v763, %v764
      %v766 = vsel %vm615, %v715, 0.0
      %v767 = vadd.f32 %v765, %v766
      %v768 = vrot.slane %v767, 4
      %v769 = vadd.f32 %v767, %v768
      %v770 = vrot.slane %v769, 2
      %v771 = vadd.f32 %v769, %v770
      %v772 = vrot.slane %v771, 1
      %v773 = vadd.f32 %v771, %v772
      %v774 = vsel %vm615, %v716, 0.0
      %v775 = vsel %vm615, %v717, 0.0
      %v776 = vadd.f32 %v774, %v775
      %v777 = vsel %vm615, %v718, 0.0
      %v778 = vadd.f32 %v776, %v777
      %v779 = vsel %vm615, %v719, 0.0
      %v780 = vadd.f32 %v778, %v779
      %v781 = vsel %vm615, %v720, 0.0
      %v782 = vadd.f32 %v780, %v781
      %v783 = vsel %vm615, %v721, 0.0
      %v784 = vadd.f32 %v782, %v783
      %v785 = vsel %vm615, %v722, 0.0
      %v786 = vadd.f32 %v784, %v785
      %v787 = vsel %vm615, %v723, 0.0
      %v788 = vadd.f32 %v786, %v787
      %v789 = vrot.slane %v788, 4
      %v790 = vadd.f32 %v788, %v789
      %v791 = vrot.slane %v790, 2
      %v792 = vadd.f32 %v790, %v791
      %v793 = vrot.slane %v792, 1
      %v794 = vadd.f32 %v792, %v793
      %v795 = vsel %vm615, %v724, 0.0
      %v796 = vsel %vm615, %v725, 0.0
      %v797 = vadd.f32 %v795, %v796
      %v798 = vsel %vm615, %v726, 0.0
      %v799 = vadd.f32 %v797, %v798
      %v800 = vsel %vm615, %v727, 0.0
      %v801 = vadd.f32 %v799, %v800
      %v802 = vsel %vm615, %v728, 0.0
      %v803 = vadd.f32 %v801, %v802
      %v804 = vsel %vm615, %v729, 0.0
      %v805 = vadd.f32 %v803, %v804
      %v806 = vsel %vm615, %v730, 0.0
      %v807 = vadd.f32 %v805, %v806
      %v808 = vsel %vm615, %v731, 0.0
      %v809 = vadd.f32 %v807, %v808
      %v810 = vrot.slane %v809, 4
      %v811 = vadd.f32 %v809, %v810
      %v812 = vrot.slane %v811, 2
      %v813 = vadd.f32 %v811, %v812
      %v814 = vrot.slane %v813, 1
      %v815 = vadd.f32 %v813, %v814
      %vm820 = vcmask 1041409
      %v821 = vsel %vm820, %v657, %v636
      %vm822 = vcmask 1042434
      %v823 = vsel %vm822, %v678, %v821
      %vm824 = vcmask 1043459
      %v825 = vsel %vm824, %v699, %v823
      %v826 = vsel %vm615, %v825, 0
      %v829 = vsel %vm615, %v612, 0
      %831 = vmatpush.xpose.msra.mxu0 0.0
      %832 = vmatpush.xpose.msra.mxu0 0.0
      %833 = vmatpush.xpose.msra.mxu0 0.0
      %834 = vmatpush.xpose.msra.mxu0 0.0
      %835 = vmatpush.xpose.msra.mxu0 0.0
      %836 = vmatpush.xpose.msra.mxu0 0.0
      %837 = vmatpush.xpose.msra.mxu0 0.0
      %838 = vmatpush.xpose.msra.mxu0 0.0
      %839 = vmatpush.xpose.msra.mxu0 0.0
      %840 = vmatpush.xpose.msra.mxu0 0.0
      %841 = vmatpush.xpose.msra.mxu0 0.0
      %842 = vmatpush.xpose.msra.mxu0 0.0
      %843 = vmatpush.xpose.msra.mxu0 0.0
      %844 = vmatpush.xpose.msra.mxu0 0.0
      %845 = vmatpush.xpose.msra.mxu0 0.0
      %846 = vmatpush.xpose.msra.mxu0 %v829
      %847 = vmatmul.f32.gmra.mxu0 %v826
      %v848 = vpop.f32.mrf.mxu0
      %v849 = vadd.f32 0.0, %v848
      %850 = vdwg.mxu0
      %v855 = vsel %vm820, %v773, %v752
      %v856 = vsel %vm822, %v794, %v855
      %v857 = vsel %vm824, %v815, %v856
      %v858 = vsel %vm615, %v857, 0
      %860 = vmatpush.xpose.msra.mxu0 0.0
      %861 = vmatpush.xpose.msra.mxu0 0.0
      %862 = vmatpush.xpose.msra.mxu0 0.0
      %863 = vmatpush.xpose.msra.mxu0 0.0
      %864 = vmatpush.xpose.msra.mxu0 0.0
      %865 = vmatpush.xpose.msra.mxu0 0.0
      %866 = vmatpush.xpose.msra.mxu0 0.0
      %867 = vmatpush.xpose.msra.mxu0 0.0
      %868 = vmatpush.xpose.msra.mxu0 0.0
      %869 = vmatpush.xpose.msra.mxu0 0.0
      %870 = vmatpush.xpose.msra.mxu0 0.0
      %871 = vmatpush.xpose.msra.mxu0 0.0
      %872 = vmatpush.xpose.msra.mxu0 0.0
      %873 = vmatpush.xpose.msra.mxu0 0.0
      %874 = vmatpush.xpose.msra.mxu0 0.0
      %875 = vmatpush.xpose.msra.mxu0 %v829
      %876 = vmatmul.f32.gmra.mxu0 %v858
      %v877 = vpop.f32.mrf.mxu0
      %v878 = vadd.f32 0.0, %v877
      %879 = vdwg.mxu0
      %v880 = vrcp.pop 256.0
      %v881 = vmul.f32 256.0, %v880
      %v882 = vsub.f32 1.0, %v881
      %v883 = vmul.f32 %v880, %v882
      %v884 = vadd.f32 %v880, %v883
      %vm885 = vweird.f32 %v880
      %v886 = vsel %vm885, %v880, %v884
      %v887 = vmul.f32 %v849, %v886
      %v888 = vmul.f32 %v878, %v886
      %v889 = vmul.f32 %v887, %v887
      %v890 = vsub.f32 %v888, %v889
      %v891 = vmax.f32 %v890, 0.0
      %v892 = vadd.f32 %v891, 1e-05
      %v893 = vrsqrt.pop %v892
      %v894 = vmul.f32 %v893, %v892
      %v895 = vmul.f32 %v894, %v893
      %v896 = vmul.f32 0.5, %v895
      %v897 = vsub.f32 1.5, %v896
      %v898 = vmul.f32 %v893, %v897
      %vm899 = vweird.f32 %v892
      %vm900 = vweird.f32 %v893
      %vm901 = vmor %vm899, %vm900
      %v902 = vsel %vm901, %v893, %v898
      %vm903 = vcmask 64512
      %v905 = vsel %vm903, %v887, 0
      %907 = vmatpush.msra.mxu0 0.0
      %908 = vmatpush.msra.mxu0 0.0
      %909 = vmatpush.msra.mxu0 0.0
      %910 = vmatpush.msra.mxu0 0.0
      %911 = vmatpush.msra.mxu0 0.0
      %912 = vmatpush.msra.mxu0 0.0
      %913 = vmatpush.msra.mxu0 0.0
      %914 = vmatpush.msra.mxu0 0.0
      %915 = vmatpush.msra.mxu0 0.0
      %916 = vmatpush.msra.mxu0 0.0
      %917 = vmatpush.msra.mxu0 0.0
      %918 = vmatpush.msra.mxu0 0.0
      %919 = vmatpush.msra.mxu0 0.0
      %920 = vmatpush.msra.mxu0 0.0
      %921 = vmatpush.msra.mxu0 0.0
      %922 = vmatpush.msra.mxu0 %v612
      %923 = vmatmul.f32.gmra.mxu0 %v905
      %v924 = vpop.f32.mrf.mxu0
      %v925 = vadd.f32 0.0, %v924
      %926 = vdwg.mxu0
      %v928 = vsel %vm903, %v902, 0
      %930 = vmatpush.msra.mxu0 0.0
      %931 = vmatpush.msra.mxu0 0.0
      %932 = vmatpush.msra.mxu0 0.0
      %933 = vmatpush.msra.mxu0 0.0
      %934 = vmatpush.msra.mxu0 0.0
      %935 = vmatpush.msra.mxu0 0.0
      %936 = vmatpush.msra.mxu0 0.0
      %937 = vmatpush.msra.mxu0 0.0
      %938 = vmatpush.msra.mxu0 0.0
      %939 = vmatpush.msra.mxu0 0.0
      %940 = vmatpush.msra.mxu0 0.0
      %941 = vmatpush.msra.mxu0 0.0
      %942 = vmatpush.msra.mxu0 0.0
      %943 = vmatpush.msra.mxu0 0.0
      %944 = vmatpush.msra.mxu0 0.0
      %945 = vmatpush.msra.mxu0 %v612
      %946 = vmatmul.f32.gmra.mxu0 %v928
      %v947 = vpop.f32.mrf.mxu0
      %v948 = vadd.f32 0.0, %v947
      %949 = vdwg.mxu0
      %v951 = vperm.slane %v613, 0
      %v953 = vmul.f32 %v948, %v951
      %v954 = vmul.f32 %v925, %v953
      %v956 = vperm.slane %v614, 0
      %v958 = vsub.f32 %v956, %v954
      %v960 = vrot.slane %v953, 1
      %v961 = vrot.slane %v953, 2
      %v962 = vrot.slane %v953, 3
      %v963 = vperm.slane %v953, 0
      %v964 = vperm.slane %v960, 0
      %v965 = vperm.slane %v961, 0
      %v966 = vperm.slane %v962, 0
      %v971 = vmul.f32 %v580, %v963
      %v972 = vmul.f32 %v581, %v963
      %v973 = vmul.f32 %v582, %v963
      %v974 = vmul.f32 %v583, %v963
      %v975 = vmul.f32 %v584, %v963
      %v976 = vmul.f32 %v585, %v963
      %v977 = vmul.f32 %v586, %v963
      %v978 = vmul.f32 %v587, %v963
      %v979 = vmul.f32 %v588, %v964
      %v980 = vmul.f32 %v589, %v964
      %v981 = vmul.f32 %v590, %v964
      %v982 = vmul.f32 %v591, %v964
      %v983 = vmul.f32 %v592, %v964
      %v984 = vmul.f32 %v593, %v964
      %v985 = vmul.f32 %v594, %v964
      %v986 = vmul.f32 %v595, %v964
      %v987 = vmul.f32 %v596, %v965
      %v988 = vmul.f32 %v597, %v965
      %v989 = vmul.f32 %v598, %v965
      %v990 = vmul.f32 %v599, %v965
      %v991 = vmul.f32 %v600, %v965
      %v992 = vmul.f32 %v601, %v965
      %v993 = vmul.f32 %v602, %v965
      %v994 = vmul.f32 %v603, %v965
      %v995 = vmul.f32 %v604, %v966
      %v996 = vmul.f32 %v605, %v966
      %v997 = vmul.f32 %v606, %v966
      %v998 = vmul.f32 %v607, %v966
      %v999 = vmul.f32 %v608, %v966
      %v1000 = vmul.f32 %v609, %v966
      %v1001 = vmul.f32 %v610, %v966
      %v1002 = vmul.f32 %v611, %v966
      %v1004 = vrot.slane %v958, 1
      %v1005 = vrot.slane %v958, 2
      %v1006 = vrot.slane %v958, 3
      %v1007 = vperm.slane %v958, 0
      %v1008 = vperm.slane %v1004, 0
      %v1009 = vperm.slane %v1005, 0
      %v1010 = vperm.slane %v1006, 0
      %v1015 = vadd.f32 %v971, %v1007
      %v1016 = vadd.f32 %v972, %v1007
      %v1017 = vadd.f32 %v973, %v1007
      %v1018 = vadd.f32 %v974, %v1007
      %v1019 = vadd.f32 %v975, %v1007
      %v1020 = vadd.f32 %v976, %v1007
      %v1021 = vadd.f32 %v977, %v1007
      %v1022 = vadd.f32 %v978, %v1007
      %v1023 = vadd.f32 %v979, %v1008
      %v1024 = vadd.f32 %v980, %v1008
      %v1025 = vadd.f32 %v981, %v1008
      %v1026 = vadd.f32 %v982, %v1008
      %v1027 = vadd.f32 %v983, %v1008
      %v1028 = vadd.f32 %v984, %v1008
      %v1029 = vadd.f32 %v985, %v1008
      %v1030 = vadd.f32 %v986, %v1008
      %v1031 = vadd.f32 %v987, %v1009
      %v1032 = vadd.f32 %v988, %v1009
      %v1033 = vadd.f32 %v989, %v1009
      %v1034 = vadd.f32 %v990, %v1009
      %v1035 = vadd.f32 %v991, %v1009
      %v1036 = vadd.f32 %v992, %v1009
      %v1037 = vadd.f32 %v993, %v1009
      %v1038 = vadd.f32 %v994, %v1009
      %v1039 = vadd.f32 %v995, %v1010
      %v1040 = vadd.f32 %v996, %v1010
      %v1041 = vadd.f32 %v997, %v1010
      %v1042 = vadd.f32 %v998, %v1010
      %v1043 = vadd.f32 %v999, %v1010
      %v1044 = vadd.f32 %v1000, %v1010
      %v1045 = vadd.f32 %v1001, %v1010
      %v1046 = vadd.f32 %v1002, %v1010
      %v1047 = vpack.c.bf16 %v1016, %v1015
      %v1048 = vpack.c.bf16 %v1018, %v1017
      %v1049 = vpack.c.bf16 %v1020, %v1019
      %v1050 = vpack.c.bf16 %v1022, %v1021
      %v1051 = vpack.c.bf16 %v1024, %v1023
      %v1052 = vpack.c.bf16 %v1026, %v1025
      %v1053 = vpack.c.bf16 %v1028, %v1027
      %v1054 = vpack.c.bf16 %v1030, %v1029
      %v1055 = vpack.c.bf16 %v1032, %v1031
      %v1056 = vpack.c.bf16 %v1034, %v1033
      %v1057 = vpack.c.bf16 %v1036, %v1035
      %v1058 = vpack.c.bf16 %v1038, %v1037
      %v1059 = vpack.c.bf16 %v1040, %v1039
      %v1060 = vpack.c.bf16 %v1042, %v1041
      %v1061 = vpack.c.bf16 %v1044, %v1043
      %v1062 = vpack.c.bf16 %v1046, %v1045
      %v1063 = vld [vmem:[%s8] sm:$0xf]
      %v1064 = vld [vmem:[%s8 + $0x4] sm:$0xf]
      %v1065 = vld [vmem:[%s8 + $0x8] sm:$0xf]
      %v1066 = vld [vmem:[%s8 + $0xc] sm:$0xf]
      %v1071 = vunpack.c.l.b16 %v1063
      %v1072 = vunpack.c.l.b16 %v1064
      %v1073 = vunpack.c.l.b16 %v1065
      %v1074 = vunpack.c.l.b16 %v1066
      %v1075 = vpack.c.b16 %v1072, %v1071
      %v1076 = vpack.c.b16 %v1074, %v1073
      %v1080 = vsel %vm615, %v1047, 0
      %v1083 = vsel %vm615, %v1048, 0
      %v1086 = vsel %vm615, %v1049, 0
      %v1089 = vsel %vm615, %v1050, 0
      %v1092 = vsel %vm615, %v1051, 0
      %v1095 = vsel %vm615, %v1052, 0
      %v1098 = vsel %vm615, %v1053, 0
      %v1101 = vsel %vm615, %v1054, 0
      %v1104 = vsel %vm615, %v1055, 0
      %v1107 = vsel %vm615, %v1056, 0
      %v1110 = vsel %vm615, %v1057, 0
      %v1113 = vsel %vm615, %v1058, 0
      %v1116 = vsel %vm615, %v1059, 0
      %v1119 = vsel %vm615, %v1060, 0
      %v1122 = vsel %vm615, %v1061, 0
      %v1125 = vsel %vm615, %v1062, 0
      %1127 = vmatpush.bf16.msra.mxu0 0
      %1128 = vmatpush.bf16.msra.mxu0 0
      %1129 = vmatpush.bf16.msra.mxu0 0
      %1130 = vmatpush.bf16.msra.mxu0 0
      %1131 = vmatpush.bf16.msra.mxu0 0
      %1132 = vmatpush.bf16.msra.mxu0 0
      %1133 = vmatpush.bf16.msra.mxu0 %v1076
      %1134 = vmatpush.bf16.msra.mxu0 %v1075
      %1135 = vmatmul.bf16.gmra.mxu0 %v1080
      %v1136 = vpop.f32.mrf.mxu0
      %v1137 = vadd.f32 0.0, %v1136
      %v1138 = vpop.f32.mrf.mxu0
      %v1139 = vadd.f32 0.0, %v1138
      %1140 = vmatmul.bf16.gmra.mxu0 %v1083
      %v1141 = vpop.f32.mrf.mxu0
      %v1142 = vadd.f32 0.0, %v1141
      %v1143 = vpop.f32.mrf.mxu0
      %v1144 = vadd.f32 0.0, %v1143
      %1145 = vmatmul.bf16.gmra.mxu0 %v1086
      %v1146 = vpop.f32.mrf.mxu0
      %v1147 = vadd.f32 0.0, %v1146
      %v1148 = vpop.f32.mrf.mxu0
      %v1149 = vadd.f32 0.0, %v1148
      %1150 = vmatmul.bf16.gmra.mxu0 %v1089
      %v1151 = vpop.f32.mrf.mxu0
      %v1152 = vadd.f32 0.0, %v1151
      %v1153 = vpop.f32.mrf.mxu0
      %v1154 = vadd.f32 0.0, %v1153
      %1155 = vmatmul.bf16.gmra.mxu0 %v1092
      %v1156 = vpop.f32.mrf.mxu0
      %v1157 = vadd.f32 0.0, %v1156
      %v1158 = vpop.f32.mrf.mxu0
      %v1159 = vadd.f32 0.0, %v1158
      %1160 = vmatmul.bf16.gmra.mxu0 %v1095
      %v1161 = vpop.f32.mrf.mxu0
      %v1162 = vadd.f32 0.0, %v1161
      %v1163 = vpop.f32.mrf.mxu0
      %v1164 = vadd.f32 0.0, %v1163
      %1165 = vmatmul.bf16.gmra.mxu0 %v1098
      %v1166 = vpop.f32.mrf.mxu0
      %v1167 = vadd.f32 0.0, %v1166
      %v1168 = vpop.f32.mrf.mxu0
      %v1169 = vadd.f32 0.0, %v1168
      %1170 = vmatmul.bf16.gmra.mxu0 %v1101
      %v1171 = vpop.f32.mrf.mxu0
      %v1172 = vadd.f32 0.0, %v1171
      %v1173 = vpop.f32.mrf.mxu0
      %v1174 = vadd.f32 0.0, %v1173
      %1175 = vmatmul.bf16.gmra.mxu0 %v1104
      %v1176 = vpop.f32.mrf.mxu0
      %v1177 = vadd.f32 0.0, %v1176
      %v1178 = vpop.f32.mrf.mxu0
      %v1179 = vadd.f32 0.0, %v1178
      %1180 = vmatmul.bf16.gmra.mxu0 %v1107
      %v1181 = vpop.f32.mrf.mxu0
      %v1182 = vadd.f32 0.0, %v1181
      %v1183 = vpop.f32.mrf.mxu0
      %v1184 = vadd.f32 0.0, %v1183
      %1185 = vmatmul.bf16.gmra.mxu0 %v1110
      %v1186 = vpop.f32.mrf.mxu0
      %v1187 = vadd.f32 0.0, %v1186
      %v1188 = vpop.f32.mrf.mxu0
      %v1189 = vadd.f32 0.0, %v1188
      %1190 = vmatmul.bf16.gmra.mxu0 %v1113
      %v1191 = vpop.f32.mrf.mxu0
      %v1192 = vadd.f32 0.0, %v1191
      %v1193 = vpop.f32.mrf.mxu0
      %v1194 = vadd.f32 0.0, %v1193
      %1195 = vmatmul.bf16.gmra.mxu0 %v1116
      %v1196 = vpop.f32.mrf.mxu0
      %v1197 = vadd.f32 0.0, %v1196
      %v1198 = vpop.f32.mrf.mxu0
      %v1199 = vadd.f32 0.0, %v1198
      %1200 = vmatmul.bf16.gmra.mxu0 %v1119
      %v1201 = vpop.f32.mrf.mxu0
      %v1202 = vadd.f32 0.0, %v1201
      %v1203 = vpop.f32.mrf.mxu0
      %v1204 = vadd.f32 0.0, %v1203
      %1205 = vmatmul.bf16.gmra.mxu0 %v1122
      %v1206 = vpop.f32.mrf.mxu0
      %v1207 = vadd.f32 0.0, %v1206
      %v1208 = vpop.f32.mrf.mxu0
      %v1209 = vadd.f32 0.0, %v1208
      %1210 = vmatmul.bf16.gmra.mxu0 %v1125
      %v1211 = vpop.f32.mrf.mxu0
      %v1212 = vadd.f32 0.0, %v1211
      %v1213 = vpop.f32.mrf.mxu0
      %v1214 = vadd.f32 0.0, %v1213
      %1215 = vdwg.mxu0
      %v1216 = vld [vmem:[%s9] sm:$0xf]
      %v1217 = vld [vmem:[%s9 + $0x4] sm:$0xf]
      %v1218 = vld [vmem:[%s9 + $0x8] sm:$0xf]
      %v1219 = vld [vmem:[%s9 + $0xc] sm:$0xf]
      %v1224 = vunpack.c.l.b16 %v1216
      %v1225 = vunpack.c.l.b16 %v1217
      %v1226 = vunpack.c.l.b16 %v1218
      %v1227 = vunpack.c.l.b16 %v1219
      %v1228 = vpack.c.b16 %v1225, %v1224
      %v1229 = vpack.c.b16 %v1227, %v1226
      %1232 = vmatpush.bf16.msra.mxu0 0
      %1233 = vmatpush.bf16.msra.mxu0 0
      %1234 = vmatpush.bf16.msra.mxu0 0
      %1235 = vmatpush.bf16.msra.mxu0 0
      %1236 = vmatpush.bf16.msra.mxu0 0
      %1237 = vmatpush.bf16.msra.mxu0 0
      %1238 = vmatpush.bf16.msra.mxu0 %v1229
      %1239 = vmatpush.bf16.msra.mxu0 %v1228
      %1240 = vmatmul.bf16.gmra.mxu0 %v1080
      %v1241 = vpop.f32.mrf.mxu0
      %v1242 = vadd.f32 0.0, %v1241
      %v1243 = vpop.f32.mrf.mxu0
      %v1244 = vadd.f32 0.0, %v1243
      %1245 = vmatmul.bf16.gmra.mxu0 %v1083
      %v1246 = vpop.f32.mrf.mxu0
      %v1247 = vadd.f32 0.0, %v1246
      %v1248 = vpop.f32.mrf.mxu0
      %v1249 = vadd.f32 0.0, %v1248
      %1250 = vmatmul.bf16.gmra.mxu0 %v1086
      %v1251 = vpop.f32.mrf.mxu0
      %v1252 = vadd.f32 0.0, %v1251
      %v1253 = vpop.f32.mrf.mxu0
      %v1254 = vadd.f32 0.0, %v1253
      %1255 = vmatmul.bf16.gmra.mxu0 %v1089
      %v1256 = vpop.f32.mrf.mxu0
      %v1257 = vadd.f32 0.0, %v1256
      %v1258 = vpop.f32.mrf.mxu0
      %v1259 = vadd.f32 0.0, %v1258
      %1260 = vmatmul.bf16.gmra.mxu0 %v1092
      %v1261 = vpop.f32.mrf.mxu0
      %v1262 = vadd.f32 0.0, %v1261
      %v1263 = vpop.f32.mrf.mxu0
      %v1264 = vadd.f32 0.0, %v1263
      %1265 = vmatmul.bf16.gmra.mxu0 %v1095
      %v1266 = vpop.f32.mrf.mxu0
      %v1267 = vadd.f32 0.0, %v1266
      %v1268 = vpop.f32.mrf.mxu0
      %v1269 = vadd.f32 0.0, %v1268
      %1270 = vmatmul.bf16.gmra.mxu0 %v1098
      %v1271 = vpop.f32.mrf.mxu0
      %v1272 = vadd.f32 0.0, %v1271
      %v1273 = vpop.f32.mrf.mxu0
      %v1274 = vadd.f32 0.0, %v1273
      %1275 = vmatmul.bf16.gmra.mxu0 %v1101
      %v1276 = vpop.f32.mrf.mxu0
      %v1277 = vadd.f32 0.0, %v1276
      %v1278 = vpop.f32.mrf.mxu0
      %v1279 = vadd.f32 0.0, %v1278
      %1280 = vmatmul.bf16.gmra.mxu0 %v1104
      %v1281 = vpop.f32.mrf.mxu0
      %v1282 = vadd.f32 0.0, %v1281
      %v1283 = vpop.f32.mrf.mxu0
      %v1284 = vadd.f32 0.0, %v1283
      %1285 = vmatmul.bf16.gmra.mxu0 %v1107
      %v1286 = vpop.f32.mrf.mxu0
      %v1287 = vadd.f32 0.0, %v1286
      %v1288 = vpop.f32.mrf.mxu0
      %v1289 = vadd.f32 0.0, %v1288
      %1290 = vmatmul.bf16.gmra.mxu0 %v1110
      %v1291 = vpop.f32.mrf.mxu0
      %v1292 = vadd.f32 0.0, %v1291
      %v1293 = vpop.f32.mrf.mxu0
      %v1294 = vadd.f32 0.0, %v1293
      %1295 = vmatmul.bf16.gmra.mxu0 %v1113
      %v1296 = vpop.f32.mrf.mxu0
      %v1297 = vadd.f32 0.0, %v1296
      %v1298 = vpop.f32.mrf.mxu0
      %v1299 = vadd.f32 0.0, %v1298
      %1300 = vmatmul.bf16.gmra.mxu0 %v1116
      %v1301 = vpop.f32.mrf.mxu0
      %v1302 = vadd.f32 0.0, %v1301
      %v1303 = vpop.f32.mrf.mxu0
      %v1304 = vadd.f32 0.0, %v1303
      %1305 = vmatmul.bf16.gmra.mxu0 %v1119
      %v1306 = vpop.f32.mrf.mxu0
      %v1307 = vadd.f32 0.0, %v1306
      %v1308 = vpop.f32.mrf.mxu0
      %v1309 = vadd.f32 0.0, %v1308
      %1310 = vmatmul.bf16.gmra.mxu0 %v1122
      %v1311 = vpop.f32.mrf.mxu0
      %v1312 = vadd.f32 0.0, %v1311
      %v1313 = vpop.f32.mrf.mxu0
      %v1314 = vadd.f32 0.0, %v1313
      %1315 = vmatmul.bf16.gmra.mxu0 %v1125
      %v1316 = vpop.f32.mrf.mxu0
      %v1317 = vadd.f32 0.0, %v1316
      %v1318 = vpop.f32.mrf.mxu0
      %v1319 = vadd.f32 0.0, %v1318
      %1320 = vdwg.mxu0
      %v1321 = vld [vmem:[%s10] sm:$0xf]
      %v1322 = vld [vmem:[%s10 + $0x4] sm:$0xf]
      %v1323 = vld [vmem:[%s10 + $0x8] sm:$0xf]
      %v1324 = vld [vmem:[%s10 + $0xc] sm:$0xf]
      %v1329 = vunpack.c.l.b16 %v1321
      %v1330 = vunpack.c.l.b16 %v1322
      %v1331 = vunpack.c.l.b16 %v1323
      %v1332 = vunpack.c.l.b16 %v1324
      %v1333 = vpack.c.b16 %v1330, %v1329
      %v1334 = vpack.c.b16 %v1332, %v1331
      %1337 = vmatpush.bf16.msra.mxu0 0
      %1338 = vmatpush.bf16.msra.mxu0 0
      %1339 = vmatpush.bf16.msra.mxu0 0
      %1340 = vmatpush.bf16.msra.mxu0 0
      %1341 = vmatpush.bf16.msra.mxu0 0
      %1342 = vmatpush.bf16.msra.mxu0 0
      %1343 = vmatpush.bf16.msra.mxu0 %v1334
      %1344 = vmatpush.bf16.msra.mxu0 %v1333
      %1345 = vmatmul.bf16.gmra.mxu0 %v1080
      %v1346 = vpop.f32.mrf.mxu0
      %v1347 = vadd.f32 0.0, %v1346
      %v1348 = vpop.f32.mrf.mxu0
      %v1349 = vadd.f32 0.0, %v1348
      %1350 = vmatmul.bf16.gmra.mxu0 %v1083
      %v1351 = vpop.f32.mrf.mxu0
      %v1352 = vadd.f32 0.0, %v1351
      %v1353 = vpop.f32.mrf.mxu0
      %v1354 = vadd.f32 0.0, %v1353
      %1355 = vmatmul.bf16.gmra.mxu0 %v1086
      %v1356 = vpop.f32.mrf.mxu0
      %v1357 = vadd.f32 0.0, %v1356
      %v1358 = vpop.f32.mrf.mxu0
      %v1359 = vadd.f32 0.0, %v1358
      %1360 = vmatmul.bf16.gmra.mxu0 %v1089
      %v1361 = vpop.f32.mrf.mxu0
      %v1362 = vadd.f32 0.0, %v1361
      %v1363 = vpop.f32.mrf.mxu0
      %v1364 = vadd.f32 0.0, %v1363
      %1365 = vmatmul.bf16.gmra.mxu0 %v1092
      %v1366 = vpop.f32.mrf.mxu0
      %v1367 = vadd.f32 0.0, %v1366
      %v1368 = vpop.f32.mrf.mxu0
      %v1369 = vadd.f32 0.0, %v1368
      %1370 = vmatmul.bf16.gmra.mxu0 %v1095
      %v1371 = vpop.f32.mrf.mxu0
      %v1372 = vadd.f32 0.0, %v1371
      %v1373 = vpop.f32.mrf.mxu0
      %v1374 = vadd.f32 0.0, %v1373
      %1375 = vmatmul.bf16.gmra.mxu0 %v1098
      %v1376 = vpop.f32.mrf.mxu0
      %v1377 = vadd.f32 0.0, %v1376
      %v1378 = vpop.f32.mrf.mxu0
      %v1379 = vadd.f32 0.0, %v1378
      %1380 = vmatmul.bf16.gmra.mxu0 %v1101
      %v1381 = vpop.f32.mrf.mxu0
      %v1382 = vadd.f32 0.0, %v1381
      %v1383 = vpop.f32.mrf.mxu0
      %v1384 = vadd.f32 0.0, %v1383
      %1385 = vmatmul.bf16.gmra.mxu0 %v1104
      %v1386 = vpop.f32.mrf.mxu0
      %v1387 = vadd.f32 0.0, %v1386
      %v1388 = vpop.f32.mrf.mxu0
      %v1389 = vadd.f32 0.0, %v1388
      %1390 = vmatmul.bf16.gmra.mxu0 %v1107
      %v1391 = vpop.f32.mrf.mxu0
      %v1392 = vadd.f32 0.0, %v1391
      %v1393 = vpop.f32.mrf.mxu0
      %v1394 = vadd.f32 0.0, %v1393
      %1395 = vmatmul.bf16.gmra.mxu0 %v1110
      %v1396 = vpop.f32.mrf.mxu0
      %v1397 = vadd.f32 0.0, %v1396
      %v1398 = vpop.f32.mrf.mxu0
      %v1399 = vadd.f32 0.0, %v1398
      %1400 = vmatmul.bf16.gmra.mxu0 %v1113
      %v1401 = vpop.f32.mrf.mxu0
      %v1402 = vadd.f32 0.0, %v1401
      %v1403 = vpop.f32.mrf.mxu0
      %v1404 = vadd.f32 0.0, %v1403
      %1405 = vmatmul.bf16.gmra.mxu0 %v1116
      %v1406 = vpop.f32.mrf.mxu0
      %v1407 = vadd.f32 0.0, %v1406
      %v1408 = vpop.f32.mrf.mxu0
      %v1409 = vadd.f32 0.0, %v1408
      %1410 = vmatmul.bf16.gmra.mxu0 %v1119
      %v1411 = vpop.f32.mrf.mxu0
      %v1412 = vadd.f32 0.0, %v1411
      %v1413 = vpop.f32.mrf.mxu0
      %v1414 = vadd.f32 0.0, %v1413
      %1415 = vmatmul.bf16.gmra.mxu0 %v1122
      %v1416 = vpop.f32.mrf.mxu0
      %v1417 = vadd.f32 0.0, %v1416
      %v1418 = vpop.f32.mrf.mxu0
      %v1419 = vadd.f32 0.0, %v1418
      %1420 = vmatmul.bf16.gmra.mxu0 %v1125
      %v1421 = vpop.f32.mrf.mxu0
      %v1422 = vadd.f32 0.0, %v1421
      %v1423 = vpop.f32.mrf.mxu0
      %v1424 = vadd.f32 0.0, %v1423
      %1425 = vdwg.mxu0
      %v1426 = vld [vmem:[%s2] sm:$0xff]
      %v1427 = vld [vmem:[%s2 + $0x8] sm:$0xff]
      %v1428 = vld [vmem:[%s2 + $0x10] sm:$0xff]
      %v1429 = vld [vmem:[%s2 + $0x18] sm:$0xff]
      %v1430 = vld [vmem:[%s3] sm:$0x3]
      %v1431 = vld [vmem:[%s4] sm:$0xff]
      %v1432 = vld [vmem:[%s4 + $0x8] sm:$0xff]
      %v1433 = vld [vmem:[%s4 + $0x10] sm:$0xff]
      %v1434 = vld [vmem:[%s4 + $0x18] sm:$0xff]
      %v1435 = vld [vmem:[%s4 + $0x20] sm:$0xff]
      %v1436 = vld [vmem:[%s4 + $0x28] sm:$0xff]
      %v1437 = vld [vmem:[%s4 + $0x30] sm:$0xff]
      %v1438 = vld [vmem:[%s4 + $0x38] sm:$0xff]
      %v1439 = vld [vmem:[%s4 + $0x40] sm:$0xff]
      %v1440 = vld [vmem:[%s4 + $0x48] sm:$0xff]
      %v1441 = vld [vmem:[%s4 + $0x50] sm:$0xff]
      %v1442 = vld [vmem:[%s4 + $0x58] sm:$0xff]
      %v1443 = vld [vmem:[%s4 + $0x60] sm:$0xff]
      %v1444 = vld [vmem:[%s4 + $0x68] sm:$0xff]
      %v1445 = vld [vmem:[%s4 + $0x70] sm:$0xff]
      %v1446 = vld [vmem:[%s4 + $0x78] sm:$0xff]
      %v1447 = vld [vmem:[%s4 + $0x80] sm:$0xff]
      %v1448 = vld [vmem:[%s4 + $0x88] sm:$0xff]
      %v1449 = vld [vmem:[%s4 + $0x90] sm:$0xff]
      %v1450 = vld [vmem:[%s4 + $0x98] sm:$0xff]
      %v1451 = vld [vmem:[%s4 + $0xa0] sm:$0xff]
      %v1452 = vld [vmem:[%s4 + $0xa8] sm:$0xff]
      %v1453 = vld [vmem:[%s4 + $0xb0] sm:$0xff]
      %v1454 = vld [vmem:[%s4 + $0xb8] sm:$0xff]
      %v1455 = vld [vmem:[%s4 + $0xc0] sm:$0xff]
      %v1456 = vld [vmem:[%s4 + $0xc8] sm:$0xff]
      %v1457 = vld [vmem:[%s4 + $0xd0] sm:$0xff]
      %v1458 = vld [vmem:[%s4 + $0xd8] sm:$0xff]
      %v1459 = vld [vmem:[%s4 + $0xe0] sm:$0xff]
      %v1460 = vld [vmem:[%s4 + $0xe8] sm:$0xff]
      %v1461 = vld [vmem:[%s4 + $0xf0] sm:$0xff]
      %v1462 = vld [vmem:[%s4 + $0xf8] sm:$0xff]
      %v1463 = vld [vmem:[%s5] sm:$0xff]
      %v1464 = vld [vmem:[%s5 + $0x8] sm:$0xff]
      %v1465 = vld [vmem:[%s5 + $0x10] sm:$0xff]
      %v1466 = vld [vmem:[%s5 + $0x18] sm:$0xff]
      %v1467 = vmul.f32 %v1137, %v1242
      %v1468 = vmul.f32 %v1139, %v1244
      %v1469 = vmul.f32 %v1142, %v1247
      %v1470 = vmul.f32 %v1144, %v1249
      %v1471 = vmul.f32 %v1147, %v1252
      %v1472 = vmul.f32 %v1149, %v1254
      %v1473 = vmul.f32 %v1152, %v1257
      %v1474 = vmul.f32 %v1154, %v1259
      %v1475 = vmul.f32 %v1157, %v1242
      %v1476 = vmul.f32 %v1159, %v1244
      %v1477 = vmul.f32 %v1162, %v1247
      %v1478 = vmul.f32 %v1164, %v1249
      %v1479 = vmul.f32 %v1167, %v1252
      %v1480 = vmul.f32 %v1169, %v1254
      %v1481 = vmul.f32 %v1172, %v1257
      %v1482 = vmul.f32 %v1174, %v1259
      %v1483 = vmul.f32 %v1177, %v1242
      %v1484 = vmul.f32 %v1179, %v1244
      %v1485 = vmul.f32 %v1182, %v1247
      %v1486 = vmul.f32 %v1184, %v1249
      %v1487 = vmul.f32 %v1187, %v1252
      %v1488 = vmul.f32 %v1189, %v1254
      %v1489 = vmul.f32 %v1192, %v1257
      %v1490 = vmul.f32 %v1194, %v1259
      %v1491 = vmul.f32 %v1197, %v1242
      %v1492 = vmul.f32 %v1199, %v1244
      %v1493 = vmul.f32 %v1202, %v1247
      %v1494 = vmul.f32 %v1204, %v1249
      %v1495 = vmul.f32 %v1207, %v1252
      %v1496 = vmul.f32 %v1209, %v1254
      %v1497 = vmul.f32 %v1212, %v1257
      %v1498 = vmul.f32 %v1214, %v1259
      %v1500 = vsel %vm615, %v1467, 0
      %v1503 = vsel %vm615, %v1468, 0
      %v1506 = vsel %vm615, %v1469, 0
      %v1509 = vsel %vm615, %v1470, 0
      %v1512 = vsel %vm615, %v1471, 0
      %v1515 = vsel %vm615, %v1472, 0
      %v1518 = vsel %vm615, %v1473, 0
      %v1521 = vsel %vm615, %v1474, 0
      %v1524 = vsel %vm615, %v1475, 0
      %v1527 = vsel %vm615, %v1476, 0
      %v1530 = vsel %vm615, %v1477, 0
      %v1533 = vsel %vm615, %v1478, 0
      %v1536 = vsel %vm615, %v1479, 0
      %v1539 = vsel %vm615, %v1480, 0
      %v1542 = vsel %vm615, %v1481, 0
      %v1545 = vsel %vm615, %v1482, 0
      %v1548 = vsel %vm615, %v1483, 0
      %v1551 = vsel %vm615, %v1484, 0
      %v1554 = vsel %vm615, %v1485, 0
      %v1557 = vsel %vm615, %v1486, 0
      %v1560 = vsel %vm615, %v1487, 0
      %v1563 = vsel %vm615, %v1488, 0
      %v1566 = vsel %vm615, %v1489, 0
      %v1569 = vsel %vm615, %v1490, 0
      %v1572 = vsel %vm615, %v1491, 0
      %v1575 = vsel %vm615, %v1492, 0
      %v1578 = vsel %vm615, %v1493, 0
      %v1581 = vsel %vm615, %v1494, 0
      %v1584 = vsel %vm615, %v1495, 0
      %v1587 = vsel %vm615, %v1496, 0
      %v1590 = vsel %vm615, %v1497, 0
      %v1593 = vsel %vm615, %v1498, 0
      %1595 = vmatpush.msra.mxu0 0.0
      %1596 = vmatpush.msra.mxu0 0.0
      %1597 = vmatpush.msra.mxu0 0.0
      %1598 = vmatpush.msra.mxu0 0.0
      %1599 = vmatpush.msra.mxu0 0.0
      %1600 = vmatpush.msra.mxu0 0.0
      %1601 = vmatpush.msra.mxu0 0.0
      %1602 = vmatpush.msra.mxu0 0.0
      %1603 = vmatpush.msra.mxu0 0.0
      %1604 = vmatpush.msra.mxu0 0.0
      %1605 = vmatpush.msra.mxu0 0.0
      %1606 = vmatpush.msra.mxu0 0.0
      %1607 = vmatpush.msra.mxu0 %v1429
      %1608 = vmatpush.msra.mxu0 %v1428
      %1609 = vmatpush.msra.mxu0 %v1427
      %1610 = vmatpush.msra.mxu0 %v1426
      %1611 = vmatmul.f32.gmra.mxu0 %v1500
      %v1612 = vpop.f32.mrf.mxu0
      %v1613 = vadd.f32 0.0, %v1612
      %1614 = vmatmul.f32.gmra.mxu0 %v1503
      %v1615 = vpop.f32.mrf.mxu0
      %v1616 = vadd.f32 0.0, %v1615
      %1617 = vmatmul.f32.gmra.mxu0 %v1506
      %v1618 = vpop.f32.mrf.mxu0
      %v1619 = vadd.f32 0.0, %v1618
      %1620 = vmatmul.f32.gmra.mxu0 %v1509
      %v1621 = vpop.f32.mrf.mxu0
      %v1622 = vadd.f32 0.0, %v1621
      %1623 = vmatmul.f32.gmra.mxu0 %v1512
      %v1624 = vpop.f32.mrf.mxu0
      %v1625 = vadd.f32 0.0, %v1624
      %1626 = vmatmul.f32.gmra.mxu0 %v1515
      %v1627 = vpop.f32.mrf.mxu0
      %v1628 = vadd.f32 0.0, %v1627
      %1629 = vmatmul.f32.gmra.mxu0 %v1518
      %v1630 = vpop.f32.mrf.mxu0
      %v1631 = vadd.f32 0.0, %v1630
      %1632 = vmatmul.f32.gmra.mxu0 %v1521
      %v1633 = vpop.f32.mrf.mxu0
      %v1634 = vadd.f32 0.0, %v1633
      %1635 = vmatmul.f32.gmra.mxu0 %v1524
      %v1636 = vpop.f32.mrf.mxu0
      %v1637 = vadd.f32 0.0, %v1636
      %1638 = vmatmul.f32.gmra.mxu0 %v1527
      %v1639 = vpop.f32.mrf.mxu0
      %v1640 = vadd.f32 0.0, %v1639
      %1641 = vmatmul.f32.gmra.mxu0 %v1530
      %v1642 = vpop.f32.mrf.mxu0
      %v1643 = vadd.f32 0.0, %v1642
      %1644 = vmatmul.f32.gmra.mxu0 %v1533
      %v1645 = vpop.f32.mrf.mxu0
      %v1646 = vadd.f32 0.0, %v1645
      %1647 = vmatmul.f32.gmra.mxu0 %v1536
      %v1648 = vpop.f32.mrf.mxu0
      %v1649 = vadd.f32 0.0, %v1648
      %1650 = vmatmul.f32.gmra.mxu0 %v1539
      %v1651 = vpop.f32.mrf.mxu0
      %v1652 = vadd.f32 0.0, %v1651
      %1653 = vmatmul.f32.gmra.mxu0 %v1542
      %v1654 = vpop.f32.mrf.mxu0
      %v1655 = vadd.f32 0.0, %v1654
      %1656 = vmatmul.f32.gmra.mxu0 %v1545
      %v1657 = vpop.f32.mrf.mxu0
      %v1658 = vadd.f32 0.0, %v1657
      %1659 = vmatmul.f32.gmra.mxu0 %v1548
      %v1660 = vpop.f32.mrf.mxu0
      %v1661 = vadd.f32 0.0, %v1660
      %1662 = vmatmul.f32.gmra.mxu0 %v1551
      %v1663 = vpop.f32.mrf.mxu0
      %v1664 = vadd.f32 0.0, %v1663
      %1665 = vmatmul.f32.gmra.mxu0 %v1554
      %v1666 = vpop.f32.mrf.mxu0
      %v1667 = vadd.f32 0.0, %v1666
      %1668 = vmatmul.f32.gmra.mxu0 %v1557
      %v1669 = vpop.f32.mrf.mxu0
      %v1670 = vadd.f32 0.0, %v1669
      %1671 = vmatmul.f32.gmra.mxu0 %v1560
      %v1672 = vpop.f32.mrf.mxu0
      %v1673 = vadd.f32 0.0, %v1672
      %1674 = vmatmul.f32.gmra.mxu0 %v1563
      %v1675 = vpop.f32.mrf.mxu0
      %v1676 = vadd.f32 0.0, %v1675
      %1677 = vmatmul.f32.gmra.mxu0 %v1566
      %v1678 = vpop.f32.mrf.mxu0
      %v1679 = vadd.f32 0.0, %v1678
      %1680 = vmatmul.f32.gmra.mxu0 %v1569
      %v1681 = vpop.f32.mrf.mxu0
      %v1682 = vadd.f32 0.0, %v1681
      %1683 = vmatmul.f32.gmra.mxu0 %v1572
      %v1684 = vpop.f32.mrf.mxu0
      %v1685 = vadd.f32 0.0, %v1684
      %1686 = vmatmul.f32.gmra.mxu0 %v1575
      %v1687 = vpop.f32.mrf.mxu0
      %v1688 = vadd.f32 0.0, %v1687
      %1689 = vmatmul.f32.gmra.mxu0 %v1578
      %v1690 = vpop.f32.mrf.mxu0
      %v1691 = vadd.f32 0.0, %v1690
      %1692 = vmatmul.f32.gmra.mxu0 %v1581
      %v1693 = vpop.f32.mrf.mxu0
      %v1694 = vadd.f32 0.0, %v1693
      %1695 = vmatmul.f32.gmra.mxu0 %v1584
      %v1696 = vpop.f32.mrf.mxu0
      %v1697 = vadd.f32 0.0, %v1696
      %1698 = vmatmul.f32.gmra.mxu0 %v1587
      %v1699 = vpop.f32.mrf.mxu0
      %v1700 = vadd.f32 0.0, %v1699
      %1701 = vmatmul.f32.gmra.mxu0 %v1590
      %v1702 = vpop.f32.mrf.mxu0
      %v1703 = vadd.f32 0.0, %v1702
      %1704 = vmatmul.f32.gmra.mxu0 %v1593
      %v1705 = vpop.f32.mrf.mxu0
      %v1706 = vadd.f32 0.0, %v1705
      %1707 = vdwg.mxu0
      %1708 = vmatpush.msra.mxu0 %v1658
      %1709 = vmatpush.msra.mxu0 %v1655
      %1710 = vmatpush.msra.mxu0 %v1652
      %1711 = vmatpush.msra.mxu0 %v1649
      %1712 = vmatpush.msra.mxu0 %v1646
      %1713 = vmatpush.msra.mxu0 %v1643
      %1714 = vmatpush.msra.mxu0 %v1640
      %1715 = vmatpush.msra.mxu0 %v1637
      %1716 = vmatpush.msra.mxu0 %v1634
      %1717 = vmatpush.msra.mxu0 %v1631
      %1718 = vmatpush.msra.mxu0 %v1628
      %1719 = vmatpush.msra.mxu0 %v1625
      %1720 = vmatpush.msra.mxu0 %v1622
      %1721 = vmatpush.msra.mxu0 %v1619
      %1722 = vmatpush.msra.mxu0 %v1616
      %1723 = vmatpush.msra.mxu0 %v1613
      %1724 = vmatmul.f32.gmra.mxu0 %v1463
      %v1725 = vpop.f32.mrf.mxu0
      %v1726 = vadd.f32 0.0, %v1725
      %1727 = vmatmul.f32.gmra.mxu0 %v1465
      %v1728 = vpop.f32.mrf.mxu0
      %v1729 = vadd.f32 0.0, %v1728
      %1730 = vdwg.mxu0
      %1731 = vmatpush.msra.mxu0 %v1706
      %1732 = vmatpush.msra.mxu0 %v1703
      %1733 = vmatpush.msra.mxu0 %v1700
      %1734 = vmatpush.msra.mxu0 %v1697
      %1735 = vmatpush.msra.mxu0 %v1694
      %1736 = vmatpush.msra.mxu0 %v1691
      %1737 = vmatpush.msra.mxu0 %v1688
      %1738 = vmatpush.msra.mxu0 %v1685
      %1739 = vmatpush.msra.mxu0 %v1682
      %1740 = vmatpush.msra.mxu0 %v1679
      %1741 = vmatpush.msra.mxu0 %v1676
      %1742 = vmatpush.msra.mxu0 %v1673
      %1743 = vmatpush.msra.mxu0 %v1670
      %1744 = vmatpush.msra.mxu0 %v1667
      %1745 = vmatpush.msra.mxu0 %v1664
      %1746 = vmatpush.msra.mxu0 %v1661
      %1747 = vmatmul.f32.gmra.mxu0 %v1464
      %v1748 = vpop.f32.mrf.mxu0
      %v1749 = vadd.f32 %v1726, %v1748
      %1750 = vmatmul.f32.gmra.mxu0 %v1466
      %v1751 = vpop.f32.mrf.mxu0
      %v1752 = vadd.f32 %v1729, %v1751
      %1753 = vdwg.mxu0
      %v1754 = vmul.f32 %v1749, 0.0625
      %v1755 = vmul.f32 %v1752, 0.0625
      %v1756 = vmul.f32 %v1137, %v1262
      %v1757 = vmul.f32 %v1139, %v1264
      %v1758 = vmul.f32 %v1142, %v1267
      %v1759 = vmul.f32 %v1144, %v1269
      %v1760 = vmul.f32 %v1147, %v1272
      %v1761 = vmul.f32 %v1149, %v1274
      %v1762 = vmul.f32 %v1152, %v1277
      %v1763 = vmul.f32 %v1154, %v1279
      %v1764 = vmul.f32 %v1157, %v1262
      %v1765 = vmul.f32 %v1159, %v1264
      %v1766 = vmul.f32 %v1162, %v1267
      %v1767 = vmul.f32 %v1164, %v1269
      %v1768 = vmul.f32 %v1167, %v1272
      %v1769 = vmul.f32 %v1169, %v1274
      %v1770 = vmul.f32 %v1172, %v1277
      %v1771 = vmul.f32 %v1174, %v1279
      %v1772 = vmul.f32 %v1177, %v1262
      %v1773 = vmul.f32 %v1179, %v1264
      %v1774 = vmul.f32 %v1182, %v1267
      %v1775 = vmul.f32 %v1184, %v1269
      %v1776 = vmul.f32 %v1187, %v1272
      %v1777 = vmul.f32 %v1189, %v1274
      %v1778 = vmul.f32 %v1192, %v1277
      %v1779 = vmul.f32 %v1194, %v1279
      %v1780 = vmul.f32 %v1197, %v1262
      %v1781 = vmul.f32 %v1199, %v1264
      %v1782 = vmul.f32 %v1202, %v1267
      %v1783 = vmul.f32 %v1204, %v1269
      %v1784 = vmul.f32 %v1207, %v1272
      %v1785 = vmul.f32 %v1209, %v1274
      %v1786 = vmul.f32 %v1212, %v1277
      %v1787 = vmul.f32 %v1214, %v1279
      %v1789 = vsel %vm615, %v1756, 0
      %v1792 = vsel %vm615, %v1757, 0
      %v1795 = vsel %vm615, %v1758, 0
      %v1798 = vsel %vm615, %v1759, 0
      %v1801 = vsel %vm615, %v1760, 0
      %v1804 = vsel %vm615, %v1761, 0
      %v1807 = vsel %vm615, %v1762, 0
      %v1810 = vsel %vm615, %v1763, 0
      %v1813 = vsel %vm615, %v1764, 0
      %v1816 = vsel %vm615, %v1765, 0
      %v1819 = vsel %vm615, %v1766, 0
      %v1822 = vsel %vm615, %v1767, 0
      %v1825 = vsel %vm615, %v1768, 0
      %v1828 = vsel %vm615, %v1769, 0
      %v1831 = vsel %vm615, %v1770, 0
      %v1834 = vsel %vm615, %v1771, 0
      %v1837 = vsel %vm615, %v1772, 0
      %v1840 = vsel %vm615, %v1773, 0
      %v1843 = vsel %vm615, %v1774, 0
      %v1846 = vsel %vm615, %v1775, 0
      %v1849 = vsel %vm615, %v1776, 0
      %v1852 = vsel %vm615, %v1777, 0
      %v1855 = vsel %vm615, %v1778, 0
      %v1858 = vsel %vm615, %v1779, 0
      %v1861 = vsel %vm615, %v1780, 0
      %v1864 = vsel %vm615, %v1781, 0
      %v1867 = vsel %vm615, %v1782, 0
      %v1870 = vsel %vm615, %v1783, 0
      %v1873 = vsel %vm615, %v1784, 0
      %v1876 = vsel %vm615, %v1785, 0
      %v1879 = vsel %vm615, %v1786, 0
      %v1882 = vsel %vm615, %v1787, 0
      %1884 = vmatpush.msra.mxu0 0.0
      %1885 = vmatpush.msra.mxu0 0.0
      %1886 = vmatpush.msra.mxu0 0.0
      %1887 = vmatpush.msra.mxu0 0.0
      %1888 = vmatpush.msra.mxu0 0.0
      %1889 = vmatpush.msra.mxu0 0.0
      %1890 = vmatpush.msra.mxu0 0.0
      %1891 = vmatpush.msra.mxu0 0.0
      %1892 = vmatpush.msra.mxu0 0.0
      %1893 = vmatpush.msra.mxu0 0.0
      %1894 = vmatpush.msra.mxu0 0.0
      %1895 = vmatpush.msra.mxu0 0.0
      %1896 = vmatpush.msra.mxu0 %v1429
      %1897 = vmatpush.msra.mxu0 %v1428
      %1898 = vmatpush.msra.mxu0 %v1427
      %1899 = vmatpush.msra.mxu0 %v1426
      %1900 = vmatmul.f32.gmra.mxu0 %v1789
      %v1901 = vpop.f32.mrf.mxu0
      %v1902 = vadd.f32 0.0, %v1901
      %1903 = vmatmul.f32.gmra.mxu0 %v1792
      %v1904 = vpop.f32.mrf.mxu0
      %v1905 = vadd.f32 0.0, %v1904
      %1906 = vmatmul.f32.gmra.mxu0 %v1795
      %v1907 = vpop.f32.mrf.mxu0
      %v1908 = vadd.f32 0.0, %v1907
      %1909 = vmatmul.f32.gmra.mxu0 %v1798
      %v1910 = vpop.f32.mrf.mxu0
      %v1911 = vadd.f32 0.0, %v1910
      %1912 = vmatmul.f32.gmra.mxu0 %v1801
      %v1913 = vpop.f32.mrf.mxu0
      %v1914 = vadd.f32 0.0, %v1913
      %1915 = vmatmul.f32.gmra.mxu0 %v1804
      %v1916 = vpop.f32.mrf.mxu0
      %v1917 = vadd.f32 0.0, %v1916
      %1918 = vmatmul.f32.gmra.mxu0 %v1807
      %v1919 = vpop.f32.mrf.mxu0
      %v1920 = vadd.f32 0.0, %v1919
      %1921 = vmatmul.f32.gmra.mxu0 %v1810
      %v1922 = vpop.f32.mrf.mxu0
      %v1923 = vadd.f32 0.0, %v1922
      %1924 = vmatmul.f32.gmra.mxu0 %v1813
      %v1925 = vpop.f32.mrf.mxu0
      %v1926 = vadd.f32 0.0, %v1925
      %1927 = vmatmul.f32.gmra.mxu0 %v1816
      %v1928 = vpop.f32.mrf.mxu0
      %v1929 = vadd.f32 0.0, %v1928
      %1930 = vmatmul.f32.gmra.mxu0 %v1819
      %v1931 = vpop.f32.mrf.mxu0
      %v1932 = vadd.f32 0.0, %v1931
      %1933 = vmatmul.f32.gmra.mxu0 %v1822
      %v1934 = vpop.f32.mrf.mxu0
      %v1935 = vadd.f32 0.0, %v1934
      %1936 = vmatmul.f32.gmra.mxu0 %v1825
      %v1937 = vpop.f32.mrf.mxu0
      %v1938 = vadd.f32 0.0, %v1937
      %1939 = vmatmul.f32.gmra.mxu0 %v1828
      %v1940 = vpop.f32.mrf.mxu0
      %v1941 = vadd.f32 0.0, %v1940
      %1942 = vmatmul.f32.gmra.mxu0 %v1831
      %v1943 = vpop.f32.mrf.mxu0
      %v1944 = vadd.f32 0.0, %v1943
      %1945 = vmatmul.f32.gmra.mxu0 %v1834
      %v1946 = vpop.f32.mrf.mxu0
      %v1947 = vadd.f32 0.0, %v1946
      %1948 = vmatmul.f32.gmra.mxu0 %v1837
      %v1949 = vpop.f32.mrf.mxu0
      %v1950 = vadd.f32 0.0, %v1949
      %1951 = vmatmul.f32.gmra.mxu0 %v1840
      %v1952 = vpop.f32.mrf.mxu0
      %v1953 = vadd.f32 0.0, %v1952
      %1954 = vmatmul.f32.gmra.mxu0 %v1843
      %v1955 = vpop.f32.mrf.mxu0
      %v1956 = vadd.f32 0.0, %v1955
      %1957 = vmatmul.f32.gmra.mxu0 %v1846
      %v1958 = vpop.f32.mrf.mxu0
      %v1959 = vadd.f32 0.0, %v1958
      %1960 = vmatmul.f32.gmra.mxu0 %v1849
      %v1961 = vpop.f32.mrf.mxu0
      %v1962 = vadd.f32 0.0, %v1961
      %1963 = vmatmul.f32.gmra.mxu0 %v1852
      %v1964 = vpop.f32.mrf.mxu0
      %v1965 = vadd.f32 0.0, %v1964
      %1966 = vmatmul.f32.gmra.mxu0 %v1855
      %v1967 = vpop.f32.mrf.mxu0
      %v1968 = vadd.f32 0.0, %v1967
      %1969 = vmatmul.f32.gmra.mxu0 %v1858
      %v1970 = vpop.f32.mrf.mxu0
      %v1971 = vadd.f32 0.0, %v1970
      %1972 = vmatmul.f32.gmra.mxu0 %v1861
      %v1973 = vpop.f32.mrf.mxu0
      %v1974 = vadd.f32 0.0, %v1973
      %1975 = vmatmul.f32.gmra.mxu0 %v1864
      %v1976 = vpop.f32.mrf.mxu0
      %v1977 = vadd.f32 0.0, %v1976
      %1978 = vmatmul.f32.gmra.mxu0 %v1867
      %v1979 = vpop.f32.mrf.mxu0
      %v1980 = vadd.f32 0.0, %v1979
      %1981 = vmatmul.f32.gmra.mxu0 %v1870
      %v1982 = vpop.f32.mrf.mxu0
      %v1983 = vadd.f32 0.0, %v1982
      %1984 = vmatmul.f32.gmra.mxu0 %v1873
      %v1985 = vpop.f32.mrf.mxu0
      %v1986 = vadd.f32 0.0, %v1985
      %1987 = vmatmul.f32.gmra.mxu0 %v1876
      %v1988 = vpop.f32.mrf.mxu0
      %v1989 = vadd.f32 0.0, %v1988
      %1990 = vmatmul.f32.gmra.mxu0 %v1879
      %v1991 = vpop.f32.mrf.mxu0
      %v1992 = vadd.f32 0.0, %v1991
      %1993 = vmatmul.f32.gmra.mxu0 %v1882
      %v1994 = vpop.f32.mrf.mxu0
      %v1995 = vadd.f32 0.0, %v1994
      %1996 = vdwg.mxu0
      %1997 = vmatpush.msra.mxu0 %v1947
      %1998 = vmatpush.msra.mxu0 %v1944
      %1999 = vmatpush.msra.mxu0 %v1941
      %2000 = vmatpush.msra.mxu0 %v1938
      %2001 = vmatpush.msra.mxu0 %v1935
      %2002 = vmatpush.msra.mxu0 %v1932
      %2003 = vmatpush.msra.mxu0 %v1929
      %2004 = vmatpush.msra.mxu0 %v1926
      %2005 = vmatpush.msra.mxu0 %v1923
      %2006 = vmatpush.msra.mxu0 %v1920
      %2007 = vmatpush.msra.mxu0 %v1917
      %2008 = vmatpush.msra.mxu0 %v1914
      %2009 = vmatpush.msra.mxu0 %v1911
      %2010 = vmatpush.msra.mxu0 %v1908
      %2011 = vmatpush.msra.mxu0 %v1905
      %2012 = vmatpush.msra.mxu0 %v1902
      %2013 = vmatmul.f32.gmra.mxu0 %v1463
      %v2014 = vpop.f32.mrf.mxu0
      %v2015 = vadd.f32 0.0, %v2014
      %2016 = vmatmul.f32.gmra.mxu0 %v1465
      %v2017 = vpop.f32.mrf.mxu0
      %v2018 = vadd.f32 0.0, %v2017
      %2019 = vdwg.mxu0
      %2020 = vmatpush.msra.mxu0 %v1995
      %2021 = vmatpush.msra.mxu0 %v1992
      %2022 = vmatpush.msra.mxu0 %v1989
      %2023 = vmatpush.msra.mxu0 %v1986
      %2024 = vmatpush.msra.mxu0 %v1983
      %2025 = vmatpush.msra.mxu0 %v1980
      %2026 = vmatpush.msra.mxu0 %v1977
      %2027 = vmatpush.msra.mxu0 %v1974
      %2028 = vmatpush.msra.mxu0 %v1971
      %2029 = vmatpush.msra.mxu0 %v1968
      %2030 = vmatpush.msra.mxu0 %v1965
      %2031 = vmatpush.msra.mxu0 %v1962
      %2032 = vmatpush.msra.mxu0 %v1959
      %2033 = vmatpush.msra.mxu0 %v1956
      %2034 = vmatpush.msra.mxu0 %v1953
      %2035 = vmatpush.msra.mxu0 %v1950
      %2036 = vmatmul.f32.gmra.mxu0 %v1464
      %v2037 = vpop.f32.mrf.mxu0
      %v2038 = vadd.f32 %v2015, %v2037
      %2039 = vmatmul.f32.gmra.mxu0 %v1466
      %v2040 = vpop.f32.mrf.mxu0
      %v2041 = vadd.f32 %v2018, %v2040
      %2042 = vdwg.mxu0
      %v2043 = vmul.f32 %v2038, 0.0625
      %v2044 = vmul.f32 %v2041, 0.0625
      %v2045 = vmul.f32 %v1137, %v1282
      %v2046 = vmul.f32 %v1139, %v1284
      %v2047 = vmul.f32 %v1142, %v1287
      %v2048 = vmul.f32 %v1144, %v1289
      %v2049 = vmul.f32 %v1147, %v1292
      %v2050 = vmul.f32 %v1149, %v1294
      %v2051 = vmul.f32 %v1152, %v1297
      %v2052 = vmul.f32 %v1154, %v1299
      %v2053 = vmul.f32 %v1157, %v1282
      %v2054 = vmul.f32 %v1159, %v1284
      %v2055 = vmul.f32 %v1162, %v1287
      %v2056 = vmul.f32 %v1164, %v1289
      %v2057 = vmul.f32 %v1167, %v1292
      %v2058 = vmul.f32 %v1169, %v1294
      %v2059 = vmul.f32 %v1172, %v1297
      %v2060 = vmul.f32 %v1174, %v1299
      %v2061 = vmul.f32 %v1177, %v1282
      %v2062 = vmul.f32 %v1179, %v1284
      %v2063 = vmul.f32 %v1182, %v1287
      %v2064 = vmul.f32 %v1184, %v1289
      %v2065 = vmul.f32 %v1187, %v1292
      %v2066 = vmul.f32 %v1189, %v1294
      %v2067 = vmul.f32 %v1192, %v1297
      %v2068 = vmul.f32 %v1194, %v1299
      %v2069 = vmul.f32 %v1197, %v1282
      %v2070 = vmul.f32 %v1199, %v1284
      %v2071 = vmul.f32 %v1202, %v1287
      %v2072 = vmul.f32 %v1204, %v1289
      %v2073 = vmul.f32 %v1207, %v1292
      %v2074 = vmul.f32 %v1209, %v1294
      %v2075 = vmul.f32 %v1212, %v1297
      %v2076 = vmul.f32 %v1214, %v1299
      %v2078 = vsel %vm615, %v2045, 0
      %v2081 = vsel %vm615, %v2046, 0
      %v2084 = vsel %vm615, %v2047, 0
      %v2087 = vsel %vm615, %v2048, 0
      %v2090 = vsel %vm615, %v2049, 0
      %v2093 = vsel %vm615, %v2050, 0
      %v2096 = vsel %vm615, %v2051, 0
      %v2099 = vsel %vm615, %v2052, 0
      %v2102 = vsel %vm615, %v2053, 0
      %v2105 = vsel %vm615, %v2054, 0
      %v2108 = vsel %vm615, %v2055, 0
      %v2111 = vsel %vm615, %v2056, 0
      %v2114 = vsel %vm615, %v2057, 0
      %v2117 = vsel %vm615, %v2058, 0
      %v2120 = vsel %vm615, %v2059, 0
      %v2123 = vsel %vm615, %v2060, 0
      %v2126 = vsel %vm615, %v2061, 0
      %v2129 = vsel %vm615, %v2062, 0
      %v2132 = vsel %vm615, %v2063, 0
      %v2135 = vsel %vm615, %v2064, 0
      %v2138 = vsel %vm615, %v2065, 0
      %v2141 = vsel %vm615, %v2066, 0
      %v2144 = vsel %vm615, %v2067, 0
      %v2147 = vsel %vm615, %v2068, 0
      %v2150 = vsel %vm615, %v2069, 0
      %v2153 = vsel %vm615, %v2070, 0
      %v2156 = vsel %vm615, %v2071, 0
      %v2159 = vsel %vm615, %v2072, 0
      %v2162 = vsel %vm615, %v2073, 0
      %v2165 = vsel %vm615, %v2074, 0
      %v2168 = vsel %vm615, %v2075, 0
      %v2171 = vsel %vm615, %v2076, 0
      %2173 = vmatpush.msra.mxu0 0.0
      %2174 = vmatpush.msra.mxu0 0.0
      %2175 = vmatpush.msra.mxu0 0.0
      %2176 = vmatpush.msra.mxu0 0.0
      %2177 = vmatpush.msra.mxu0 0.0
      %2178 = vmatpush.msra.mxu0 0.0
      %2179 = vmatpush.msra.mxu0 0.0
      %2180 = vmatpush.msra.mxu0 0.0
      %2181 = vmatpush.msra.mxu0 0.0
      %2182 = vmatpush.msra.mxu0 0.0
      %2183 = vmatpush.msra.mxu0 0.0
      %2184 = vmatpush.msra.mxu0 0.0
      %2185 = vmatpush.msra.mxu0 %v1429
      %2186 = vmatpush.msra.mxu0 %v1428
      %2187 = vmatpush.msra.mxu0 %v1427
      %2188 = vmatpush.msra.mxu0 %v1426
      %2189 = vmatmul.f32.gmra.mxu0 %v2078
      %v2190 = vpop.f32.mrf.mxu0
      %v2191 = vadd.f32 0.0, %v2190
      %2192 = vmatmul.f32.gmra.mxu0 %v2081
      %v2193 = vpop.f32.mrf.mxu0
      %v2194 = vadd.f32 0.0, %v2193
      %2195 = vmatmul.f32.gmra.mxu0 %v2084
      %v2196 = vpop.f32.mrf.mxu0
      %v2197 = vadd.f32 0.0, %v2196
      %2198 = vmatmul.f32.gmra.mxu0 %v2087
      %v2199 = vpop.f32.mrf.mxu0
      %v2200 = vadd.f32 0.0, %v2199
      %2201 = vmatmul.f32.gmra.mxu0 %v2090
      %v2202 = vpop.f32.mrf.mxu0
      %v2203 = vadd.f32 0.0, %v2202
      %2204 = vmatmul.f32.gmra.mxu0 %v2093
      %v2205 = vpop.f32.mrf.mxu0
      %v2206 = vadd.f32 0.0, %v2205
      %2207 = vmatmul.f32.gmra.mxu0 %v2096
      %v2208 = vpop.f32.mrf.mxu0
      %v2209 = vadd.f32 0.0, %v2208
      %2210 = vmatmul.f32.gmra.mxu0 %v2099
      %v2211 = vpop.f32.mrf.mxu0
      %v2212 = vadd.f32 0.0, %v2211
      %2213 = vmatmul.f32.gmra.mxu0 %v2102
      %v2214 = vpop.f32.mrf.mxu0
      %v2215 = vadd.f32 0.0, %v2214
      %2216 = vmatmul.f32.gmra.mxu0 %v2105
      %v2217 = vpop.f32.mrf.mxu0
      %v2218 = vadd.f32 0.0, %v2217
      %2219 = vmatmul.f32.gmra.mxu0 %v2108
      %v2220 = vpop.f32.mrf.mxu0
      %v2221 = vadd.f32 0.0, %v2220
      %2222 = vmatmul.f32.gmra.mxu0 %v2111
      %v2223 = vpop.f32.mrf.mxu0
      %v2224 = vadd.f32 0.0, %v2223
      %2225 = vmatmul.f32.gmra.mxu0 %v2114
      %v2226 = vpop.f32.mrf.mxu0
      %v2227 = vadd.f32 0.0, %v2226
      %2228 = vmatmul.f32.gmra.mxu0 %v2117
      %v2229 = vpop.f32.mrf.mxu0
      %v2230 = vadd.f32 0.0, %v2229
      %2231 = vmatmul.f32.gmra.mxu0 %v2120
      %v2232 = vpop.f32.mrf.mxu0
      %v2233 = vadd.f32 0.0, %v2232
      %2234 = vmatmul.f32.gmra.mxu0 %v2123
      %v2235 = vpop.f32.mrf.mxu0
      %v2236 = vadd.f32 0.0, %v2235
      %2237 = vmatmul.f32.gmra.mxu0 %v2126
      %v2238 = vpop.f32.mrf.mxu0
      %v2239 = vadd.f32 0.0, %v2238
      %2240 = vmatmul.f32.gmra.mxu0 %v2129
      %v2241 = vpop.f32.mrf.mxu0
      %v2242 = vadd.f32 0.0, %v2241
      %2243 = vmatmul.f32.gmra.mxu0 %v2132
      %v2244 = vpop.f32.mrf.mxu0
      %v2245 = vadd.f32 0.0, %v2244
      %2246 = vmatmul.f32.gmra.mxu0 %v2135
      %v2247 = vpop.f32.mrf.mxu0
      %v2248 = vadd.f32 0.0, %v2247
      %2249 = vmatmul.f32.gmra.mxu0 %v2138
      %v2250 = vpop.f32.mrf.mxu0
      %v2251 = vadd.f32 0.0, %v2250
      %2252 = vmatmul.f32.gmra.mxu0 %v2141
      %v2253 = vpop.f32.mrf.mxu0
      %v2254 = vadd.f32 0.0, %v2253
      %2255 = vmatmul.f32.gmra.mxu0 %v2144
      %v2256 = vpop.f32.mrf.mxu0
      %v2257 = vadd.f32 0.0, %v2256
      %2258 = vmatmul.f32.gmra.mxu0 %v2147
      %v2259 = vpop.f32.mrf.mxu0
      %v2260 = vadd.f32 0.0, %v2259
      %2261 = vmatmul.f32.gmra.mxu0 %v2150
      %v2262 = vpop.f32.mrf.mxu0
      %v2263 = vadd.f32 0.0, %v2262
      %2264 = vmatmul.f32.gmra.mxu0 %v2153
      %v2265 = vpop.f32.mrf.mxu0
      %v2266 = vadd.f32 0.0, %v2265
      %2267 = vmatmul.f32.gmra.mxu0 %v2156
      %v2268 = vpop.f32.mrf.mxu0
      %v2269 = vadd.f32 0.0, %v2268
      %2270 = vmatmul.f32.gmra.mxu0 %v2159
      %v2271 = vpop.f32.mrf.mxu0
      %v2272 = vadd.f32 0.0, %v2271
      %2273 = vmatmul.f32.gmra.mxu0 %v2162
      %v2274 = vpop.f32.mrf.mxu0
      %v2275 = vadd.f32 0.0, %v2274
      %2276 = vmatmul.f32.gmra.mxu0 %v2165
      %v2277 = vpop.f32.mrf.mxu0
      %v2278 = vadd.f32 0.0, %v2277
      %2279 = vmatmul.f32.gmra.mxu0 %v2168
      %v2280 = vpop.f32.mrf.mxu0
      %v2281 = vadd.f32 0.0, %v2280
      %2282 = vmatmul.f32.gmra.mxu0 %v2171
      %v2283 = vpop.f32.mrf.mxu0
      %v2284 = vadd.f32 0.0, %v2283
      %2285 = vdwg.mxu0
      %2286 = vmatpush.msra.mxu0 %v2236
      %2287 = vmatpush.msra.mxu0 %v2233
      %2288 = vmatpush.msra.mxu0 %v2230
      %2289 = vmatpush.msra.mxu0 %v2227
      %2290 = vmatpush.msra.mxu0 %v2224
      %2291 = vmatpush.msra.mxu0 %v2221
      %2292 = vmatpush.msra.mxu0 %v2218
      %2293 = vmatpush.msra.mxu0 %v2215
      %2294 = vmatpush.msra.mxu0 %v2212
      %2295 = vmatpush.msra.mxu0 %v2209
      %2296 = vmatpush.msra.mxu0 %v2206
      %2297 = vmatpush.msra.mxu0 %v2203
      %2298 = vmatpush.msra.mxu0 %v2200
      %2299 = vmatpush.msra.mxu0 %v2197
      %2300 = vmatpush.msra.mxu0 %v2194
      %2301 = vmatpush.msra.mxu0 %v2191
      %2302 = vmatmul.f32.gmra.mxu0 %v1463
      %v2303 = vpop.f32.mrf.mxu0
      %v2304 = vadd.f32 0.0, %v2303
      %2305 = vmatmul.f32.gmra.mxu0 %v1465
      %v2306 = vpop.f32.mrf.mxu0
      %v2307 = vadd.f32 0.0, %v2306
      %2308 = vdwg.mxu0
      %2309 = vmatpush.msra.mxu0 %v2284
      %2310 = vmatpush.msra.mxu0 %v2281
      %2311 = vmatpush.msra.mxu0 %v2278
      %2312 = vmatpush.msra.mxu0 %v2275
      %2313 = vmatpush.msra.mxu0 %v2272
      %2314 = vmatpush.msra.mxu0 %v2269
      %2315 = vmatpush.msra.mxu0 %v2266
      %2316 = vmatpush.msra.mxu0 %v2263
      %2317 = vmatpush.msra.mxu0 %v2260
      %2318 = vmatpush.msra.mxu0 %v2257
      %2319 = vmatpush.msra.mxu0 %v2254
      %2320 = vmatpush.msra.mxu0 %v2251
      %2321 = vmatpush.msra.mxu0 %v2248
      %2322 = vmatpush.msra.mxu0 %v2245
      %2323 = vmatpush.msra.mxu0 %v2242
      %2324 = vmatpush.msra.mxu0 %v2239
      %2325 = vmatmul.f32.gmra.mxu0 %v1464
      %v2326 = vpop.f32.mrf.mxu0
      %v2327 = vadd.f32 %v2304, %v2326
      %2328 = vmatmul.f32.gmra.mxu0 %v1466
      %v2329 = vpop.f32.mrf.mxu0
      %v2330 = vadd.f32 %v2307, %v2329
      %2331 = vdwg.mxu0
      %v2332 = vmul.f32 %v2327, 0.0625
      %v2333 = vmul.f32 %v2330, 0.0625
      %v2334 = vmul.f32 %v1137, %v1302
      %v2335 = vmul.f32 %v1139, %v1304
      %v2336 = vmul.f32 %v1142, %v1307
      %v2337 = vmul.f32 %v1144, %v1309
      %v2338 = vmul.f32 %v1147, %v1312
      %v2339 = vmul.f32 %v1149, %v1314
      %v2340 = vmul.f32 %v1152, %v1317
      %v2341 = vmul.f32 %v1154, %v1319
      %v2342 = vmul.f32 %v1157, %v1302
      %v2343 = vmul.f32 %v1159, %v1304
      %v2344 = vmul.f32 %v1162, %v1307
      %v2345 = vmul.f32 %v1164, %v1309
      %v2346 = vmul.f32 %v1167, %v1312
      %v2347 = vmul.f32 %v1169, %v1314
      %v2348 = vmul.f32 %v1172, %v1317
      %v2349 = vmul.f32 %v1174, %v1319
      %v2350 = vmul.f32 %v1177, %v1302
      %v2351 = vmul.f32 %v1179, %v1304
      %v2352 = vmul.f32 %v1182, %v1307
      %v2353 = vmul.f32 %v1184, %v1309
      %v2354 = vmul.f32 %v1187, %v1312
      %v2355 = vmul.f32 %v1189, %v1314
      %v2356 = vmul.f32 %v1192, %v1317
      %v2357 = vmul.f32 %v1194, %v1319
      %v2358 = vmul.f32 %v1197, %v1302
      %v2359 = vmul.f32 %v1199, %v1304
      %v2360 = vmul.f32 %v1202, %v1307
      %v2361 = vmul.f32 %v1204, %v1309
      %v2362 = vmul.f32 %v1207, %v1312
      %v2363 = vmul.f32 %v1209, %v1314
      %v2364 = vmul.f32 %v1212, %v1317
      %v2365 = vmul.f32 %v1214, %v1319
      %v2367 = vsel %vm615, %v2334, 0
      %v2370 = vsel %vm615, %v2335, 0
      %v2373 = vsel %vm615, %v2336, 0
      %v2376 = vsel %vm615, %v2337, 0
      %v2379 = vsel %vm615, %v2338, 0
      %v2382 = vsel %vm615, %v2339, 0
      %v2385 = vsel %vm615, %v2340, 0
      %v2388 = vsel %vm615, %v2341, 0
      %v2391 = vsel %vm615, %v2342, 0
      %v2394 = vsel %vm615, %v2343, 0
      %v2397 = vsel %vm615, %v2344, 0
      %v2400 = vsel %vm615, %v2345, 0
      %v2403 = vsel %vm615, %v2346, 0
      %v2406 = vsel %vm615, %v2347, 0
      %v2409 = vsel %vm615, %v2348, 0
      %v2412 = vsel %vm615, %v2349, 0
      %v2415 = vsel %vm615, %v2350, 0
      %v2418 = vsel %vm615, %v2351, 0
      %v2421 = vsel %vm615, %v2352, 0
      %v2424 = vsel %vm615, %v2353, 0
      %v2427 = vsel %vm615, %v2354, 0
      %v2430 = vsel %vm615, %v2355, 0
      %v2433 = vsel %vm615, %v2356, 0
      %v2436 = vsel %vm615, %v2357, 0
      %v2439 = vsel %vm615, %v2358, 0
      %v2442 = vsel %vm615, %v2359, 0
      %v2445 = vsel %vm615, %v2360, 0
      %v2448 = vsel %vm615, %v2361, 0
      %v2451 = vsel %vm615, %v2362, 0
      %v2454 = vsel %vm615, %v2363, 0
      %v2457 = vsel %vm615, %v2364, 0
      %v2460 = vsel %vm615, %v2365, 0
      %2462 = vmatpush.msra.mxu0 0.0
      %2463 = vmatpush.msra.mxu0 0.0
      %2464 = vmatpush.msra.mxu0 0.0
      %2465 = vmatpush.msra.mxu0 0.0
      %2466 = vmatpush.msra.mxu0 0.0
      %2467 = vmatpush.msra.mxu0 0.0
      %2468 = vmatpush.msra.mxu0 0.0
      %2469 = vmatpush.msra.mxu0 0.0
      %2470 = vmatpush.msra.mxu0 0.0
      %2471 = vmatpush.msra.mxu0 0.0
      %2472 = vmatpush.msra.mxu0 0.0
      %2473 = vmatpush.msra.mxu0 0.0
      %2474 = vmatpush.msra.mxu0 %v1429
      %2475 = vmatpush.msra.mxu0 %v1428
      %2476 = vmatpush.msra.mxu0 %v1427
      %2477 = vmatpush.msra.mxu0 %v1426
      %2478 = vmatmul.f32.gmra.mxu0 %v2367
      %v2479 = vpop.f32.mrf.mxu0
      %v2480 = vadd.f32 0.0, %v2479
      %2481 = vmatmul.f32.gmra.mxu0 %v2370
      %v2482 = vpop.f32.mrf.mxu0
      %v2483 = vadd.f32 0.0, %v2482
      %2484 = vmatmul.f32.gmra.mxu0 %v2373
      %v2485 = vpop.f32.mrf.mxu0
      %v2486 = vadd.f32 0.0, %v2485
      %2487 = vmatmul.f32.gmra.mxu0 %v2376
      %v2488 = vpop.f32.mrf.mxu0
      %v2489 = vadd.f32 0.0, %v2488
      %2490 = vmatmul.f32.gmra.mxu0 %v2379
      %v2491 = vpop.f32.mrf.mxu0
      %v2492 = vadd.f32 0.0, %v2491
      %2493 = vmatmul.f32.gmra.mxu0 %v2382
      %v2494 = vpop.f32.mrf.mxu0
      %v2495 = vadd.f32 0.0, %v2494
      %2496 = vmatmul.f32.gmra.mxu0 %v2385
      %v2497 = vpop.f32.mrf.mxu0
      %v2498 = vadd.f32 0.0, %v2497
      %2499 = vmatmul.f32.gmra.mxu0 %v2388
      %v2500 = vpop.f32.mrf.mxu0
      %v2501 = vadd.f32 0.0, %v2500
      %2502 = vmatmul.f32.gmra.mxu0 %v2391
      %v2503 = vpop.f32.mrf.mxu0
      %v2504 = vadd.f32 0.0, %v2503
      %2505 = vmatmul.f32.gmra.mxu0 %v2394
      %v2506 = vpop.f32.mrf.mxu0
      %v2507 = vadd.f32 0.0, %v2506
      %2508 = vmatmul.f32.gmra.mxu0 %v2397
      %v2509 = vpop.f32.mrf.mxu0
      %v2510 = vadd.f32 0.0, %v2509
      %2511 = vmatmul.f32.gmra.mxu0 %v2400
      %v2512 = vpop.f32.mrf.mxu0
      %v2513 = vadd.f32 0.0, %v2512
      %2514 = vmatmul.f32.gmra.mxu0 %v2403
      %v2515 = vpop.f32.mrf.mxu0
      %v2516 = vadd.f32 0.0, %v2515
      %2517 = vmatmul.f32.gmra.mxu0 %v2406
      %v2518 = vpop.f32.mrf.mxu0
      %v2519 = vadd.f32 0.0, %v2518
      %2520 = vmatmul.f32.gmra.mxu0 %v2409
      %v2521 = vpop.f32.mrf.mxu0
      %v2522 = vadd.f32 0.0, %v2521
      %2523 = vmatmul.f32.gmra.mxu0 %v2412
      %v2524 = vpop.f32.mrf.mxu0
      %v2525 = vadd.f32 0.0, %v2524
      %2526 = vmatmul.f32.gmra.mxu0 %v2415
      %v2527 = vpop.f32.mrf.mxu0
      %v2528 = vadd.f32 0.0, %v2527
      %2529 = vmatmul.f32.gmra.mxu0 %v2418
      %v2530 = vpop.f32.mrf.mxu0
      %v2531 = vadd.f32 0.0, %v2530
      %2532 = vmatmul.f32.gmra.mxu0 %v2421
      %v2533 = vpop.f32.mrf.mxu0
      %v2534 = vadd.f32 0.0, %v2533
      %2535 = vmatmul.f32.gmra.mxu0 %v2424
      %v2536 = vpop.f32.mrf.mxu0
      %v2537 = vadd.f32 0.0, %v2536
      %2538 = vmatmul.f32.gmra.mxu0 %v2427
      %v2539 = vpop.f32.mrf.mxu0
      %v2540 = vadd.f32 0.0, %v2539
      %2541 = vmatmul.f32.gmra.mxu0 %v2430
      %v2542 = vpop.f32.mrf.mxu0
      %v2543 = vadd.f32 0.0, %v2542
      %2544 = vmatmul.f32.gmra.mxu0 %v2433
      %v2545 = vpop.f32.mrf.mxu0
      %v2546 = vadd.f32 0.0, %v2545
      %2547 = vmatmul.f32.gmra.mxu0 %v2436
      %v2548 = vpop.f32.mrf.mxu0
      %v2549 = vadd.f32 0.0, %v2548
      %2550 = vmatmul.f32.gmra.mxu0 %v2439
      %v2551 = vpop.f32.mrf.mxu0
      %v2552 = vadd.f32 0.0, %v2551
      %2553 = vmatmul.f32.gmra.mxu0 %v2442
      %v2554 = vpop.f32.mrf.mxu0
      %v2555 = vadd.f32 0.0, %v2554
      %2556 = vmatmul.f32.gmra.mxu0 %v2445
      %v2557 = vpop.f32.mrf.mxu0
      %v2558 = vadd.f32 0.0, %v2557
      %2559 = vmatmul.f32.gmra.mxu0 %v2448
      %v2560 = vpop.f32.mrf.mxu0
      %v2561 = vadd.f32 0.0, %v2560
      %2562 = vmatmul.f32.gmra.mxu0 %v2451
      %v2563 = vpop.f32.mrf.mxu0
      %v2564 = vadd.f32 0.0, %v2563
      %2565 = vmatmul.f32.gmra.mxu0 %v2454
      %v2566 = vpop.f32.mrf.mxu0
      %v2567 = vadd.f32 0.0, %v2566
      %2568 = vmatmul.f32.gmra.mxu0 %v2457
      %v2569 = vpop.f32.mrf.mxu0
      %v2570 = vadd.f32 0.0, %v2569
      %2571 = vmatmul.f32.gmra.mxu0 %v2460
      %v2572 = vpop.f32.mrf.mxu0
      %v2573 = vadd.f32 0.0, %v2572
      %2574 = vdwg.mxu0
      %2575 = vmatpush.msra.mxu0 %v2525
      %2576 = vmatpush.msra.mxu0 %v2522
      %2577 = vmatpush.msra.mxu0 %v2519
      %2578 = vmatpush.msra.mxu0 %v2516
      %2579 = vmatpush.msra.mxu0 %v2513
      %2580 = vmatpush.msra.mxu0 %v2510
      %2581 = vmatpush.msra.mxu0 %v2507
      %2582 = vmatpush.msra.mxu0 %v2504
      %2583 = vmatpush.msra.mxu0 %v2501
      %2584 = vmatpush.msra.mxu0 %v2498
      %2585 = vmatpush.msra.mxu0 %v2495
      %2586 = vmatpush.msra.mxu0 %v2492
      %2587 = vmatpush.msra.mxu0 %v2489
      %2588 = vmatpush.msra.mxu0 %v2486
      %2589 = vmatpush.msra.mxu0 %v2483
      %2590 = vmatpush.msra.mxu0 %v2480
      %2591 = vmatmul.f32.gmra.mxu0 %v1463
      %v2592 = vpop.f32.mrf.mxu0
      %v2593 = vadd.f32 0.0, %v2592
      %2594 = vmatmul.f32.gmra.mxu0 %v1465
      %v2595 = vpop.f32.mrf.mxu0
      %v2596 = vadd.f32 0.0, %v2595
      %2597 = vdwg.mxu0
      %2598 = vmatpush.msra.mxu0 %v2573
      %2599 = vmatpush.msra.mxu0 %v2570
      %2600 = vmatpush.msra.mxu0 %v2567
      %2601 = vmatpush.msra.mxu0 %v2564
      %2602 = vmatpush.msra.mxu0 %v2561
      %2603 = vmatpush.msra.mxu0 %v2558
      %2604 = vmatpush.msra.mxu0 %v2555
      %2605 = vmatpush.msra.mxu0 %v2552
      %2606 = vmatpush.msra.mxu0 %v2549
      %2607 = vmatpush.msra.mxu0 %v2546
      %2608 = vmatpush.msra.mxu0 %v2543
      %2609 = vmatpush.msra.mxu0 %v2540
      %2610 = vmatpush.msra.mxu0 %v2537
      %2611 = vmatpush.msra.mxu0 %v2534
      %2612 = vmatpush.msra.mxu0 %v2531
      %2613 = vmatpush.msra.mxu0 %v2528
      %2614 = vmatmul.f32.gmra.mxu0 %v1464
      %v2615 = vpop.f32.mrf.mxu0
      %v2616 = vadd.f32 %v2593, %v2615
      %2617 = vmatmul.f32.gmra.mxu0 %v1466
      %v2618 = vpop.f32.mrf.mxu0
      %v2619 = vadd.f32 %v2596, %v2618
      %2620 = vdwg.mxu0
      %v2621 = vmul.f32 %v2616, 0.0625
      %v2622 = vmul.f32 %v2619, 0.0625
      %v2623 = vmax.f32 %v1754, %v2043
      %v2624 = vmax.f32 %v1755, %v2044
      %v2625 = vmax.f32 %v2623, %v2332
      %v2626 = vmax.f32 %v2624, %v2333
      %v2627 = vmax.f32 %v2625, %v2621
      %v2628 = vmax.f32 %v2626, %v2622
      %v2629 = vsub.f32 %v1754, %v2627
      %v2630 = vsub.f32 %v1755, %v2628
      %v2631 = vmul.f32 %v2629, 1.442695
      %v2632 = vpow.pop %v2631
      %v2633 = vmul.f32 %v2630, 1.442695
      %v2634 = vpow.pop %v2633
      %v2635 = vsub.f32 %v2043, %v2627
      %v2636 = vsub.f32 %v2044, %v2628
      %v2637 = vmul.f32 %v2635, 1.442695
      %v2638 = vpow.pop %v2637
      %v2639 = vmul.f32 %v2636, 1.442695
      %v2640 = vpow.pop %v2639
      %v2641 = vsub.f32 %v2332, %v2627
      %v2642 = vsub.f32 %v2333, %v2628
      %v2643 = vmul.f32 %v2641, 1.442695
      %v2644 = vpow.pop %v2643
      %v2645 = vmul.f32 %v2642, 1.442695
      %v2646 = vpow.pop %v2645
      %v2647 = vsub.f32 %v2621, %v2627
      %v2648 = vsub.f32 %v2622, %v2628
      %v2649 = vmul.f32 %v2647, 1.442695
      %v2650 = vpow.pop %v2649
      %v2651 = vmul.f32 %v2648, 1.442695
      %v2652 = vpow.pop %v2651
      %v2653 = vadd.f32 %v2632, %v2638
      %v2654 = vadd.f32 %v2634, %v2640
      %v2655 = vadd.f32 %v2653, %v2644
      %v2656 = vadd.f32 %v2654, %v2646
      %v2657 = vadd.f32 %v2655, %v2650
      %v2658 = vadd.f32 %v2656, %v2652
      %v2659 = vrcp.pop %v2657
      %v2660 = vrcp.pop %v2658
      %v2661 = vmul.f32 %v2632, %v2659
      %v2662 = vmul.f32 %v2634, %v2660
      %vm2663 = vcmask 15360
      %v2665 = vsel %vm2663, %v2661, 0
      %v2668 = vsel %vm2663, %v2662, 0
      %vm2670 = vcmask 1041408
      %v2672 = vsel %vm2670, %v1430, 0
      %2674 = vmatpush.msra.mxu0 0.0
      %2675 = vmatpush.msra.mxu0 0.0
      %2676 = vmatpush.msra.mxu0 0.0
      %2677 = vmatpush.msra.mxu0 0.0
      %2678 = vmatpush.msra.mxu0 0.0
      %2679 = vmatpush.msra.mxu0 0.0
      %2680 = vmatpush.msra.mxu0 0.0
      %2681 = vmatpush.msra.mxu0 0.0
      %2682 = vmatpush.msra.mxu0 0.0
      %2683 = vmatpush.msra.mxu0 0.0
      %2684 = vmatpush.msra.mxu0 0.0
      %2685 = vmatpush.msra.mxu0 0.0
      %2686 = vmatpush.msra.mxu0 0.0
      %2687 = vmatpush.msra.mxu0 0.0
      %2688 = vmatpush.msra.mxu0 0.0
      %2689 = vmatpush.msra.mxu0 %v2672
      %2690 = vmatmul.f32.gmra.mxu0 %v2665
      %v2691 = vpop.f32.mrf.mxu0
      %v2692 = vadd.f32 0.0, %v2691
      %2693 = vmatmul.f32.gmra.mxu0 %v2668
      %v2694 = vpop.f32.mrf.mxu0
      %v2695 = vadd.f32 0.0, %v2694
      %2696 = vdwg.mxu0
      %vm2697 = vcmask 130048
      %v2699 = vsel %vm2697, %v1431, 0
      %v2702 = vsel %vm2697, %v1432, 0
      %v2705 = vsel %vm2697, %v1433, 0
      %v2708 = vsel %vm2697, %v1434, 0
      %v2711 = vsel %vm2697, %v1435, 0
      %v2714 = vsel %vm2697, %v1436, 0
      %v2717 = vsel %vm2697, %v1437, 0
      %v2720 = vsel %vm2697, %v1438, 0
      %v2723 = vsel %vm2697, %v1439, 0
      %v2726 = vsel %vm2697, %v1440, 0
      %v2729 = vsel %vm2697, %v1441, 0
      %v2732 = vsel %vm2697, %v1442, 0
      %v2735 = vsel %vm2697, %v1443, 0
      %v2738 = vsel %vm2697, %v1444, 0
      %v2741 = vsel %vm2697, %v1445, 0
      %v2744 = vsel %vm2697, %v1446, 0
      %v2747 = vsel %vm2697, %v1447, 0
      %v2750 = vsel %vm2697, %v1448, 0
      %v2753 = vsel %vm2697, %v1449, 0
      %v2756 = vsel %vm2697, %v1450, 0
      %v2759 = vsel %vm2697, %v1451, 0
      %v2762 = vsel %vm2697, %v1452, 0
      %v2765 = vsel %vm2697, %v1453, 0
      %v2768 = vsel %vm2697, %v1454, 0
      %v2771 = vsel %vm2697, %v1455, 0
      %v2774 = vsel %vm2697, %v1456, 0
      %v2777 = vsel %vm2697, %v1457, 0
      %v2780 = vsel %vm2697, %v1458, 0
      %v2783 = vsel %vm2697, %v1459, 0
      %v2786 = vsel %vm2697, %v1460, 0
      %v2789 = vsel %vm2697, %v1461, 0
      %v2792 = vsel %vm2697, %v1462, 0
      %2794 = vmatpush.msra.mxu0 0.0
      %2795 = vmatpush.msra.mxu0 0.0
      %2796 = vmatpush.msra.mxu0 0.0
      %2797 = vmatpush.msra.mxu0 0.0
      %2798 = vmatpush.msra.mxu0 0.0
      %2799 = vmatpush.msra.mxu0 0.0
      %2800 = vmatpush.msra.mxu0 0.0
      %2801 = vmatpush.msra.mxu0 0.0
      %2802 = vmatpush.msra.mxu0 0.0
      %2803 = vmatpush.msra.mxu0 0.0
      %2804 = vmatpush.msra.mxu0 0.0
      %2805 = vmatpush.msra.mxu0 0.0
      %2806 = vmatpush.msra.mxu0 0.0
      %2807 = vmatpush.msra.mxu0 0.0
      %2808 = vmatpush.msra.mxu0 %v2695
      %2809 = vmatpush.msra.mxu0 %v2692
      %2810 = vmatmul.f32.gmra.mxu0 %v2699
      %v2811 = vpop.f32.mrf.mxu0
      %v2812 = vadd.f32 0.0, %v2811
      %2813 = vmatmul.f32.gmra.mxu0 %v2702
      %v2814 = vpop.f32.mrf.mxu0
      %v2815 = vadd.f32 0.0, %v2814
      %2816 = vmatmul.f32.gmra.mxu0 %v2705
      %v2817 = vpop.f32.mrf.mxu0
      %v2818 = vadd.f32 0.0, %v2817
      %2819 = vmatmul.f32.gmra.mxu0 %v2708
      %v2820 = vpop.f32.mrf.mxu0
      %v2821 = vadd.f32 0.0, %v2820
      %2822 = vmatmul.f32.gmra.mxu0 %v2711
      %v2823 = vpop.f32.mrf.mxu0
      %v2824 = vadd.f32 0.0, %v2823
      %2825 = vmatmul.f32.gmra.mxu0 %v2714
      %v2826 = vpop.f32.mrf.mxu0
      %v2827 = vadd.f32 0.0, %v2826
      %2828 = vmatmul.f32.gmra.mxu0 %v2717
      %v2829 = vpop.f32.mrf.mxu0
      %v2830 = vadd.f32 0.0, %v2829
      %2831 = vmatmul.f32.gmra.mxu0 %v2720
      %v2832 = vpop.f32.mrf.mxu0
      %v2833 = vadd.f32 0.0, %v2832
      %2834 = vmatmul.f32.gmra.mxu0 %v2723
      %v2835 = vpop.f32.mrf.mxu0
      %v2836 = vadd.f32 0.0, %v2835
      %2837 = vmatmul.f32.gmra.mxu0 %v2726
      %v2838 = vpop.f32.mrf.mxu0
      %v2839 = vadd.f32 0.0, %v2838
      %2840 = vmatmul.f32.gmra.mxu0 %v2729
      %v2841 = vpop.f32.mrf.mxu0
      %v2842 = vadd.f32 0.0, %v2841
      %2843 = vmatmul.f32.gmra.mxu0 %v2732
      %v2844 = vpop.f32.mrf.mxu0
      %v2845 = vadd.f32 0.0, %v2844
      %2846 = vmatmul.f32.gmra.mxu0 %v2735
      %v2847 = vpop.f32.mrf.mxu0
      %v2848 = vadd.f32 0.0, %v2847
      %2849 = vmatmul.f32.gmra.mxu0 %v2738
      %v2850 = vpop.f32.mrf.mxu0
      %v2851 = vadd.f32 0.0, %v2850
      %2852 = vmatmul.f32.gmra.mxu0 %v2741
      %v2853 = vpop.f32.mrf.mxu0
      %v2854 = vadd.f32 0.0, %v2853
      %2855 = vmatmul.f32.gmra.mxu0 %v2744
      %v2856 = vpop.f32.mrf.mxu0
      %v2857 = vadd.f32 0.0, %v2856
      %2858 = vmatmul.f32.gmra.mxu0 %v2747
      %v2859 = vpop.f32.mrf.mxu0
      %v2860 = vadd.f32 0.0, %v2859
      %2861 = vmatmul.f32.gmra.mxu0 %v2750
      %v2862 = vpop.f32.mrf.mxu0
      %v2863 = vadd.f32 0.0, %v2862
      %2864 = vmatmul.f32.gmra.mxu0 %v2753
      %v2865 = vpop.f32.mrf.mxu0
      %v2866 = vadd.f32 0.0, %v2865
      %2867 = vmatmul.f32.gmra.mxu0 %v2756
      %v2868 = vpop.f32.mrf.mxu0
      %v2869 = vadd.f32 0.0, %v2868
      %2870 = vmatmul.f32.gmra.mxu0 %v2759
      %v2871 = vpop.f32.mrf.mxu0
      %v2872 = vadd.f32 0.0, %v2871
      %2873 = vmatmul.f32.gmra.mxu0 %v2762
      %v2874 = vpop.f32.mrf.mxu0
      %v2875 = vadd.f32 0.0, %v2874
      %2876 = vmatmul.f32.gmra.mxu0 %v2765
      %v2877 = vpop.f32.mrf.mxu0
      %v2878 = vadd.f32 0.0, %v2877
      %2879 = vmatmul.f32.gmra.mxu0 %v2768
      %v2880 = vpop.f32.mrf.mxu0
      %v2881 = vadd.f32 0.0, %v2880
      %2882 = vmatmul.f32.gmra.mxu0 %v2771
      %v2883 = vpop.f32.mrf.mxu0
      %v2884 = vadd.f32 0.0, %v2883
      %2885 = vmatmul.f32.gmra.mxu0 %v2774
      %v2886 = vpop.f32.mrf.mxu0
      %v2887 = vadd.f32 0.0, %v2886
      %2888 = vmatmul.f32.gmra.mxu0 %v2777
      %v2889 = vpop.f32.mrf.mxu0
      %v2890 = vadd.f32 0.0, %v2889
      %2891 = vmatmul.f32.gmra.mxu0 %v2780
      %v2892 = vpop.f32.mrf.mxu0
      %v2893 = vadd.f32 0.0, %v2892
      %2894 = vmatmul.f32.gmra.mxu0 %v2783
      %v2895 = vpop.f32.mrf.mxu0
      %v2896 = vadd.f32 0.0, %v2895
      %2897 = vmatmul.f32.gmra.mxu0 %v2786
      %v2898 = vpop.f32.mrf.mxu0
      %v2899 = vadd.f32 0.0, %v2898
      %2900 = vmatmul.f32.gmra.mxu0 %v2789
      %v2901 = vpop.f32.mrf.mxu0
      %v2902 = vadd.f32 0.0, %v2901
      %2903 = vmatmul.f32.gmra.mxu0 %v2792
      %v2904 = vpop.f32.mrf.mxu0
      %v2905 = vadd.f32 0.0, %v2904
      %2906 = vdwg.mxu0
      %v2907 = vmul.f32 %v2812, %v1347
      %v2908 = vmul.f32 %v2815, %v1349
      %v2909 = vmul.f32 %v2818, %v1352
      %v2910 = vmul.f32 %v2821, %v1354
      %v2911 = vmul.f32 %v2824, %v1357
      %v2912 = vmul.f32 %v2827, %v1359
      %v2913 = vmul.f32 %v2830, %v1362
      %v2914 = vmul.f32 %v2833, %v1364
      %v2915 = vmul.f32 %v2836, %v1347
      %v2916 = vmul.f32 %v2839, %v1349
      %v2917 = vmul.f32 %v2842, %v1352
      %v2918 = vmul.f32 %v2845, %v1354
      %v2919 = vmul.f32 %v2848, %v1357
      %v2920 = vmul.f32 %v2851, %v1359
      %v2921 = vmul.f32 %v2854, %v1362
      %v2922 = vmul.f32 %v2857, %v1364
      %v2923 = vmul.f32 %v2860, %v1347
      %v2924 = vmul.f32 %v2863, %v1349
      %v2925 = vmul.f32 %v2866, %v1352
      %v2926 = vmul.f32 %v2869, %v1354
      %v2927 = vmul.f32 %v2872, %v1357
      %v2928 = vmul.f32 %v2875, %v1359
      %v2929 = vmul.f32 %v2878, %v1362
      %v2930 = vmul.f32 %v2881, %v1364
      %v2931 = vmul.f32 %v2884, %v1347
      %v2932 = vmul.f32 %v2887, %v1349
      %v2933 = vmul.f32 %v2890, %v1352
      %v2934 = vmul.f32 %v2893, %v1354
      %v2935 = vmul.f32 %v2896, %v1357
      %v2936 = vmul.f32 %v2899, %v1359
      %v2937 = vmul.f32 %v2902, %v1362
      %v2938 = vmul.f32 %v2905, %v1364
      %v2939 = vmul.f32 %v2638, %v2659
      %v2940 = vmul.f32 %v2640, %v2660
      %v2942 = vsel %vm2663, %v2939, 0
      %v2945 = vsel %vm2663, %v2940, 0
      %2947 = vmatpush.msra.mxu0 0.0
      %2948 = vmatpush.msra.mxu0 0.0
      %2949 = vmatpush.msra.mxu0 0.0
      %2950 = vmatpush.msra.mxu0 0.0
      %2951 = vmatpush.msra.mxu0 0.0
      %2952 = vmatpush.msra.mxu0 0.0
      %2953 = vmatpush.msra.mxu0 0.0
      %2954 = vmatpush.msra.mxu0 0.0
      %2955 = vmatpush.msra.mxu0 0.0
      %2956 = vmatpush.msra.mxu0 0.0
      %2957 = vmatpush.msra.mxu0 0.0
      %2958 = vmatpush.msra.mxu0 0.0
      %2959 = vmatpush.msra.mxu0 0.0
      %2960 = vmatpush.msra.mxu0 0.0
      %2961 = vmatpush.msra.mxu0 0.0
      %2962 = vmatpush.msra.mxu0 %v2672
      %2963 = vmatmul.f32.gmra.mxu0 %v2942
      %v2964 = vpop.f32.mrf.mxu0
      %v2965 = vadd.f32 0.0, %v2964
      %2966 = vmatmul.f32.gmra.mxu0 %v2945
      %v2967 = vpop.f32.mrf.mxu0
      %v2968 = vadd.f32 0.0, %v2967
      %2969 = vdwg.mxu0
      %2970 = vmatpush.msra.mxu0 0.0
      %2971 = vmatpush.msra.mxu0 0.0
      %2972 = vmatpush.msra.mxu0 0.0
      %2973 = vmatpush.msra.mxu0 0.0
      %2974 = vmatpush.msra.mxu0 0.0
      %2975 = vmatpush.msra.mxu0 0.0
      %2976 = vmatpush.msra.mxu0 0.0
      %2977 = vmatpush.msra.mxu0 0.0
      %2978 = vmatpush.msra.mxu0 0.0
      %2979 = vmatpush.msra.mxu0 0.0
      %2980 = vmatpush.msra.mxu0 0.0
      %2981 = vmatpush.msra.mxu0 0.0
      %2982 = vmatpush.msra.mxu0 0.0
      %2983 = vmatpush.msra.mxu0 0.0
      %2984 = vmatpush.msra.mxu0 %v2968
      %2985 = vmatpush.msra.mxu0 %v2965
      %2986 = vmatmul.f32.gmra.mxu0 %v2699
      %v2987 = vpop.f32.mrf.mxu0
      %v2988 = vadd.f32 0.0, %v2987
      %2989 = vmatmul.f32.gmra.mxu0 %v2702
      %v2990 = vpop.f32.mrf.mxu0
      %v2991 = vadd.f32 0.0, %v2990
      %2992 = vmatmul.f32.gmra.mxu0 %v2705
      %v2993 = vpop.f32.mrf.mxu0
      %v2994 = vadd.f32 0.0, %v2993
      %2995 = vmatmul.f32.gmra.mxu0 %v2708
      %v2996 = vpop.f32.mrf.mxu0
      %v2997 = vadd.f32 0.0, %v2996
      %2998 = vmatmul.f32.gmra.mxu0 %v2711
      %v2999 = vpop.f32.mrf.mxu0
      %v3000 = vadd.f32 0.0, %v2999
      %3001 = vmatmul.f32.gmra.mxu0 %v2714
      %v3002 = vpop.f32.mrf.mxu0
      %v3003 = vadd.f32 0.0, %v3002
      %3004 = vmatmul.f32.gmra.mxu0 %v2717
      %v3005 = vpop.f32.mrf.mxu0
      %v3006 = vadd.f32 0.0, %v3005
      %3007 = vmatmul.f32.gmra.mxu0 %v2720
      %v3008 = vpop.f32.mrf.mxu0
      %v3009 = vadd.f32 0.0, %v3008
      %3010 = vmatmul.f32.gmra.mxu0 %v2723
      %v3011 = vpop.f32.mrf.mxu0
      %v3012 = vadd.f32 0.0, %v3011
      %3013 = vmatmul.f32.gmra.mxu0 %v2726
      %v3014 = vpop.f32.mrf.mxu0
      %v3015 = vadd.f32 0.0, %v3014
      %3016 = vmatmul.f32.gmra.mxu0 %v2729
      %v3017 = vpop.f32.mrf.mxu0
      %v3018 = vadd.f32 0.0, %v3017
      %3019 = vmatmul.f32.gmra.mxu0 %v2732
      %v3020 = vpop.f32.mrf.mxu0
      %v3021 = vadd.f32 0.0, %v3020
      %3022 = vmatmul.f32.gmra.mxu0 %v2735
      %v3023 = vpop.f32.mrf.mxu0
      %v3024 = vadd.f32 0.0, %v3023
      %3025 = vmatmul.f32.gmra.mxu0 %v2738
      %v3026 = vpop.f32.mrf.mxu0
      %v3027 = vadd.f32 0.0, %v3026
      %3028 = vmatmul.f32.gmra.mxu0 %v2741
      %v3029 = vpop.f32.mrf.mxu0
      %v3030 = vadd.f32 0.0, %v3029
      %3031 = vmatmul.f32.gmra.mxu0 %v2744
      %v3032 = vpop.f32.mrf.mxu0
      %v3033 = vadd.f32 0.0, %v3032
      %3034 = vmatmul.f32.gmra.mxu0 %v2747
      %v3035 = vpop.f32.mrf.mxu0
      %v3036 = vadd.f32 0.0, %v3035
      %3037 = vmatmul.f32.gmra.mxu0 %v2750
      %v3038 = vpop.f32.mrf.mxu0
      %v3039 = vadd.f32 0.0, %v3038
      %3040 = vmatmul.f32.gmra.mxu0 %v2753
      %v3041 = vpop.f32.mrf.mxu0
      %v3042 = vadd.f32 0.0, %v3041
      %3043 = vmatmul.f32.gmra.mxu0 %v2756
      %v3044 = vpop.f32.mrf.mxu0
      %v3045 = vadd.f32 0.0, %v3044
      %3046 = vmatmul.f32.gmra.mxu0 %v2759
      %v3047 = vpop.f32.mrf.mxu0
      %v3048 = vadd.f32 0.0, %v3047
      %3049 = vmatmul.f32.gmra.mxu0 %v2762
      %v3050 = vpop.f32.mrf.mxu0
      %v3051 = vadd.f32 0.0, %v3050
      %3052 = vmatmul.f32.gmra.mxu0 %v2765
      %v3053 = vpop.f32.mrf.mxu0
      %v3054 = vadd.f32 0.0, %v3053
      %3055 = vmatmul.f32.gmra.mxu0 %v2768
      %v3056 = vpop.f32.mrf.mxu0
      %v3057 = vadd.f32 0.0, %v3056
      %3058 = vmatmul.f32.gmra.mxu0 %v2771
      %v3059 = vpop.f32.mrf.mxu0
      %v3060 = vadd.f32 0.0, %v3059
      %3061 = vmatmul.f32.gmra.mxu0 %v2774
      %v3062 = vpop.f32.mrf.mxu0
      %v3063 = vadd.f32 0.0, %v3062
      %3064 = vmatmul.f32.gmra.mxu0 %v2777
      %v3065 = vpop.f32.mrf.mxu0
      %v3066 = vadd.f32 0.0, %v3065
      %3067 = vmatmul.f32.gmra.mxu0 %v2780
      %v3068 = vpop.f32.mrf.mxu0
      %v3069 = vadd.f32 0.0, %v3068
      %3070 = vmatmul.f32.gmra.mxu0 %v2783
      %v3071 = vpop.f32.mrf.mxu0
      %v3072 = vadd.f32 0.0, %v3071
      %3073 = vmatmul.f32.gmra.mxu0 %v2786
      %v3074 = vpop.f32.mrf.mxu0
      %v3075 = vadd.f32 0.0, %v3074
      %3076 = vmatmul.f32.gmra.mxu0 %v2789
      %v3077 = vpop.f32.mrf.mxu0
      %v3078 = vadd.f32 0.0, %v3077
      %3079 = vmatmul.f32.gmra.mxu0 %v2792
      %v3080 = vpop.f32.mrf.mxu0
      %v3081 = vadd.f32 0.0, %v3080
      %3082 = vdwg.mxu0
      %v3083 = vmul.f32 %v2988, %v1367
      %v3084 = vmul.f32 %v2991, %v1369
      %v3085 = vmul.f32 %v2994, %v1372
      %v3086 = vmul.f32 %v2997, %v1374
      %v3087 = vmul.f32 %v3000, %v1377
      %v3088 = vmul.f32 %v3003, %v1379
      %v3089 = vmul.f32 %v3006, %v1382
      %v3090 = vmul.f32 %v3009, %v1384
      %v3091 = vmul.f32 %v3012, %v1367
      %v3092 = vmul.f32 %v3015, %v1369
      %v3093 = vmul.f32 %v3018, %v1372
      %v3094 = vmul.f32 %v3021, %v1374
      %v3095 = vmul.f32 %v3024, %v1377
      %v3096 = vmul.f32 %v3027, %v1379
      %v3097 = vmul.f32 %v3030, %v1382
      %v3098 = vmul.f32 %v3033, %v1384
      %v3099 = vmul.f32 %v3036, %v1367
      %v3100 = vmul.f32 %v3039, %v1369
      %v3101 = vmul.f32 %v3042, %v1372
      %v3102 = vmul.f32 %v3045, %v1374
      %v3103 = vmul.f32 %v3048, %v1377
      %v3104 = vmul.f32 %v3051, %v1379
      %v3105 = vmul.f32 %v3054, %v1382
      %v3106 = vmul.f32 %v3057, %v1384
      %v3107 = vmul.f32 %v3060, %v1367
      %v3108 = vmul.f32 %v3063, %v1369
      %v3109 = vmul.f32 %v3066, %v1372
      %v3110 = vmul.f32 %v3069, %v1374
      %v3111 = vmul.f32 %v3072, %v1377
      %v3112 = vmul.f32 %v3075, %v1379
      %v3113 = vmul.f32 %v3078, %v1382
      %v3114 = vmul.f32 %v3081, %v1384
      %v3115 = vadd.f32 %v2907, %v3083
      %v3116 = vadd.f32 %v2908, %v3084
      %v3117 = vadd.f32 %v2909, %v3085
      %v3118 = vadd.f32 %v2910, %v3086
      %v3119 = vadd.f32 %v2911, %v3087
      %v3120 = vadd.f32 %v2912, %v3088
      %v3121 = vadd.f32 %v2913, %v3089
      %v3122 = vadd.f32 %v2914, %v3090
      %v3123 = vadd.f32 %v2915, %v3091
      %v3124 = vadd.f32 %v2916, %v3092
      %v3125 = vadd.f32 %v2917, %v3093
      %v3126 = vadd.f32 %v2918, %v3094
      %v3127 = vadd.f32 %v2919, %v3095
      %v3128 = vadd.f32 %v2920, %v3096
      %v3129 = vadd.f32 %v2921, %v3097
      %v3130 = vadd.f32 %v2922, %v3098
      %v3131 = vadd.f32 %v2923, %v3099
      %v3132 = vadd.f32 %v2924, %v3100
      %v3133 = vadd.f32 %v2925, %v3101
      %v3134 = vadd.f32 %v2926, %v3102
      %v3135 = vadd.f32 %v2927, %v3103
      %v3136 = vadd.f32 %v2928, %v3104
      %v3137 = vadd.f32 %v2929, %v3105
      %v3138 = vadd.f32 %v2930, %v3106
      %v3139 = vadd.f32 %v2931, %v3107
      %v3140 = vadd.f32 %v2932, %v3108
      %v3141 = vadd.f32 %v2933, %v3109
      %v3142 = vadd.f32 %v2934, %v3110
      %v3143 = vadd.f32 %v2935, %v3111
      %v3144 = vadd.f32 %v2936, %v3112
      %v3145 = vadd.f32 %v2937, %v3113
      %v3146 = vadd.f32 %v2938, %v3114
      %v3147 = vmul.f32 %v2644, %v2659
      %v3148 = vmul.f32 %v2646, %v2660
      %v3150 = vsel %vm2663, %v3147, 0
      %v3153 = vsel %vm2663, %v3148, 0
      %3155 = vmatpush.msra.mxu0 0.0
      %3156 = vmatpush.msra.mxu0 0.0
      %3157 = vmatpush.msra.mxu0 0.0
      %3158 = vmatpush.msra.mxu0 0.0
      %3159 = vmatpush.msra.mxu0 0.0
      %3160 = vmatpush.msra.mxu0 0.0
      %3161 = vmatpush.msra.mxu0 0.0
      %3162 = vmatpush.msra.mxu0 0.0
      %3163 = vmatpush.msra.mxu0 0.0
      %3164 = vmatpush.msra.mxu0 0.0
      %3165 = vmatpush.msra.mxu0 0.0
      %3166 = vmatpush.msra.mxu0 0.0
      %3167 = vmatpush.msra.mxu0 0.0
      %3168 = vmatpush.msra.mxu0 0.0
      %3169 = vmatpush.msra.mxu0 0.0
      %3170 = vmatpush.msra.mxu0 %v2672
      %3171 = vmatmul.f32.gmra.mxu0 %v3150
      %v3172 = vpop.f32.mrf.mxu0
      %v3173 = vadd.f32 0.0, %v3172
      %3174 = vmatmul.f32.gmra.mxu0 %v3153
      %v3175 = vpop.f32.mrf.mxu0
      %v3176 = vadd.f32 0.0, %v3175
      %3177 = vdwg.mxu0
      %3178 = vmatpush.msra.mxu0 0.0
      %3179 = vmatpush.msra.mxu0 0.0
      %3180 = vmatpush.msra.mxu0 0.0
      %3181 = vmatpush.msra.mxu0 0.0
      %3182 = vmatpush.msra.mxu0 0.0
      %3183 = vmatpush.msra.mxu0 0.0
      %3184 = vmatpush.msra.mxu0 0.0
      %3185 = vmatpush.msra.mxu0 0.0
      %3186 = vmatpush.msra.mxu0 0.0
      %3187 = vmatpush.msra.mxu0 0.0
      %3188 = vmatpush.msra.mxu0 0.0
      %3189 = vmatpush.msra.mxu0 0.0
      %3190 = vmatpush.msra.mxu0 0.0
      %3191 = vmatpush.msra.mxu0 0.0
      %3192 = vmatpush.msra.mxu0 %v3176
      %3193 = vmatpush.msra.mxu0 %v3173
      %3194 = vmatmul.f32.gmra.mxu0 %v2699
      %v3195 = vpop.f32.mrf.mxu0
      %v3196 = vadd.f32 0.0, %v3195
      %3197 = vmatmul.f32.gmra.mxu0 %v2702
      %v3198 = vpop.f32.mrf.mxu0
      %v3199 = vadd.f32 0.0, %v3198
      %3200 = vmatmul.f32.gmra.mxu0 %v2705
      %v3201 = vpop.f32.mrf.mxu0
      %v3202 = vadd.f32 0.0, %v3201
      %3203 = vmatmul.f32.gmra.mxu0 %v2708
      %v3204 = vpop.f32.mrf.mxu0
      %v3205 = vadd.f32 0.0, %v3204
      %3206 = vmatmul.f32.gmra.mxu0 %v2711
      %v3207 = vpop.f32.mrf.mxu0
      %v3208 = vadd.f32 0.0, %v3207
      %3209 = vmatmul.f32.gmra.mxu0 %v2714
      %v3210 = vpop.f32.mrf.mxu0
      %v3211 = vadd.f32 0.0, %v3210
      %3212 = vmatmul.f32.gmra.mxu0 %v2717
      %v3213 = vpop.f32.mrf.mxu0
      %v3214 = vadd.f32 0.0, %v3213
      %3215 = vmatmul.f32.gmra.mxu0 %v2720
      %v3216 = vpop.f32.mrf.mxu0
      %v3217 = vadd.f32 0.0, %v3216
      %3218 = vmatmul.f32.gmra.mxu0 %v2723
      %v3219 = vpop.f32.mrf.mxu0
      %v3220 = vadd.f32 0.0, %v3219
      %3221 = vmatmul.f32.gmra.mxu0 %v2726
      %v3222 = vpop.f32.mrf.mxu0
      %v3223 = vadd.f32 0.0, %v3222
      %3224 = vmatmul.f32.gmra.mxu0 %v2729
      %v3225 = vpop.f32.mrf.mxu0
      %v3226 = vadd.f32 0.0, %v3225
      %3227 = vmatmul.f32.gmra.mxu0 %v2732
      %v3228 = vpop.f32.mrf.mxu0
      %v3229 = vadd.f32 0.0, %v3228
      %3230 = vmatmul.f32.gmra.mxu0 %v2735
      %v3231 = vpop.f32.mrf.mxu0
      %v3232 = vadd.f32 0.0, %v3231
      %3233 = vmatmul.f32.gmra.mxu0 %v2738
      %v3234 = vpop.f32.mrf.mxu0
      %v3235 = vadd.f32 0.0, %v3234
      %3236 = vmatmul.f32.gmra.mxu0 %v2741
      %v3237 = vpop.f32.mrf.mxu0
      %v3238 = vadd.f32 0.0, %v3237
      %3239 = vmatmul.f32.gmra.mxu0 %v2744
      %v3240 = vpop.f32.mrf.mxu0
      %v3241 = vadd.f32 0.0, %v3240
      %3242 = vmatmul.f32.gmra.mxu0 %v2747
      %v3243 = vpop.f32.mrf.mxu0
      %v3244 = vadd.f32 0.0, %v3243
      %3245 = vmatmul.f32.gmra.mxu0 %v2750
      %v3246 = vpop.f32.mrf.mxu0
      %v3247 = vadd.f32 0.0, %v3246
      %3248 = vmatmul.f32.gmra.mxu0 %v2753
      %v3249 = vpop.f32.mrf.mxu0
      %v3250 = vadd.f32 0.0, %v3249
      %3251 = vmatmul.f32.gmra.mxu0 %v2756
      %v3252 = vpop.f32.mrf.mxu0
      %v3253 = vadd.f32 0.0, %v3252
      %3254 = vmatmul.f32.gmra.mxu0 %v2759
      %v3255 = vpop.f32.mrf.mxu0
      %v3256 = vadd.f32 0.0, %v3255
      %3257 = vmatmul.f32.gmra.mxu0 %v2762
      %v3258 = vpop.f32.mrf.mxu0
      %v3259 = vadd.f32 0.0, %v3258
      %3260 = vmatmul.f32.gmra.mxu0 %v2765
      %v3261 = vpop.f32.mrf.mxu0
      %v3262 = vadd.f32 0.0, %v3261
      %3263 = vmatmul.f32.gmra.mxu0 %v2768
      %v3264 = vpop.f32.mrf.mxu0
      %v3265 = vadd.f32 0.0, %v3264
      %3266 = vmatmul.f32.gmra.mxu0 %v2771
      %v3267 = vpop.f32.mrf.mxu0
      %v3268 = vadd.f32 0.0, %v3267
      %3269 = vmatmul.f32.gmra.mxu0 %v2774
      %v3270 = vpop.f32.mrf.mxu0
      %v3271 = vadd.f32 0.0, %v3270
      %3272 = vmatmul.f32.gmra.mxu0 %v2777
      %v3273 = vpop.f32.mrf.mxu0
      %v3274 = vadd.f32 0.0, %v3273
      %3275 = vmatmul.f32.gmra.mxu0 %v2780
      %v3276 = vpop.f32.mrf.mxu0
      %v3277 = vadd.f32 0.0, %v3276
      %3278 = vmatmul.f32.gmra.mxu0 %v2783
      %v3279 = vpop.f32.mrf.mxu0
      %v3280 = vadd.f32 0.0, %v3279
      %3281 = vmatmul.f32.gmra.mxu0 %v2786
      %v3282 = vpop.f32.mrf.mxu0
      %v3283 = vadd.f32 0.0, %v3282
      %3284 = vmatmul.f32.gmra.mxu0 %v2789
      %v3285 = vpop.f32.mrf.mxu0
      %v3286 = vadd.f32 0.0, %v3285
      %3287 = vmatmul.f32.gmra.mxu0 %v2792
      %v3288 = vpop.f32.mrf.mxu0
      %v3289 = vadd.f32 0.0, %v3288
      %3290 = vdwg.mxu0
      %v3291 = vmul.f32 %v3196, %v1387
      %v3292 = vmul.f32 %v3199, %v1389
      %v3293 = vmul.f32 %v3202, %v1392
      %v3294 = vmul.f32 %v3205, %v1394
      %v3295 = vmul.f32 %v3208, %v1397
      %v3296 = vmul.f32 %v3211, %v1399
      %v3297 = vmul.f32 %v3214, %v1402
      %v3298 = vmul.f32 %v3217, %v1404
      %v3299 = vmul.f32 %v3220, %v1387
      %v3300 = vmul.f32 %v3223, %v1389
      %v3301 = vmul.f32 %v3226, %v1392
      %v3302 = vmul.f32 %v3229, %v1394
      %v3303 = vmul.f32 %v3232, %v1397
      %v3304 = vmul.f32 %v3235, %v1399
      %v3305 = vmul.f32 %v3238, %v1402
      %v3306 = vmul.f32 %v3241, %v1404
      %v3307 = vmul.f32 %v3244, %v1387
      %v3308 = vmul.f32 %v3247, %v1389
      %v3309 = vmul.f32 %v3250, %v1392
      %v3310 = vmul.f32 %v3253, %v1394
      %v3311 = vmul.f32 %v3256, %v1397
      %v3312 = vmul.f32 %v3259, %v1399
      %v3313 = vmul.f32 %v3262, %v1402
      %v3314 = vmul.f32 %v3265, %v1404
      %v3315 = vmul.f32 %v3268, %v1387
      %v3316 = vmul.f32 %v3271, %v1389
      %v3317 = vmul.f32 %v3274, %v1392
      %v3318 = vmul.f32 %v3277, %v1394
      %v3319 = vmul.f32 %v3280, %v1397
      %v3320 = vmul.f32 %v3283, %v1399
      %v3321 = vmul.f32 %v3286, %v1402
      %v3322 = vmul.f32 %v3289, %v1404
      %v3323 = vadd.f32 %v3115, %v3291
      %v3324 = vadd.f32 %v3116, %v3292
      %v3325 = vadd.f32 %v3117, %v3293
      %v3326 = vadd.f32 %v3118, %v3294
      %v3327 = vadd.f32 %v3119, %v3295
      %v3328 = vadd.f32 %v3120, %v3296
      %v3329 = vadd.f32 %v3121, %v3297
      %v3330 = vadd.f32 %v3122, %v3298
      %v3331 = vadd.f32 %v3123, %v3299
      %v3332 = vadd.f32 %v3124, %v3300
      %v3333 = vadd.f32 %v3125, %v3301
      %v3334 = vadd.f32 %v3126, %v3302
      %v3335 = vadd.f32 %v3127, %v3303
      %v3336 = vadd.f32 %v3128, %v3304
      %v3337 = vadd.f32 %v3129, %v3305
      %v3338 = vadd.f32 %v3130, %v3306
      %v3339 = vadd.f32 %v3131, %v3307
      %v3340 = vadd.f32 %v3132, %v3308
      %v3341 = vadd.f32 %v3133, %v3309
      %v3342 = vadd.f32 %v3134, %v3310
      %v3343 = vadd.f32 %v3135, %v3311
      %v3344 = vadd.f32 %v3136, %v3312
      %v3345 = vadd.f32 %v3137, %v3313
      %v3346 = vadd.f32 %v3138, %v3314
      %v3347 = vadd.f32 %v3139, %v3315
      %v3348 = vadd.f32 %v3140, %v3316
      %v3349 = vadd.f32 %v3141, %v3317
      %v3350 = vadd.f32 %v3142, %v3318
      %v3351 = vadd.f32 %v3143, %v3319
      %v3352 = vadd.f32 %v3144, %v3320
      %v3353 = vadd.f32 %v3145, %v3321
      %v3354 = vadd.f32 %v3146, %v3322
      %v3355 = vmul.f32 %v2650, %v2659
      %v3356 = vmul.f32 %v2652, %v2660
      %v3358 = vsel %vm2663, %v3355, 0
      %v3361 = vsel %vm2663, %v3356, 0
      %3363 = vmatpush.msra.mxu0 0.0
      %3364 = vmatpush.msra.mxu0 0.0
      %3365 = vmatpush.msra.mxu0 0.0
      %3366 = vmatpush.msra.mxu0 0.0
      %3367 = vmatpush.msra.mxu0 0.0
      %3368 = vmatpush.msra.mxu0 0.0
      %3369 = vmatpush.msra.mxu0 0.0
      %3370 = vmatpush.msra.mxu0 0.0
      %3371 = vmatpush.msra.mxu0 0.0
      %3372 = vmatpush.msra.mxu0 0.0
      %3373 = vmatpush.msra.mxu0 0.0
      %3374 = vmatpush.msra.mxu0 0.0
      %3375 = vmatpush.msra.mxu0 0.0
      %3376 = vmatpush.msra.mxu0 0.0
      %3377 = vmatpush.msra.mxu0 0.0
      %3378 = vmatpush.msra.mxu0 %v2672
      %3379 = vmatmul.f32.gmra.mxu0 %v3358
      %v3380 = vpop.f32.mrf.mxu0
      %v3381 = vadd.f32 0.0, %v3380
      %3382 = vmatmul.f32.gmra.mxu0 %v3361
      %v3383 = vpop.f32.mrf.mxu0
      %v3384 = vadd.f32 0.0, %v3383
      %3385 = vdwg.mxu0
      %3386 = vmatpush.msra.mxu0 0.0
      %3387 = vmatpush.msra.mxu0 0.0
      %3388 = vmatpush.msra.mxu0 0.0
      %3389 = vmatpush.msra.mxu0 0.0
      %3390 = vmatpush.msra.mxu0 0.0
      %3391 = vmatpush.msra.mxu0 0.0
      %3392 = vmatpush.msra.mxu0 0.0
      %3393 = vmatpush.msra.mxu0 0.0
      %3394 = vmatpush.msra.mxu0 0.0
      %3395 = vmatpush.msra.mxu0 0.0
      %3396 = vmatpush.msra.mxu0 0.0
      %3397 = vmatpush.msra.mxu0 0.0
      %3398 = vmatpush.msra.mxu0 0.0
      %3399 = vmatpush.msra.mxu0 0.0
      %3400 = vmatpush.msra.mxu0 %v3384
      %3401 = vmatpush.msra.mxu0 %v3381
      %3402 = vmatmul.f32.gmra.mxu0 %v2699
      %v3403 = vpop.f32.mrf.mxu0
      %v3404 = vadd.f32 0.0, %v3403
      %3405 = vmatmul.f32.gmra.mxu0 %v2702
      %v3406 = vpop.f32.mrf.mxu0
      %v3407 = vadd.f32 0.0, %v3406
      %3408 = vmatmul.f32.gmra.mxu0 %v2705
      %v3409 = vpop.f32.mrf.mxu0
      %v3410 = vadd.f32 0.0, %v3409
      %3411 = vmatmul.f32.gmra.mxu0 %v2708
      %v3412 = vpop.f32.mrf.mxu0
      %v3413 = vadd.f32 0.0, %v3412
      %3414 = vmatmul.f32.gmra.mxu0 %v2711
      %v3415 = vpop.f32.mrf.mxu0
      %v3416 = vadd.f32 0.0, %v3415
      %3417 = vmatmul.f32.gmra.mxu0 %v2714
      %v3418 = vpop.f32.mrf.mxu0
      %v3419 = vadd.f32 0.0, %v3418
      %3420 = vmatmul.f32.gmra.mxu0 %v2717
      %v3421 = vpop.f32.mrf.mxu0
      %v3422 = vadd.f32 0.0, %v3421
      %3423 = vmatmul.f32.gmra.mxu0 %v2720
      %v3424 = vpop.f32.mrf.mxu0
      %v3425 = vadd.f32 0.0, %v3424
      %3426 = vmatmul.f32.gmra.mxu0 %v2723
      %v3427 = vpop.f32.mrf.mxu0
      %v3428 = vadd.f32 0.0, %v3427
      %3429 = vmatmul.f32.gmra.mxu0 %v2726
      %v3430 = vpop.f32.mrf.mxu0
      %v3431 = vadd.f32 0.0, %v3430
      %3432 = vmatmul.f32.gmra.mxu0 %v2729
      %v3433 = vpop.f32.mrf.mxu0
      %v3434 = vadd.f32 0.0, %v3433
      %3435 = vmatmul.f32.gmra.mxu0 %v2732
      %v3436 = vpop.f32.mrf.mxu0
      %v3437 = vadd.f32 0.0, %v3436
      %3438 = vmatmul.f32.gmra.mxu0 %v2735
      %v3439 = vpop.f32.mrf.mxu0
      %v3440 = vadd.f32 0.0, %v3439
      %3441 = vmatmul.f32.gmra.mxu0 %v2738
      %v3442 = vpop.f32.mrf.mxu0
      %v3443 = vadd.f32 0.0, %v3442
      %3444 = vmatmul.f32.gmra.mxu0 %v2741
      %v3445 = vpop.f32.mrf.mxu0
      %v3446 = vadd.f32 0.0, %v3445
      %3447 = vmatmul.f32.gmra.mxu0 %v2744
      %v3448 = vpop.f32.mrf.mxu0
      %v3449 = vadd.f32 0.0, %v3448
      %3450 = vmatmul.f32.gmra.mxu0 %v2747
      %v3451 = vpop.f32.mrf.mxu0
      %v3452 = vadd.f32 0.0, %v3451
      %3453 = vmatmul.f32.gmra.mxu0 %v2750
      %v3454 = vpop.f32.mrf.mxu0
      %v3455 = vadd.f32 0.0, %v3454
      %3456 = vmatmul.f32.gmra.mxu0 %v2753
      %v3457 = vpop.f32.mrf.mxu0
      %v3458 = vadd.f32 0.0, %v3457
      %3459 = vmatmul.f32.gmra.mxu0 %v2756
      %v3460 = vpop.f32.mrf.mxu0
      %v3461 = vadd.f32 0.0, %v3460
      %3462 = vmatmul.f32.gmra.mxu0 %v2759
      %v3463 = vpop.f32.mrf.mxu0
      %v3464 = vadd.f32 0.0, %v3463
      %3465 = vmatmul.f32.gmra.mxu0 %v2762
      %v3466 = vpop.f32.mrf.mxu0
      %v3467 = vadd.f32 0.0, %v3466
      %3468 = vmatmul.f32.gmra.mxu0 %v2765
      %v3469 = vpop.f32.mrf.mxu0
      %v3470 = vadd.f32 0.0, %v3469
      %3471 = vmatmul.f32.gmra.mxu0 %v2768
      %v3472 = vpop.f32.mrf.mxu0
      %v3473 = vadd.f32 0.0, %v3472
      %3474 = vmatmul.f32.gmra.mxu0 %v2771
      %v3475 = vpop.f32.mrf.mxu0
      %v3476 = vadd.f32 0.0, %v3475
      %3477 = vmatmul.f32.gmra.mxu0 %v2774
      %v3478 = vpop.f32.mrf.mxu0
      %v3479 = vadd.f32 0.0, %v3478
      %3480 = vmatmul.f32.gmra.mxu0 %v2777
      %v3481 = vpop.f32.mrf.mxu0
      %v3482 = vadd.f32 0.0, %v3481
      %3483 = vmatmul.f32.gmra.mxu0 %v2780
      %v3484 = vpop.f32.mrf.mxu0
      %v3485 = vadd.f32 0.0, %v3484
      %3486 = vmatmul.f32.gmra.mxu0 %v2783
      %v3487 = vpop.f32.mrf.mxu0
      %v3488 = vadd.f32 0.0, %v3487
      %3489 = vmatmul.f32.gmra.mxu0 %v2786
      %v3490 = vpop.f32.mrf.mxu0
      %v3491 = vadd.f32 0.0, %v3490
      %3492 = vmatmul.f32.gmra.mxu0 %v2789
      %v3493 = vpop.f32.mrf.mxu0
      %v3494 = vadd.f32 0.0, %v3493
      %3495 = vmatmul.f32.gmra.mxu0 %v2792
      %v3496 = vpop.f32.mrf.mxu0
      %v3497 = vadd.f32 0.0, %v3496
      %3498 = vdwg.mxu0
      %v3499 = vmul.f32 %v3404, %v1407
      %v3500 = vmul.f32 %v3407, %v1409
      %v3501 = vmul.f32 %v3410, %v1412
      %v3502 = vmul.f32 %v3413, %v1414
      %v3503 = vmul.f32 %v3416, %v1417
      %v3504 = vmul.f32 %v3419, %v1419
      %v3505 = vmul.f32 %v3422, %v1422
      %v3506 = vmul.f32 %v3425, %v1424
      %v3507 = vmul.f32 %v3428, %v1407
      %v3508 = vmul.f32 %v3431, %v1409
      %v3509 = vmul.f32 %v3434, %v1412
      %v3510 = vmul.f32 %v3437, %v1414
      %v3511 = vmul.f32 %v3440, %v1417
      %v3512 = vmul.f32 %v3443, %v1419
      %v3513 = vmul.f32 %v3446, %v1422
      %v3514 = vmul.f32 %v3449, %v1424
      %v3515 = vmul.f32 %v3452, %v1407
      %v3516 = vmul.f32 %v3455, %v1409
      %v3517 = vmul.f32 %v3458, %v1412
      %v3518 = vmul.f32 %v3461, %v1414
      %v3519 = vmul.f32 %v3464, %v1417
      %v3520 = vmul.f32 %v3467, %v1419
      %v3521 = vmul.f32 %v3470, %v1422
      %v3522 = vmul.f32 %v3473, %v1424
      %v3523 = vmul.f32 %v3476, %v1407
      %v3524 = vmul.f32 %v3479, %v1409
      %v3525 = vmul.f32 %v3482, %v1412
      %v3526 = vmul.f32 %v3485, %v1414
      %v3527 = vmul.f32 %v3488, %v1417
      %v3528 = vmul.f32 %v3491, %v1419
      %v3529 = vmul.f32 %v3494, %v1422
      %v3530 = vmul.f32 %v3497, %v1424
      %v3531 = vadd.f32 %v3323, %v3499
      %v3532 = vadd.f32 %v3324, %v3500
      %v3533 = vadd.f32 %v3325, %v3501
      %v3534 = vadd.f32 %v3326, %v3502
      %v3535 = vadd.f32 %v3327, %v3503
      %v3536 = vadd.f32 %v3328, %v3504
      %v3537 = vadd.f32 %v3329, %v3505
      %v3538 = vadd.f32 %v3330, %v3506
      %v3539 = vadd.f32 %v3331, %v3507
      %v3540 = vadd.f32 %v3332, %v3508
      %v3541 = vadd.f32 %v3333, %v3509
      %v3542 = vadd.f32 %v3334, %v3510
      %v3543 = vadd.f32 %v3335, %v3511
      %v3544 = vadd.f32 %v3336, %v3512
      %v3545 = vadd.f32 %v3337, %v3513
      %v3546 = vadd.f32 %v3338, %v3514
      %v3547 = vadd.f32 %v3339, %v3515
      %v3548 = vadd.f32 %v3340, %v3516
      %v3549 = vadd.f32 %v3341, %v3517
      %v3550 = vadd.f32 %v3342, %v3518
      %v3551 = vadd.f32 %v3343, %v3519
      %v3552 = vadd.f32 %v3344, %v3520
      %v3553 = vadd.f32 %v3345, %v3521
      %v3554 = vadd.f32 %v3346, %v3522
      %v3555 = vadd.f32 %v3347, %v3523
      %v3556 = vadd.f32 %v3348, %v3524
      %v3557 = vadd.f32 %v3349, %v3525
      %v3558 = vadd.f32 %v3350, %v3526
      %v3559 = vadd.f32 %v3351, %v3527
      %v3560 = vadd.f32 %v3352, %v3528
      %v3561 = vadd.f32 %v3353, %v3529
      %v3562 = vadd.f32 %v3354, %v3530
      %v3563 = vpack.c.bf16 %v3532, %v3531
      %v3564 = vpack.c.bf16 %v3534, %v3533
      %v3565 = vpack.c.bf16 %v3536, %v3535
      %v3566 = vpack.c.bf16 %v3538, %v3537
      %v3567 = vpack.c.bf16 %v3540, %v3539
      %v3568 = vpack.c.bf16 %v3542, %v3541
      %v3569 = vpack.c.bf16 %v3544, %v3543
      %v3570 = vpack.c.bf16 %v3546, %v3545
      %v3571 = vpack.c.bf16 %v3548, %v3547
      %v3572 = vpack.c.bf16 %v3550, %v3549
      %v3573 = vpack.c.bf16 %v3552, %v3551
      %v3574 = vpack.c.bf16 %v3554, %v3553
      %v3575 = vpack.c.bf16 %v3556, %v3555
      %v3576 = vpack.c.bf16 %v3558, %v3557
      %v3577 = vpack.c.bf16 %v3560, %v3559
      %v3578 = vpack.c.bf16 %v3562, %v3561
      %v3579 = vld [vmem:[%s11] sm:$0xf]
      %v3580 = vld [vmem:[%s11 + $0x4] sm:$0xf]
      %v3581 = vld [vmem:[%s11 + $0x8] sm:$0xf]
      %v3582 = vld [vmem:[%s11 + $0xc] sm:$0xf]
      %v3587 = vunpack.c.l.b16 %v3579
      %v3588 = vunpack.c.l.b16 %v3580
      %v3589 = vunpack.c.l.b16 %v3581
      %v3590 = vunpack.c.l.b16 %v3582
      %v3591 = vpack.c.b16 %v3588, %v3587
      %v3592 = vpack.c.b16 %v3590, %v3589
      %v3596 = vsel %vm615, %v3563, 0
      %v3599 = vsel %vm615, %v3564, 0
      %v3602 = vsel %vm615, %v3565, 0
      %v3605 = vsel %vm615, %v3566, 0
      %v3608 = vsel %vm615, %v3567, 0
      %v3611 = vsel %vm615, %v3568, 0
      %v3614 = vsel %vm615, %v3569, 0
      %v3617 = vsel %vm615, %v3570, 0
      %v3620 = vsel %vm615, %v3571, 0
      %v3623 = vsel %vm615, %v3572, 0
      %v3626 = vsel %vm615, %v3573, 0
      %v3629 = vsel %vm615, %v3574, 0
      %v3632 = vsel %vm615, %v3575, 0
      %v3635 = vsel %vm615, %v3576, 0
      %v3638 = vsel %vm615, %v3577, 0
      %v3641 = vsel %vm615, %v3578, 0
      %3643 = vmatpush.bf16.msra.mxu0 0
      %3644 = vmatpush.bf16.msra.mxu0 0
      %3645 = vmatpush.bf16.msra.mxu0 0
      %3646 = vmatpush.bf16.msra.mxu0 0
      %3647 = vmatpush.bf16.msra.mxu0 0
      %3648 = vmatpush.bf16.msra.mxu0 0
      %3649 = vmatpush.bf16.msra.mxu0 %v3592
      %3650 = vmatpush.bf16.msra.mxu0 %v3591
      %3651 = vmatmul.bf16.gmra.mxu0 %v3596
      %v3652 = vpop.f32.mrf.mxu0
      %v3653 = vadd.f32 %v580, %v3652
      %v3654 = vpop.f32.mrf.mxu0
      %v3655 = vadd.f32 %v581, %v3654
      %3656 = vmatmul.bf16.gmra.mxu0 %v3599
      %v3657 = vpop.f32.mrf.mxu0
      %v3658 = vadd.f32 %v582, %v3657
      %v3659 = vpop.f32.mrf.mxu0
      %v3660 = vadd.f32 %v583, %v3659
      %3661 = vmatmul.bf16.gmra.mxu0 %v3602
      %v3662 = vpop.f32.mrf.mxu0
      %v3663 = vadd.f32 %v584, %v3662
      %v3664 = vpop.f32.mrf.mxu0
      %v3665 = vadd.f32 %v585, %v3664
      %3666 = vmatmul.bf16.gmra.mxu0 %v3605
      %v3667 = vpop.f32.mrf.mxu0
      %v3668 = vadd.f32 %v586, %v3667
      %v3669 = vpop.f32.mrf.mxu0
      %v3670 = vadd.f32 %v587, %v3669
      %3671 = vmatmul.bf16.gmra.mxu0 %v3608
      %v3672 = vpop.f32.mrf.mxu0
      %v3673 = vadd.f32 %v588, %v3672
      %v3674 = vpop.f32.mrf.mxu0
      %v3675 = vadd.f32 %v589, %v3674
      %3676 = vmatmul.bf16.gmra.mxu0 %v3611
      %v3677 = vpop.f32.mrf.mxu0
      %v3678 = vadd.f32 %v590, %v3677
      %v3679 = vpop.f32.mrf.mxu0
      %v3680 = vadd.f32 %v591, %v3679
      %3681 = vmatmul.bf16.gmra.mxu0 %v3614
      %v3682 = vpop.f32.mrf.mxu0
      %v3683 = vadd.f32 %v592, %v3682
      %v3684 = vpop.f32.mrf.mxu0
      %v3685 = vadd.f32 %v593, %v3684
      %3686 = vmatmul.bf16.gmra.mxu0 %v3617
      %v3687 = vpop.f32.mrf.mxu0
      %v3688 = vadd.f32 %v594, %v3687
      %v3689 = vpop.f32.mrf.mxu0
      %v3690 = vadd.f32 %v595, %v3689
      %3691 = vmatmul.bf16.gmra.mxu0 %v3620
      %v3692 = vpop.f32.mrf.mxu0
      %v3693 = vadd.f32 %v596, %v3692
      %v3694 = vpop.f32.mrf.mxu0
      %v3695 = vadd.f32 %v597, %v3694
      %3696 = vmatmul.bf16.gmra.mxu0 %v3623
      %v3697 = vpop.f32.mrf.mxu0
      %v3698 = vadd.f32 %v598, %v3697
      %v3699 = vpop.f32.mrf.mxu0
      %v3700 = vadd.f32 %v599, %v3699
      %3701 = vmatmul.bf16.gmra.mxu0 %v3626
      %v3702 = vpop.f32.mrf.mxu0
      %v3703 = vadd.f32 %v600, %v3702
      %v3704 = vpop.f32.mrf.mxu0
      %v3705 = vadd.f32 %v601, %v3704
      %3706 = vmatmul.bf16.gmra.mxu0 %v3629
      %v3707 = vpop.f32.mrf.mxu0
      %v3708 = vadd.f32 %v602, %v3707
      %v3709 = vpop.f32.mrf.mxu0
      %v3710 = vadd.f32 %v603, %v3709
      %3711 = vmatmul.bf16.gmra.mxu0 %v3632
      %v3712 = vpop.f32.mrf.mxu0
      %v3713 = vadd.f32 %v604, %v3712
      %v3714 = vpop.f32.mrf.mxu0
      %v3715 = vadd.f32 %v605, %v3714
      %3716 = vmatmul.bf16.gmra.mxu0 %v3635
      %v3717 = vpop.f32.mrf.mxu0
      %v3718 = vadd.f32 %v606, %v3717
      %v3719 = vpop.f32.mrf.mxu0
      %v3720 = vadd.f32 %v607, %v3719
      %3721 = vmatmul.bf16.gmra.mxu0 %v3638
      %v3722 = vpop.f32.mrf.mxu0
      %v3723 = vadd.f32 %v608, %v3722
      %v3724 = vpop.f32.mrf.mxu0
      %v3725 = vadd.f32 %v609, %v3724
      %3726 = vmatmul.bf16.gmra.mxu0 %v3641
      %v3727 = vpop.f32.mrf.mxu0
      %v3728 = vadd.f32 %v610, %v3727
      %v3729 = vpop.f32.mrf.mxu0
      %v3730 = vadd.f32 %v611, %v3729
      %3731 = vdwg.mxu0
      %v3732 = vld [vmem:[%s12] sm:$0x1]
      %v3733 = vld [vmem:[%s13] sm:$0x1]
      %v3734 = vsel %vm615, %v3653, 0.0
      %v3735 = vsel %vm615, %v3655, 0.0
      %v3736 = vadd.f32 %v3734, %v3735
      %v3737 = vsel %vm615, %v3658, 0.0
      %v3738 = vadd.f32 %v3736, %v3737
      %v3739 = vsel %vm615, %v3660, 0.0
      %v3740 = vadd.f32 %v3738, %v3739
      %v3741 = vsel %vm615, %v3663, 0.0
      %v3742 = vadd.f32 %v3740, %v3741
      %v3743 = vsel %vm615, %v3665, 0.0
      %v3744 = vadd.f32 %v3742, %v3743
      %v3745 = vsel %vm615, %v3668, 0.0
      %v3746 = vadd.f32 %v3744, %v3745
      %v3747 = vsel %vm615, %v3670, 0.0
      %v3748 = vadd.f32 %v3746, %v3747
      %v3749 = vrot.slane %v3748, 4
      %v3750 = vadd.f32 %v3748, %v3749
      %v3751 = vrot.slane %v3750, 2
      %v3752 = vadd.f32 %v3750, %v3751
      %v3753 = vrot.slane %v3752, 1
      %v3754 = vadd.f32 %v3752, %v3753
      %v3755 = vsel %vm615, %v3673, 0.0
      %v3756 = vsel %vm615, %v3675, 0.0
      %v3757 = vadd.f32 %v3755, %v3756
      %v3758 = vsel %vm615, %v3678, 0.0
      %v3759 = vadd.f32 %v3757, %v3758
      %v3760 = vsel %vm615, %v3680, 0.0
      %v3761 = vadd.f32 %v3759, %v3760
      %v3762 = vsel %vm615, %v3683, 0.0
      %v3763 = vadd.f32 %v3761, %v3762
      %v3764 = vsel %vm615, %v3685, 0.0
      %v3765 = vadd.f32 %v3763, %v3764
      %v3766 = vsel %vm615, %v3688, 0.0
      %v3767 = vadd.f32 %v3765, %v3766
      %v3768 = vsel %vm615, %v3690, 0.0
      %v3769 = vadd.f32 %v3767, %v3768
      %v3770 = vrot.slane %v3769, 4
      %v3771 = vadd.f32 %v3769, %v3770
      %v3772 = vrot.slane %v3771, 2
      %v3773 = vadd.f32 %v3771, %v3772
      %v3774 = vrot.slane %v3773, 1
      %v3775 = vadd.f32 %v3773, %v3774
      %v3776 = vsel %vm615, %v3693, 0.0
      %v3777 = vsel %vm615, %v3695, 0.0
      %v3778 = vadd.f32 %v3776, %v3777
      %v3779 = vsel %vm615, %v3698, 0.0
      %v3780 = vadd.f32 %v3778, %v3779
      %v3781 = vsel %vm615, %v3700, 0.0
      %v3782 = vadd.f32 %v3780, %v3781
      %v3783 = vsel %vm615, %v3703, 0.0
      %v3784 = vadd.f32 %v3782, %v3783
      %v3785 = vsel %vm615, %v3705, 0.0
      %v3786 = vadd.f32 %v3784, %v3785
      %v3787 = vsel %vm615, %v3708, 0.0
      %v3788 = vadd.f32 %v3786, %v3787
      %v3789 = vsel %vm615, %v3710, 0.0
      %v3790 = vadd.f32 %v3788, %v3789
      %v3791 = vrot.slane %v3790, 4
      %v3792 = vadd.f32 %v3790, %v3791
      %v3793 = vrot.slane %v3792, 2
      %v3794 = vadd.f32 %v3792, %v3793
      %v3795 = vrot.slane %v3794, 1
      %v3796 = vadd.f32 %v3794, %v3795
      %v3797 = vsel %vm615, %v3713, 0.0
      %v3798 = vsel %vm615, %v3715, 0.0
      %v3799 = vadd.f32 %v3797, %v3798
      %v3800 = vsel %vm615, %v3718, 0.0
      %v3801 = vadd.f32 %v3799, %v3800
      %v3802 = vsel %vm615, %v3720, 0.0
      %v3803 = vadd.f32 %v3801, %v3802
      %v3804 = vsel %vm615, %v3723, 0.0
      %v3805 = vadd.f32 %v3803, %v3804
      %v3806 = vsel %vm615, %v3725, 0.0
      %v3807 = vadd.f32 %v3805, %v3806
      %v3808 = vsel %vm615, %v3728, 0.0
      %v3809 = vadd.f32 %v3807, %v3808
      %v3810 = vsel %vm615, %v3730, 0.0
      %v3811 = vadd.f32 %v3809, %v3810
      %v3812 = vrot.slane %v3811, 4
      %v3813 = vadd.f32 %v3811, %v3812
      %v3814 = vrot.slane %v3813, 2
      %v3815 = vadd.f32 %v3813, %v3814
      %v3816 = vrot.slane %v3815, 1
      %v3817 = vadd.f32 %v3815, %v3816
      %v3818 = vmul.f32 %v3653, %v3653
      %v3819 = vmul.f32 %v3655, %v3655
      %v3820 = vmul.f32 %v3658, %v3658
      %v3821 = vmul.f32 %v3660, %v3660
      %v3822 = vmul.f32 %v3663, %v3663
      %v3823 = vmul.f32 %v3665, %v3665
      %v3824 = vmul.f32 %v3668, %v3668
      %v3825 = vmul.f32 %v3670, %v3670
      %v3826 = vmul.f32 %v3673, %v3673
      %v3827 = vmul.f32 %v3675, %v3675
      %v3828 = vmul.f32 %v3678, %v3678
      %v3829 = vmul.f32 %v3680, %v3680
      %v3830 = vmul.f32 %v3683, %v3683
      %v3831 = vmul.f32 %v3685, %v3685
      %v3832 = vmul.f32 %v3688, %v3688
      %v3833 = vmul.f32 %v3690, %v3690
      %v3834 = vmul.f32 %v3693, %v3693
      %v3835 = vmul.f32 %v3695, %v3695
      %v3836 = vmul.f32 %v3698, %v3698
      %v3837 = vmul.f32 %v3700, %v3700
      %v3838 = vmul.f32 %v3703, %v3703
      %v3839 = vmul.f32 %v3705, %v3705
      %v3840 = vmul.f32 %v3708, %v3708
      %v3841 = vmul.f32 %v3710, %v3710
      %v3842 = vmul.f32 %v3713, %v3713
      %v3843 = vmul.f32 %v3715, %v3715
      %v3844 = vmul.f32 %v3718, %v3718
      %v3845 = vmul.f32 %v3720, %v3720
      %v3846 = vmul.f32 %v3723, %v3723
      %v3847 = vmul.f32 %v3725, %v3725
      %v3848 = vmul.f32 %v3728, %v3728
      %v3849 = vmul.f32 %v3730, %v3730
      %v3850 = vsel %vm615, %v3818, 0.0
      %v3851 = vsel %vm615, %v3819, 0.0
      %v3852 = vadd.f32 %v3850, %v3851
      %v3853 = vsel %vm615, %v3820, 0.0
      %v3854 = vadd.f32 %v3852, %v3853
      %v3855 = vsel %vm615, %v3821, 0.0
      %v3856 = vadd.f32 %v3854, %v3855
      %v3857 = vsel %vm615, %v3822, 0.0
      %v3858 = vadd.f32 %v3856, %v3857
      %v3859 = vsel %vm615, %v3823, 0.0
      %v3860 = vadd.f32 %v3858, %v3859
      %v3861 = vsel %vm615, %v3824, 0.0
      %v3862 = vadd.f32 %v3860, %v3861
      %v3863 = vsel %vm615, %v3825, 0.0
      %v3864 = vadd.f32 %v3862, %v3863
      %v3865 = vrot.slane %v3864, 4
      %v3866 = vadd.f32 %v3864, %v3865
      %v3867 = vrot.slane %v3866, 2
      %v3868 = vadd.f32 %v3866, %v3867
      %v3869 = vrot.slane %v3868, 1
      %v3870 = vadd.f32 %v3868, %v3869
      %v3871 = vsel %vm615, %v3826, 0.0
      %v3872 = vsel %vm615, %v3827, 0.0
      %v3873 = vadd.f32 %v3871, %v3872
      %v3874 = vsel %vm615, %v3828, 0.0
      %v3875 = vadd.f32 %v3873, %v3874
      %v3876 = vsel %vm615, %v3829, 0.0
      %v3877 = vadd.f32 %v3875, %v3876
      %v3878 = vsel %vm615, %v3830, 0.0
      %v3879 = vadd.f32 %v3877, %v3878
      %v3880 = vsel %vm615, %v3831, 0.0
      %v3881 = vadd.f32 %v3879, %v3880
      %v3882 = vsel %vm615, %v3832, 0.0
      %v3883 = vadd.f32 %v3881, %v3882
      %v3884 = vsel %vm615, %v3833, 0.0
      %v3885 = vadd.f32 %v3883, %v3884
      %v3886 = vrot.slane %v3885, 4
      %v3887 = vadd.f32 %v3885, %v3886
      %v3888 = vrot.slane %v3887, 2
      %v3889 = vadd.f32 %v3887, %v3888
      %v3890 = vrot.slane %v3889, 1
      %v3891 = vadd.f32 %v3889, %v3890
      %v3892 = vsel %vm615, %v3834, 0.0
      %v3893 = vsel %vm615, %v3835, 0.0
      %v3894 = vadd.f32 %v3892, %v3893
      %v3895 = vsel %vm615, %v3836, 0.0
      %v3896 = vadd.f32 %v3894, %v3895
      %v3897 = vsel %vm615, %v3837, 0.0
      %v3898 = vadd.f32 %v3896, %v3897
      %v3899 = vsel %vm615, %v3838, 0.0
      %v3900 = vadd.f32 %v3898, %v3899
      %v3901 = vsel %vm615, %v3839, 0.0
      %v3902 = vadd.f32 %v3900, %v3901
      %v3903 = vsel %vm615, %v3840, 0.0
      %v3904 = vadd.f32 %v3902, %v3903
      %v3905 = vsel %vm615, %v3841, 0.0
      %v3906 = vadd.f32 %v3904, %v3905
      %v3907 = vrot.slane %v3906, 4
      %v3908 = vadd.f32 %v3906, %v3907
      %v3909 = vrot.slane %v3908, 2
      %v3910 = vadd.f32 %v3908, %v3909
      %v3911 = vrot.slane %v3910, 1
      %v3912 = vadd.f32 %v3910, %v3911
      %v3913 = vsel %vm615, %v3842, 0.0
      %v3914 = vsel %vm615, %v3843, 0.0
      %v3915 = vadd.f32 %v3913, %v3914
      %v3916 = vsel %vm615, %v3844, 0.0
      %v3917 = vadd.f32 %v3915, %v3916
      %v3918 = vsel %vm615, %v3845, 0.0
      %v3919 = vadd.f32 %v3917, %v3918
      %v3920 = vsel %vm615, %v3846, 0.0
      %v3921 = vadd.f32 %v3919, %v3920
      %v3922 = vsel %vm615, %v3847, 0.0
      %v3923 = vadd.f32 %v3921, %v3922
      %v3924 = vsel %vm615, %v3848, 0.0
      %v3925 = vadd.f32 %v3923, %v3924
      %v3926 = vsel %vm615, %v3849, 0.0
      %v3927 = vadd.f32 %v3925, %v3926
      %v3928 = vrot.slane %v3927, 4
      %v3929 = vadd.f32 %v3927, %v3928
      %v3930 = vrot.slane %v3929, 2
      %v3931 = vadd.f32 %v3929, %v3930
      %v3932 = vrot.slane %v3931, 1
      %v3933 = vadd.f32 %v3931, %v3932
      %v3938 = vsel %vm820, %v3775, %v3754
      %v3939 = vsel %vm822, %v3796, %v3938
      %v3940 = vsel %vm824, %v3817, %v3939
      %v3941 = vsel %vm615, %v3940, 0
      %3943 = vmatpush.xpose.msra.mxu0 0.0
      %3944 = vmatpush.xpose.msra.mxu0 0.0
      %3945 = vmatpush.xpose.msra.mxu0 0.0
      %3946 = vmatpush.xpose.msra.mxu0 0.0
      %3947 = vmatpush.xpose.msra.mxu0 0.0
      %3948 = vmatpush.xpose.msra.mxu0 0.0
      %3949 = vmatpush.xpose.msra.mxu0 0.0
      %3950 = vmatpush.xpose.msra.mxu0 0.0
      %3951 = vmatpush.xpose.msra.mxu0 0.0
      %3952 = vmatpush.xpose.msra.mxu0 0.0
      %3953 = vmatpush.xpose.msra.mxu0 0.0
      %3954 = vmatpush.xpose.msra.mxu0 0.0
      %3955 = vmatpush.xpose.msra.mxu0 0.0
      %3956 = vmatpush.xpose.msra.mxu0 0.0
      %3957 = vmatpush.xpose.msra.mxu0 0.0
      %3958 = vmatpush.xpose.msra.mxu0 %v829
      %3959 = vmatmul.f32.gmra.mxu0 %v3941
      %v3960 = vpop.f32.mrf.mxu0
      %v3961 = vadd.f32 0.0, %v3960
      %3962 = vdwg.mxu0
      %v3967 = vsel %vm820, %v3891, %v3870
      %v3968 = vsel %vm822, %v3912, %v3967
      %v3969 = vsel %vm824, %v3933, %v3968
      %v3970 = vsel %vm615, %v3969, 0
      %3972 = vmatpush.xpose.msra.mxu0 0.0
      %3973 = vmatpush.xpose.msra.mxu0 0.0
      %3974 = vmatpush.xpose.msra.mxu0 0.0
      %3975 = vmatpush.xpose.msra.mxu0 0.0
      %3976 = vmatpush.xpose.msra.mxu0 0.0
      %3977 = vmatpush.xpose.msra.mxu0 0.0
      %3978 = vmatpush.xpose.msra.mxu0 0.0
      %3979 = vmatpush.xpose.msra.mxu0 0.0
      %3980 = vmatpush.xpose.msra.mxu0 0.0
      %3981 = vmatpush.xpose.msra.mxu0 0.0
      %3982 = vmatpush.xpose.msra.mxu0 0.0
      %3983 = vmatpush.xpose.msra.mxu0 0.0
      %3984 = vmatpush.xpose.msra.mxu0 0.0
      %3985 = vmatpush.xpose.msra.mxu0 0.0
      %3986 = vmatpush.xpose.msra.mxu0 0.0
      %3987 = vmatpush.xpose.msra.mxu0 %v829
      %3988 = vmatmul.f32.gmra.mxu0 %v3970
      %v3989 = vpop.f32.mrf.mxu0
      %v3990 = vadd.f32 0.0, %v3989
      %3991 = vdwg.mxu0
      %v3992 = vmul.f32 %v3961, %v886
      %v3993 = vmul.f32 %v3990, %v886
      %v3994 = vmul.f32 %v3992, %v3992
      %v3995 = vsub.f32 %v3993, %v3994
      %v3996 = vmax.f32 %v3995, 0.0
      %v3997 = vadd.f32 %v3996, 1e-05
      %v3998 = vrsqrt.pop %v3997
      %v3999 = vmul.f32 %v3998, %v3997
      %v4000 = vmul.f32 %v3999, %v3998
      %v4001 = vmul.f32 0.5, %v4000
      %v4002 = vsub.f32 1.5, %v4001
      %v4003 = vmul.f32 %v3998, %v4002
      %vm4004 = vweird.f32 %v3997
      %vm4005 = vweird.f32 %v3998
      %vm4006 = vmor %vm4004, %vm4005
      %v4007 = vsel %vm4006, %v3998, %v4003
      %v4009 = vsel %vm903, %v3992, 0
      %4011 = vmatpush.msra.mxu0 0.0
      %4012 = vmatpush.msra.mxu0 0.0
      %4013 = vmatpush.msra.mxu0 0.0
      %4014 = vmatpush.msra.mxu0 0.0
      %4015 = vmatpush.msra.mxu0 0.0
      %4016 = vmatpush.msra.mxu0 0.0
      %4017 = vmatpush.msra.mxu0 0.0
      %4018 = vmatpush.msra.mxu0 0.0
      %4019 = vmatpush.msra.mxu0 0.0
      %4020 = vmatpush.msra.mxu0 0.0
      %4021 = vmatpush.msra.mxu0 0.0
      %4022 = vmatpush.msra.mxu0 0.0
      %4023 = vmatpush.msra.mxu0 0.0
      %4024 = vmatpush.msra.mxu0 0.0
      %4025 = vmatpush.msra.mxu0 0.0
      %4026 = vmatpush.msra.mxu0 %v612
      %4027 = vmatmul.f32.gmra.mxu0 %v4009
      %v4028 = vpop.f32.mrf.mxu0
      %v4029 = vadd.f32 0.0, %v4028
      %4030 = vdwg.mxu0
      %v4032 = vsel %vm903, %v4007, 0
      %4034 = vmatpush.msra.mxu0 0.0
      %4035 = vmatpush.msra.mxu0 0.0
      %4036 = vmatpush.msra.mxu0 0.0
      %4037 = vmatpush.msra.mxu0 0.0
      %4038 = vmatpush.msra.mxu0 0.0
      %4039 = vmatpush.msra.mxu0 0.0
      %4040 = vmatpush.msra.mxu0 0.0
      %4041 = vmatpush.msra.mxu0 0.0
      %4042 = vmatpush.msra.mxu0 0.0
      %4043 = vmatpush.msra.mxu0 0.0
      %4044 = vmatpush.msra.mxu0 0.0
      %4045 = vmatpush.msra.mxu0 0.0
      %4046 = vmatpush.msra.mxu0 0.0
      %4047 = vmatpush.msra.mxu0 0.0
      %4048 = vmatpush.msra.mxu0 0.0
      %4049 = vmatpush.msra.mxu0 %v612
      %4050 = vmatmul.f32.gmra.mxu0 %v4032
      %v4051 = vpop.f32.mrf.mxu0
      %v4052 = vadd.f32 0.0, %v4051
      %4053 = vdwg.mxu0
      %v4055 = vperm.slane %v3732, 0
      %v4057 = vmul.f32 %v4052, %v4055
      %v4058 = vmul.f32 %v4029, %v4057
      %v4060 = vperm.slane %v3733, 0
      %v4062 = vsub.f32 %v4060, %v4058
      %v4064 = vrot.slane %v4057, 1
      %v4065 = vrot.slane %v4057, 2
      %v4066 = vrot.slane %v4057, 3
      %v4067 = vperm.slane %v4057, 0
      %v4068 = vperm.slane %v4064, 0
      %v4069 = vperm.slane %v4065, 0
      %v4070 = vperm.slane %v4066, 0
      %v4075 = vmul.f32 %v3653, %v4067
      %v4076 = vmul.f32 %v3655, %v4067
      %v4077 = vmul.f32 %v3658, %v4067
      %v4078 = vmul.f32 %v3660, %v4067
      %v4079 = vmul.f32 %v3663, %v4067
      %v4080 = vmul.f32 %v3665, %v4067
      %v4081 = vmul.f32 %v3668, %v4067
      %v4082 = vmul.f32 %v3670, %v4067
      %v4083 = vmul.f32 %v3673, %v4068
      %v4084 = vmul.f32 %v3675, %v4068
      %v4085 = vmul.f32 %v3678, %v4068
      %v4086 = vmul.f32 %v3680, %v4068
      %v4087 = vmul.f32 %v3683, %v4068
      %v4088 = vmul.f32 %v3685, %v4068
      %v4089 = vmul.f32 %v3688, %v4068
      %v4090 = vmul.f32 %v3690, %v4068
      %v4091 = vmul.f32 %v3693, %v4069
      %v4092 = vmul.f32 %v3695, %v4069
      %v4093 = vmul.f32 %v3698, %v4069
      %v4094 = vmul.f32 %v3700, %v4069
      %v4095 = vmul.f32 %v3703, %v4069
      %v4096 = vmul.f32 %v3705, %v4069
      %v4097 = vmul.f32 %v3708, %v4069
      %v4098 = vmul.f32 %v3710, %v4069
      %v4099 = vmul.f32 %v3713, %v4070
      %v4100 = vmul.f32 %v3715, %v4070
      %v4101 = vmul.f32 %v3718, %v4070
      %v4102 = vmul.f32 %v3720, %v4070
      %v4103 = vmul.f32 %v3723, %v4070
      %v4104 = vmul.f32 %v3725, %v4070
      %v4105 = vmul.f32 %v3728, %v4070
      %v4106 = vmul.f32 %v3730, %v4070
      %v4108 = vrot.slane %v4062, 1
      %v4109 = vrot.slane %v4062, 2
      %v4110 = vrot.slane %v4062, 3
      %v4111 = vperm.slane %v4062, 0
      %v4112 = vperm.slane %v4108, 0
      %v4113 = vperm.slane %v4109, 0
      %v4114 = vperm.slane %v4110, 0
      %v4119 = vadd.f32 %v4075, %v4111
      %v4120 = vadd.f32 %v4076, %v4111
      %v4121 = vadd.f32 %v4077, %v4111
      %v4122 = vadd.f32 %v4078, %v4111
      %v4123 = vadd.f32 %v4079, %v4111
      %v4124 = vadd.f32 %v4080, %v4111
      %v4125 = vadd.f32 %v4081, %v4111
      %v4126 = vadd.f32 %v4082, %v4111
      %v4127 = vadd.f32 %v4083, %v4112
      %v4128 = vadd.f32 %v4084, %v4112
      %v4129 = vadd.f32 %v4085, %v4112
      %v4130 = vadd.f32 %v4086, %v4112
      %v4131 = vadd.f32 %v4087, %v4112
      %v4132 = vadd.f32 %v4088, %v4112
      %v4133 = vadd.f32 %v4089, %v4112
      %v4134 = vadd.f32 %v4090, %v4112
      %v4135 = vadd.f32 %v4091, %v4113
      %v4136 = vadd.f32 %v4092, %v4113
      %v4137 = vadd.f32 %v4093, %v4113
      %v4138 = vadd.f32 %v4094, %v4113
      %v4139 = vadd.f32 %v4095, %v4113
      %v4140 = vadd.f32 %v4096, %v4113
      %v4141 = vadd.f32 %v4097, %v4113
      %v4142 = vadd.f32 %v4098, %v4113
      %v4143 = vadd.f32 %v4099, %v4114
      %v4144 = vadd.f32 %v4100, %v4114
      %v4145 = vadd.f32 %v4101, %v4114
      %v4146 = vadd.f32 %v4102, %v4114
      %v4147 = vadd.f32 %v4103, %v4114
      %v4148 = vadd.f32 %v4104, %v4114
      %v4149 = vadd.f32 %v4105, %v4114
      %v4150 = vadd.f32 %v4106, %v4114
      %v4151 = vpack.c.bf16 %v4120, %v4119
      %v4152 = vpack.c.bf16 %v4122, %v4121
      %v4153 = vpack.c.bf16 %v4124, %v4123
      %v4154 = vpack.c.bf16 %v4126, %v4125
      %v4155 = vpack.c.bf16 %v4128, %v4127
      %v4156 = vpack.c.bf16 %v4130, %v4129
      %v4157 = vpack.c.bf16 %v4132, %v4131
      %v4158 = vpack.c.bf16 %v4134, %v4133
      %v4159 = vpack.c.bf16 %v4136, %v4135
      %v4160 = vpack.c.bf16 %v4138, %v4137
      %v4161 = vpack.c.bf16 %v4140, %v4139
      %v4162 = vpack.c.bf16 %v4142, %v4141
      %v4163 = vpack.c.bf16 %v4144, %v4143
      %v4164 = vpack.c.bf16 %v4146, %v4145
      %v4165 = vpack.c.bf16 %v4148, %v4147
      %v4166 = vpack.c.bf16 %v4150, %v4149
      %v4167 = vld [vmem:[%s14] sm:$0xf]
      %v4168 = vld [vmem:[%s14 + $0x4] sm:$0xf]
      %v4169 = vld [vmem:[%s14 + $0x8] sm:$0xf]
      %v4170 = vld [vmem:[%s14 + $0xc] sm:$0xf]
      %v4171 = vld [vmem:[%s15] sm:$0x1]
      %v4173 = vperm.slane %v4171, 0
      %v4179 = vunpack.c.l.b16 %v4167
      %v4180 = vunpack.c.l.b16 %v4168
      %v4181 = vunpack.c.l.b16 %v4169
      %v4182 = vunpack.c.l.b16 %v4170
      %v4183 = vpack.c.b16 %v4180, %v4179
      %v4184 = vpack.c.b16 %v4182, %v4181
      %v4188 = vsel %vm615, %v4151, 0
      %v4191 = vsel %vm615, %v4152, 0
      %v4194 = vsel %vm615, %v4153, 0
      %v4197 = vsel %vm615, %v4154, 0
      %v4200 = vsel %vm615, %v4155, 0
      %v4203 = vsel %vm615, %v4156, 0
      %v4206 = vsel %vm615, %v4157, 0
      %v4209 = vsel %vm615, %v4158, 0
      %v4212 = vsel %vm615, %v4159, 0
      %v4215 = vsel %vm615, %v4160, 0
      %v4218 = vsel %vm615, %v4161, 0
      %v4221 = vsel %vm615, %v4162, 0
      %v4224 = vsel %vm615, %v4163, 0
      %v4227 = vsel %vm615, %v4164, 0
      %v4230 = vsel %vm615, %v4165, 0
      %v4233 = vsel %vm615, %v4166, 0
      %4235 = vmatpush.bf16.msra.mxu0 0
      %4236 = vmatpush.bf16.msra.mxu0 0
      %4237 = vmatpush.bf16.msra.mxu0 0
      %4238 = vmatpush.bf16.msra.mxu0 0
      %4239 = vmatpush.bf16.msra.mxu0 0
      %4240 = vmatpush.bf16.msra.mxu0 0
      %4241 = vmatpush.bf16.msra.mxu0 %v4184
      %4242 = vmatpush.bf16.msra.mxu0 %v4183
      %4243 = vmatmul.bf16.gmra.mxu0 %v4188
      %v4244 = vpop.f32.mrf.mxu0
      %v4245 = vadd.f32 %v4173, %v4244
      %v4246 = vpop.f32.mrf.mxu0
      %v4247 = vadd.f32 %v4173, %v4246
      %4248 = vmatmul.bf16.gmra.mxu0 %v4191
      %v4249 = vpop.f32.mrf.mxu0
      %v4250 = vadd.f32 %v4173, %v4249
      %v4251 = vpop.f32.mrf.mxu0
      %v4252 = vadd.f32 %v4173, %v4251
      %4253 = vmatmul.bf16.gmra.mxu0 %v4194
      %v4254 = vpop.f32.mrf.mxu0
      %v4255 = vadd.f32 %v4173, %v4254
      %v4256 = vpop.f32.mrf.mxu0
      %v4257 = vadd.f32 %v4173, %v4256
      %4258 = vmatmul.bf16.gmra.mxu0 %v4197
      %v4259 = vpop.f32.mrf.mxu0
      %v4260 = vadd.f32 %v4173, %v4259
      %v4261 = vpop.f32.mrf.mxu0
      %v4262 = vadd.f32 %v4173, %v4261
      %4263 = vmatmul.bf16.gmra.mxu0 %v4200
      %v4264 = vpop.f32.mrf.mxu0
      %v4265 = vadd.f32 %v4173, %v4264
      %v4266 = vpop.f32.mrf.mxu0
      %v4267 = vadd.f32 %v4173, %v4266
      %4268 = vmatmul.bf16.gmra.mxu0 %v4203
      %v4269 = vpop.f32.mrf.mxu0
      %v4270 = vadd.f32 %v4173, %v4269
      %v4271 = vpop.f32.mrf.mxu0
      %v4272 = vadd.f32 %v4173, %v4271
      %4273 = vmatmul.bf16.gmra.mxu0 %v4206
      %v4274 = vpop.f32.mrf.mxu0
      %v4275 = vadd.f32 %v4173, %v4274
      %v4276 = vpop.f32.mrf.mxu0
      %v4277 = vadd.f32 %v4173, %v4276
      %4278 = vmatmul.bf16.gmra.mxu0 %v4209
      %v4279 = vpop.f32.mrf.mxu0
      %v4280 = vadd.f32 %v4173, %v4279
      %v4281 = vpop.f32.mrf.mxu0
      %v4282 = vadd.f32 %v4173, %v4281
      %4283 = vmatmul.bf16.gmra.mxu0 %v4212
      %v4284 = vpop.f32.mrf.mxu0
      %v4285 = vadd.f32 %v4173, %v4284
      %v4286 = vpop.f32.mrf.mxu0
      %v4287 = vadd.f32 %v4173, %v4286
      %4288 = vmatmul.bf16.gmra.mxu0 %v4215
      %v4289 = vpop.f32.mrf.mxu0
      %v4290 = vadd.f32 %v4173, %v4289
      %v4291 = vpop.f32.mrf.mxu0
      %v4292 = vadd.f32 %v4173, %v4291
      %4293 = vmatmul.bf16.gmra.mxu0 %v4218
      %v4294 = vpop.f32.mrf.mxu0
      %v4295 = vadd.f32 %v4173, %v4294
      %v4296 = vpop.f32.mrf.mxu0
      %v4297 = vadd.f32 %v4173, %v4296
      %4298 = vmatmul.bf16.gmra.mxu0 %v4221
      %v4299 = vpop.f32.mrf.mxu0
      %v4300 = vadd.f32 %v4173, %v4299
      %v4301 = vpop.f32.mrf.mxu0
      %v4302 = vadd.f32 %v4173, %v4301
      %4303 = vmatmul.bf16.gmra.mxu0 %v4224
      %v4304 = vpop.f32.mrf.mxu0
      %v4305 = vadd.f32 %v4173, %v4304
      %v4306 = vpop.f32.mrf.mxu0
      %v4307 = vadd.f32 %v4173, %v4306
      %4308 = vmatmul.bf16.gmra.mxu0 %v4227
      %v4309 = vpop.f32.mrf.mxu0
      %v4310 = vadd.f32 %v4173, %v4309
      %v4311 = vpop.f32.mrf.mxu0
      %v4312 = vadd.f32 %v4173, %v4311
      %4313 = vmatmul.bf16.gmra.mxu0 %v4230
      %v4314 = vpop.f32.mrf.mxu0
      %v4315 = vadd.f32 %v4173, %v4314
      %v4316 = vpop.f32.mrf.mxu0
      %v4317 = vadd.f32 %v4173, %v4316
      %4318 = vmatmul.bf16.gmra.mxu0 %v4233
      %v4319 = vpop.f32.mrf.mxu0
      %v4320 = vadd.f32 %v4173, %v4319
      %v4321 = vpop.f32.mrf.mxu0
      %v4322 = vadd.f32 %v4173, %v4321
      %4323 = vdwg.mxu0
      %v4324 = vmul.f32 %v4245, 0.5
      %v4325 = vmul.f32 %v4247, 0.5
      %v4326 = vmul.f32 %v4250, 0.5
      %v4327 = vmul.f32 %v4252, 0.5
      %v4328 = vmul.f32 %v4255, 0.5
      %v4329 = vmul.f32 %v4257, 0.5
      %v4330 = vmul.f32 %v4260, 0.5
      %v4331 = vmul.f32 %v4262, 0.5
      %v4332 = vmul.f32 %v4265, 0.5
      %v4333 = vmul.f32 %v4267, 0.5
      %v4334 = vmul.f32 %v4270, 0.5
      %v4335 = vmul.f32 %v4272, 0.5
      %v4336 = vmul.f32 %v4275, 0.5
      %v4337 = vmul.f32 %v4277, 0.5
      %v4338 = vmul.f32 %v4280, 0.5
      %v4339 = vmul.f32 %v4282, 0.5
      %v4340 = vmul.f32 %v4285, 0.5
      %v4341 = vmul.f32 %v4287, 0.5
      %v4342 = vmul.f32 %v4290, 0.5
      %v4343 = vmul.f32 %v4292, 0.5
      %v4344 = vmul.f32 %v4295, 0.5
      %v4345 = vmul.f32 %v4297, 0.5
      %v4346 = vmul.f32 %v4300, 0.5
      %v4347 = vmul.f32 %v4302, 0.5
      %v4348 = vmul.f32 %v4305, 0.5
      %v4349 = vmul.f32 %v4307, 0.5
      %v4350 = vmul.f32 %v4310, 0.5
      %v4351 = vmul.f32 %v4312, 0.5
      %v4352 = vmul.f32 %v4315, 0.5
      %v4353 = vmul.f32 %v4317, 0.5
      %v4354 = vmul.f32 %v4320, 0.5
      %v4355 = vmul.f32 %v4322, 0.5
      %v4356 = vmul.f32 %v4245, 0.044715
      %v4357 = vmul.f32 %v4247, 0.044715
      %v4358 = vmul.f32 %v4250, 0.044715
      %v4359 = vmul.f32 %v4252, 0.044715
      %v4360 = vmul.f32 %v4255, 0.044715
      %v4361 = vmul.f32 %v4257, 0.044715
      %v4362 = vmul.f32 %v4260, 0.044715
      %v4363 = vmul.f32 %v4262, 0.044715
      %v4364 = vmul.f32 %v4265, 0.044715
      %v4365 = vmul.f32 %v4267, 0.044715
      %v4366 = vmul.f32 %v4270, 0.044715
      %v4367 = vmul.f32 %v4272, 0.044715
      %v4368 = vmul.f32 %v4275, 0.044715
      %v4369 = vmul.f32 %v4277, 0.044715
      %v4370 = vmul.f32 %v4280, 0.044715
      %v4371 = vmul.f32 %v4282, 0.044715
      %v4372 = vmul.f32 %v4285, 0.044715
      %v4373 = vmul.f32 %v4287, 0.044715
      %v4374 = vmul.f32 %v4290, 0.044715
      %v4375 = vmul.f32 %v4292, 0.044715
      %v4376 = vmul.f32 %v4295, 0.044715
      %v4377 = vmul.f32 %v4297, 0.044715
      %v4378 = vmul.f32 %v4300, 0.044715
      %v4379 = vmul.f32 %v4302, 0.044715
      %v4380 = vmul.f32 %v4305, 0.044715
      %v4381 = vmul.f32 %v4307, 0.044715
      %v4382 = vmul.f32 %v4310, 0.044715
      %v4383 = vmul.f32 %v4312, 0.044715
      %v4384 = vmul.f32 %v4315, 0.044715
      %v4385 = vmul.f32 %v4317, 0.044715
      %v4386 = vmul.f32 %v4320, 0.044715
      %v4387 = vmul.f32 %v4322, 0.044715
      %v4388 = vmul.f32 %v4356, %v4245
      %v4389 = vmul.f32 %v4357, %v4247
      %v4390 = vmul.f32 %v4358, %v4250
      %v4391 = vmul.f32 %v4359, %v4252
      %v4392 = vmul.f32 %v4360, %v4255
      %v4393 = vmul.f32 %v4361, %v4257
      %v4394 = vmul.f32 %v4362, %v4260
      %v4395 = vmul.f32 %v4363, %v4262
      %v4396 = vmul.f32 %v4364, %v4265
      %v4397 = vmul.f32 %v4365, %v4267
      %v4398 = vmul.f32 %v4366, %v4270
      %v4399 = vmul.f32 %v4367, %v4272
      %v4400 = vmul.f32 %v4368, %v4275
      %v4401 = vmul.f32 %v4369, %v4277
      %v4402 = vmul.f32 %v4370, %v4280
      %v4403 = vmul.f32 %v4371, %v4282
      %v4404 = vmul.f32 %v4372, %v4285
      %v4405 = vmul.f32 %v4373, %v4287
      %v4406 = vmul.f32 %v4374, %v4290
      %v4407 = vmul.f32 %v4375, %v4292
      %v4408 = vmul.f32 %v4376, %v4295
      %v4409 = vmul.f32 %v4377, %v4297
      %v4410 = vmul.f32 %v4378, %v4300
      %v4411 = vmul.f32 %v4379, %v4302
      %v4412 = vmul.f32 %v4380, %v4305
      %v4413 = vmul.f32 %v4381, %v4307
      %v4414 = vmul.f32 %v4382, %v4310
      %v4415 = vmul.f32 %v4383, %v4312
      %v4416 = vmul.f32 %v4384, %v4315
      %v4417 = vmul.f32 %v4385, %v4317
      %v4418 = vmul.f32 %v4386, %v4320
      %v4419 = vmul.f32 %v4387, %v4322
      %v4420 = vmul.f32 %v4388, %v4245
      %v4421 = vmul.f32 %v4389, %v4247
      %v4422 = vmul.f32 %v4390, %v4250
      %v4423 = vmul.f32 %v4391, %v4252
      %v4424 = vmul.f32 %v4392, %v4255
      %v4425 = vmul.f32 %v4393, %v4257
      %v4426 = vmul.f32 %v4394, %v4260
      %v4427 = vmul.f32 %v4395, %v4262
      %v4428 = vmul.f32 %v4396, %v4265
      %v4429 = vmul.f32 %v4397, %v4267
      %v4430 = vmul.f32 %v4398, %v4270
      %v4431 = vmul.f32 %v4399, %v4272
      %v4432 = vmul.f32 %v4400, %v4275
      %v4433 = vmul.f32 %v4401, %v4277
      %v4434 = vmul.f32 %v4402, %v4280
      %v4435 = vmul.f32 %v4403, %v4282
      %v4436 = vmul.f32 %v4404, %v4285
      %v4437 = vmul.f32 %v4405, %v4287
      %v4438 = vmul.f32 %v4406, %v4290
      %v4439 = vmul.f32 %v4407, %v4292
      %v4440 = vmul.f32 %v4408, %v4295
      %v4441 = vmul.f32 %v4409, %v4297
      %v4442 = vmul.f32 %v4410, %v4300
      %v4443 = vmul.f32 %v4411, %v4302
      %v4444 = vmul.f32 %v4412, %v4305
      %v4445 = vmul.f32 %v4413, %v4307
      %v4446 = vmul.f32 %v4414, %v4310
      %v4447 = vmul.f32 %v4415, %v4312
      %v4448 = vmul.f32 %v4416, %v4315
      %v4449 = vmul.f32 %v4417, %v4317
      %v4450 = vmul.f32 %v4418, %v4320
      %v4451 = vmul.f32 %v4419, %v4322
      %v4452 = vadd.f32 %v4245, %v4420
      %v4453 = vadd.f32 %v4247, %v4421
      %v4454 = vadd.f32 %v4250, %v4422
      %v4455 = vadd.f32 %v4252, %v4423
      %v4456 = vadd.f32 %v4255, %v4424
      %v4457 = vadd.f32 %v4257, %v4425
      %v4458 = vadd.f32 %v4260, %v4426
      %v4459 = vadd.f32 %v4262, %v4427
      %v4460 = vadd.f32 %v4265, %v4428
      %v4461 = vadd.f32 %v4267, %v4429
      %v4462 = vadd.f32 %v4270, %v4430
      %v4463 = vadd.f32 %v4272, %v4431
      %v4464 = vadd.f32 %v4275, %v4432
      %v4465 = vadd.f32 %v4277, %v4433
      %v4466 = vadd.f32 %v4280, %v4434
      %v4467 = vadd.f32 %v4282, %v4435
      %v4468 = vadd.f32 %v4285, %v4436
      %v4469 = vadd.f32 %v4287, %v4437
      %v4470 = vadd.f32 %v4290, %v4438
      %v4471 = vadd.f32 %v4292, %v4439
      %v4472 = vadd.f32 %v4295, %v4440
      %v4473 = vadd.f32 %v4297, %v4441
      %v4474 = vadd.f32 %v4300, %v4442
      %v4475 = vadd.f32 %v4302, %v4443
      %v4476 = vadd.f32 %v4305, %v4444
      %v4477 = vadd.f32 %v4307, %v4445
      %v4478 = vadd.f32 %v4310, %v4446
      %v4479 = vadd.f32 %v4312, %v4447
      %v4480 = vadd.f32 %v4315, %v4448
      %v4481 = vadd.f32 %v4317, %v4449
      %v4482 = vadd.f32 %v4320, %v4450
      %v4483 = vadd.f32 %v4322, %v4451
      %v4484 = vmul.f32 %v4452, 0.7978846
      %v4485 = vmul.f32 %v4453, 0.7978846
      %v4486 = vmul.f32 %v4454, 0.7978846
      %v4487 = vmul.f32 %v4455, 0.7978846
      %v4488 = vmul.f32 %v4456, 0.7978846
      %v4489 = vmul.f32 %v4457, 0.7978846
      %v4490 = vmul.f32 %v4458, 0.7978846
      %v4491 = vmul.f32 %v4459, 0.7978846
      %v4492 = vmul.f32 %v4460, 0.7978846
      %v4493 = vmul.f32 %v4461, 0.7978846
      %v4494 = vmul.f32 %v4462, 0.7978846
      %v4495 = vmul.f32 %v4463, 0.7978846
      %v4496 = vmul.f32 %v4464, 0.7978846
      %v4497 = vmul.f32 %v4465, 0.7978846
      %v4498 = vmul.f32 %v4466, 0.7978846
      %v4499 = vmul.f32 %v4467, 0.7978846
      %v4500 = vmul.f32 %v4468, 0.7978846
      %v4501 = vmul.f32 %v4469, 0.7978846
      %v4502 = vmul.f32 %v4470, 0.7978846
      %v4503 = vmul.f32 %v4471, 0.7978846
      %v4504 = vmul.f32 %v4472, 0.7978846
      %v4505 = vmul.f32 %v4473, 0.7978846
      %v4506 = vmul.f32 %v4474, 0.7978846
      %v4507 = vmul.f32 %v4475, 0.7978846
      %v4508 = vmul.f32 %v4476, 0.7978846
      %v4509 = vmul.f32 %v4477, 0.7978846
      %v4510 = vmul.f32 %v4478, 0.7978846
      %v4511 = vmul.f32 %v4479, 0.7978846
      %v4512 = vmul.f32 %v4480, 0.7978846
      %v4513 = vmul.f32 %v4481, 0.7978846
      %v4514 = vmul.f32 %v4482, 0.7978846
      %v4515 = vmul.f32 %v4483, 0.7978846
      %v4516 = vtanh.pop %v4484
      %v4517 = vtanh.pop %v4485
      %v4518 = vtanh.pop %v4486
      %v4519 = vtanh.pop %v4487
      %v4520 = vtanh.pop %v4488
      %v4521 = vtanh.pop %v4489
      %v4522 = vtanh.pop %v4490
      %v4523 = vtanh.pop %v4491
      %v4524 = vtanh.pop %v4492
      %v4525 = vtanh.pop %v4493
      %v4526 = vtanh.pop %v4494
      %v4527 = vtanh.pop %v4495
      %v4528 = vtanh.pop %v4496
      %v4529 = vtanh.pop %v4497
      %v4530 = vtanh.pop %v4498
      %v4531 = vtanh.pop %v4499
      %v4532 = vtanh.pop %v4500
      %v4533 = vtanh.pop %v4501
      %v4534 = vtanh.pop %v4502
      %v4535 = vtanh.pop %v4503
      %v4536 = vtanh.pop %v4504
      %v4537 = vtanh.pop %v4505
      %v4538 = vtanh.pop %v4506
      %v4539 = vtanh.pop %v4507
      %v4540 = vtanh.pop %v4508
      %v4541 = vtanh.pop %v4509
      %v4542 = vtanh.pop %v4510
      %v4543 = vtanh.pop %v4511
      %v4544 = vtanh.pop %v4512
      %v4545 = vtanh.pop %v4513
      %v4546 = vtanh.pop %v4514
      %v4547 = vtanh.pop %v4515
      %v4548 = vadd.f32 %v4516, 1.0
      %v4549 = vadd.f32 %v4517, 1.0
      %v4550 = vadd.f32 %v4518, 1.0
      %v4551 = vadd.f32 %v4519, 1.0
      %v4552 = vadd.f32 %v4520, 1.0
      %v4553 = vadd.f32 %v4521, 1.0
      %v4554 = vadd.f32 %v4522, 1.0
      %v4555 = vadd.f32 %v4523, 1.0
      %v4556 = vadd.f32 %v4524, 1.0
      %v4557 = vadd.f32 %v4525, 1.0
      %v4558 = vadd.f32 %v4526, 1.0
      %v4559 = vadd.f32 %v4527, 1.0
      %v4560 = vadd.f32 %v4528, 1.0
      %v4561 = vadd.f32 %v4529, 1.0
      %v4562 = vadd.f32 %v4530, 1.0
      %v4563 = vadd.f32 %v4531, 1.0
      %v4564 = vadd.f32 %v4532, 1.0
      %v4565 = vadd.f32 %v4533, 1.0
      %v4566 = vadd.f32 %v4534, 1.0
      %v4567 = vadd.f32 %v4535, 1.0
      %v4568 = vadd.f32 %v4536, 1.0
      %v4569 = vadd.f32 %v4537, 1.0
      %v4570 = vadd.f32 %v4538, 1.0
      %v4571 = vadd.f32 %v4539, 1.0
      %v4572 = vadd.f32 %v4540, 1.0
      %v4573 = vadd.f32 %v4541, 1.0
      %v4574 = vadd.f32 %v4542, 1.0
      %v4575 = vadd.f32 %v4543, 1.0
      %v4576 = vadd.f32 %v4544, 1.0
      %v4577 = vadd.f32 %v4545, 1.0
      %v4578 = vadd.f32 %v4546, 1.0
      %v4579 = vadd.f32 %v4547, 1.0
      %v4580 = vmul.f32 %v4324, %v4548
      %v4581 = vmul.f32 %v4325, %v4549
      %v4582 = vmul.f32 %v4326, %v4550
      %v4583 = vmul.f32 %v4327, %v4551
      %v4584 = vmul.f32 %v4328, %v4552
      %v4585 = vmul.f32 %v4329, %v4553
      %v4586 = vmul.f32 %v4330, %v4554
      %v4587 = vmul.f32 %v4331, %v4555
      %v4588 = vmul.f32 %v4332, %v4556
      %v4589 = vmul.f32 %v4333, %v4557
      %v4590 = vmul.f32 %v4334, %v4558
      %v4591 = vmul.f32 %v4335, %v4559
      %v4592 = vmul.f32 %v4336, %v4560
      %v4593 = vmul.f32 %v4337, %v4561
      %v4594 = vmul.f32 %v4338, %v4562
      %v4595 = vmul.f32 %v4339, %v4563
      %v4596 = vmul.f32 %v4340, %v4564
      %v4597 = vmul.f32 %v4341, %v4565
      %v4598 = vmul.f32 %v4342, %v4566
      %v4599 = vmul.f32 %v4343, %v4567
      %v4600 = vmul.f32 %v4344, %v4568
      %v4601 = vmul.f32 %v4345, %v4569
      %v4602 = vmul.f32 %v4346, %v4570
      %v4603 = vmul.f32 %v4347, %v4571
      %v4604 = vmul.f32 %v4348, %v4572
      %v4605 = vmul.f32 %v4349, %v4573
      %v4606 = vmul.f32 %v4350, %v4574
      %v4607 = vmul.f32 %v4351, %v4575
      %v4608 = vmul.f32 %v4352, %v4576
      %v4609 = vmul.f32 %v4353, %v4577
      %v4610 = vmul.f32 %v4354, %v4578
      %v4611 = vmul.f32 %v4355, %v4579
      %v4612 = vpack.c.bf16 %v4581, %v4580
      %v4613 = vpack.c.bf16 %v4583, %v4582
      %v4614 = vpack.c.bf16 %v4585, %v4584
      %v4615 = vpack.c.bf16 %v4587, %v4586
      %v4616 = vpack.c.bf16 %v4589, %v4588
      %v4617 = vpack.c.bf16 %v4591, %v4590
      %v4618 = vpack.c.bf16 %v4593, %v4592
      %v4619 = vpack.c.bf16 %v4595, %v4594
      %v4620 = vpack.c.bf16 %v4597, %v4596
      %v4621 = vpack.c.bf16 %v4599, %v4598
      %v4622 = vpack.c.bf16 %v4601, %v4600
      %v4623 = vpack.c.bf16 %v4603, %v4602
      %v4624 = vpack.c.bf16 %v4605, %v4604
      %v4625 = vpack.c.bf16 %v4607, %v4606
      %v4626 = vpack.c.bf16 %v4609, %v4608
      %v4627 = vpack.c.bf16 %v4611, %v4610
      %v4628 = vld [vmem:[%s16] sm:$0xf]
      %v4629 = vld [vmem:[%s16 + $0x4] sm:$0xf]
      %v4630 = vld [vmem:[%s16 + $0x8] sm:$0xf]
      %v4631 = vld [vmem:[%s16 + $0xc] sm:$0xf]
      %v4632 = vld [vmem:[%s17] sm:$0x1]
      %v4634 = vperm.slane %v4632, 0
      %v4640 = vunpack.c.l.b16 %v4628
      %v4641 = vunpack.c.l.b16 %v4629
      %v4642 = vunpack.c.l.b16 %v4630
      %v4643 = vunpack.c.l.b16 %v4631
      %v4644 = vpack.c.b16 %v4641, %v4640
      %v4645 = vpack.c.b16 %v4643, %v4642
      %v4649 = vsel %vm615, %v4612, 0
      %v4652 = vsel %vm615, %v4613, 0
      %v4655 = vsel %vm615, %v4614, 0
      %v4658 = vsel %vm615, %v4615, 0
      %v4661 = vsel %vm615, %v4616, 0
      %v4664 = vsel %vm615, %v4617, 0
      %v4667 = vsel %vm615, %v4618, 0
      %v4670 = vsel %vm615, %v4619, 0
      %v4673 = vsel %vm615, %v4620, 0
      %v4676 = vsel %vm615, %v4621, 0
      %v4679 = vsel %vm615, %v4622, 0
      %v4682 = vsel %vm615, %v4623, 0
      %v4685 = vsel %vm615, %v4624, 0
      %v4688 = vsel %vm615, %v4625, 0
      %v4691 = vsel %vm615, %v4626, 0
      %v4694 = vsel %vm615, %v4627, 0
      %4696 = vmatpush.bf16.msra.mxu0 0
      %4697 = vmatpush.bf16.msra.mxu0 0
      %4698 = vmatpush.bf16.msra.mxu0 0
      %4699 = vmatpush.bf16.msra.mxu0 0
      %4700 = vmatpush.bf16.msra.mxu0 0
      %4701 = vmatpush.bf16.msra.mxu0 0
      %4702 = vmatpush.bf16.msra.mxu0 %v4645
      %4703 = vmatpush.bf16.msra.mxu0 %v4644
      %4704 = vmatmul.bf16.gmra.mxu0 %v4649
      %v4705 = vpop.f32.mrf.mxu0
      %v4706 = vadd.f32 %v4634, %v4705
      %v4707 = vpop.f32.mrf.mxu0
      %v4708 = vadd.f32 %v4634, %v4707
      %4709 = vmatmul.bf16.gmra.mxu0 %v4652
      %v4710 = vpop.f32.mrf.mxu0
      %v4711 = vadd.f32 %v4634, %v4710
      %v4712 = vpop.f32.mrf.mxu0
      %v4713 = vadd.f32 %v4634, %v4712
      %4714 = vmatmul.bf16.gmra.mxu0 %v4655
      %v4715 = vpop.f32.mrf.mxu0
      %v4716 = vadd.f32 %v4634, %v4715
      %v4717 = vpop.f32.mrf.mxu0
      %v4718 = vadd.f32 %v4634, %v4717
      %4719 = vmatmul.bf16.gmra.mxu0 %v4658
      %v4720 = vpop.f32.mrf.mxu0
      %v4721 = vadd.f32 %v4634, %v4720
      %v4722 = vpop.f32.mrf.mxu0
      %v4723 = vadd.f32 %v4634, %v4722
      %4724 = vmatmul.bf16.gmra.mxu0 %v4661
      %v4725 = vpop.f32.mrf.mxu0
      %v4726 = vadd.f32 %v4634, %v4725
      %v4727 = vpop.f32.mrf.mxu0
      %v4728 = vadd.f32 %v4634, %v4727
      %4729 = vmatmul.bf16.gmra.mxu0 %v4664
      %v4730 = vpop.f32.mrf.mxu0
      %v4731 = vadd.f32 %v4634, %v4730
      %v4732 = vpop.f32.mrf.mxu0
      %v4733 = vadd.f32 %v4634, %v4732
      %4734 = vmatmul.bf16.gmra.mxu0 %v4667
      %v4735 = vpop.f32.mrf.mxu0
      %v4736 = vadd.f32 %v4634, %v4735
      %v4737 = vpop.f32.mrf.mxu0
      %v4738 = vadd.f32 %v4634, %v4737
      %4739 = vmatmul.bf16.gmra.mxu0 %v4670
      %v4740 = vpop.f32.mrf.mxu0
      %v4741 = vadd.f32 %v4634, %v4740
      %v4742 = vpop.f32.mrf.mxu0
      %v4743 = vadd.f32 %v4634, %v4742
      %4744 = vmatmul.bf16.gmra.mxu0 %v4673
      %v4745 = vpop.f32.mrf.mxu0
      %v4746 = vadd.f32 %v4634, %v4745
      %v4747 = vpop.f32.mrf.mxu0
      %v4748 = vadd.f32 %v4634, %v4747
      %4749 = vmatmul.bf16.gmra.mxu0 %v4676
      %v4750 = vpop.f32.mrf.mxu0
      %v4751 = vadd.f32 %v4634, %v4750
      %v4752 = vpop.f32.mrf.mxu0
      %v4753 = vadd.f32 %v4634, %v4752
      %4754 = vmatmul.bf16.gmra.mxu0 %v4679
      %v4755 = vpop.f32.mrf.mxu0
      %v4756 = vadd.f32 %v4634, %v4755
      %v4757 = vpop.f32.mrf.mxu0
      %v4758 = vadd.f32 %v4634, %v4757
      %4759 = vmatmul.bf16.gmra.mxu0 %v4682
      %v4760 = vpop.f32.mrf.mxu0
      %v4761 = vadd.f32 %v4634, %v4760
      %v4762 = vpop.f32.mrf.mxu0
      %v4763 = vadd.f32 %v4634, %v4762
      %4764 = vmatmul.bf16.gmra.mxu0 %v4685
      %v4765 = vpop.f32.mrf.mxu0
      %v4766 = vadd.f32 %v4634, %v4765
      %v4767 = vpop.f32.mrf.mxu0
      %v4768 = vadd.f32 %v4634, %v4767
      %4769 = vmatmul.bf16.gmra.mxu0 %v4688
      %v4770 = vpop.f32.mrf.mxu0
      %v4771 = vadd.f32 %v4634, %v4770
      %v4772 = vpop.f32.mrf.mxu0
      %v4773 = vadd.f32 %v4634, %v4772
      %4774 = vmatmul.bf16.gmra.mxu0 %v4691
      %v4775 = vpop.f32.mrf.mxu0
      %v4776 = vadd.f32 %v4634, %v4775
      %v4777 = vpop.f32.mrf.mxu0
      %v4778 = vadd.f32 %v4634, %v4777
      %4779 = vmatmul.bf16.gmra.mxu0 %v4694
      %v4780 = vpop.f32.mrf.mxu0
      %v4781 = vadd.f32 %v4634, %v4780
      %v4782 = vpop.f32.mrf.mxu0
      %v4783 = vadd.f32 %v4634, %v4782
      %4784 = vdwg.mxu0
      %v4785 = vadd.f32 %v4706, %v3653
      %v4786 = vadd.f32 %v4708, %v3655
      %v4787 = vadd.f32 %v4711, %v3658
      %v4788 = vadd.f32 %v4713, %v3660
      %v4789 = vadd.f32 %v4716, %v3663
      %v4790 = vadd.f32 %v4718, %v3665
      %v4791 = vadd.f32 %v4721, %v3668
      %v4792 = vadd.f32 %v4723, %v3670
      %v4793 = vadd.f32 %v4726, %v3673
      %v4794 = vadd.f32 %v4728, %v3675
      %v4795 = vadd.f32 %v4731, %v3678
      %v4796 = vadd.f32 %v4733, %v3680
      %v4797 = vadd.f32 %v4736, %v3683
      %v4798 = vadd.f32 %v4738, %v3685
      %v4799 = vadd.f32 %v4741, %v3688
      %v4800 = vadd.f32 %v4743, %v3690
      %v4801 = vadd.f32 %v4746, %v3693
      %v4802 = vadd.f32 %v4748, %v3695
      %v4803 = vadd.f32 %v4751, %v3698
      %v4804 = vadd.f32 %v4753, %v3700
      %v4805 = vadd.f32 %v4756, %v3703
      %v4806 = vadd.f32 %v4758, %v3705
      %v4807 = vadd.f32 %v4761, %v3708
      %v4808 = vadd.f32 %v4763, %v3710
      %v4809 = vadd.f32 %v4766, %v3713
      %v4810 = vadd.f32 %v4768, %v3715
      %v4811 = vadd.f32 %v4771, %v3718
      %v4812 = vadd.f32 %v4773, %v3720
      %v4813 = vadd.f32 %v4776, %v3723
      %v4814 = vadd.f32 %v4778, %v3725
      %v4815 = vadd.f32 %v4781, %v3728
      %v4816 = vadd.f32 %v4783, %v3730
      %4817 = vst.msk [vmem:[%s577] sm:$0xff] %vm615, %v4785
      %4818 = vst.msk [vmem:[%s577 + $0x8] sm:$0xff] %vm615, %v4786
      %4819 = vst.msk [vmem:[%s577 + $0x10] sm:$0xff] %vm615, %v4787
      %4820 = vst.msk [vmem:[%s577 + $0x18] sm:$0xff] %vm615, %v4788
      %4821 = vst.msk [vmem:[%s577 + $0x20] sm:$0xff] %vm615, %v4789
      %4822 = vst.msk [vmem:[%s577 + $0x28] sm:$0xff] %vm615, %v4790
      %4823 = vst.msk [vmem:[%s577 + $0x30] sm:$0xff] %vm615, %v4791
      %4824 = vst.msk [vmem:[%s577 + $0x38] sm:$0xff] %vm615, %v4792
      %4825 = vst.msk [vmem:[%s577 + $0x40] sm:$0xff] %vm615, %v4793
      %4826 = vst.msk [vmem:[%s577 + $0x48] sm:$0xff] %vm615, %v4794
      %4827 = vst.msk [vmem:[%s577 + $0x50] sm:$0xff] %vm615, %v4795
      %4828 = vst.msk [vmem:[%s577 + $0x58] sm:$0xff] %vm615, %v4796
      %4829 = vst.msk [vmem:[%s577 + $0x60] sm:$0xff] %vm615, %v4797
      %4830 = vst.msk [vmem:[%s577 + $0x68] sm:$0xff] %vm615, %v4798
      %4831 = vst.msk [vmem:[%s577 + $0x70] sm:$0xff] %vm615, %v4799
      %4832 = vst.msk [vmem:[%s577 + $0x78] sm:$0xff] %vm615, %v4800
      %4833 = vst.msk [vmem:[%s577 + $0x80] sm:$0xff] %vm615, %v4801
      %4834 = vst.msk [vmem:[%s577 + $0x88] sm:$0xff] %vm615, %v4802
      %4835 = vst.msk [vmem:[%s577 + $0x90] sm:$0xff] %vm615, %v4803
      %4836 = vst.msk [vmem:[%s577 + $0x98] sm:$0xff] %vm615, %v4804
      %4837 = vst.msk [vmem:[%s577 + $0xa0] sm:$0xff] %vm615, %v4805
      %4838 = vst.msk [vmem:[%s577 + $0xa8] sm:$0xff] %vm615, %v4806
      %4839 = vst.msk [vmem:[%s577 + $0xb0] sm:$0xff] %vm615, %v4807
      %4840 = vst.msk [vmem:[%s577 + $0xb8] sm:$0xff] %vm615, %v4808
      %4841 = vst.msk [vmem:[%s577 + $0xc0] sm:$0xff] %vm615, %v4809
      %4842 = vst.msk [vmem:[%s577 + $0xc8] sm:$0xff] %vm615, %v4810
      %4843 = vst.msk [vmem:[%s577 + $0xd0] sm:$0xff] %vm615, %v4811
      %4844 = vst.msk [vmem:[%s577 + $0xd8] sm:$0xff] %vm615, %v4812
      %4845 = vst.msk [vmem:[%s577 + $0xe0] sm:$0xff] %vm615, %v4813
      %4846 = vst.msk [vmem:[%s577 + $0xe8] sm:$0xff] %vm615, %v4814
      %4847 = vst.msk [vmem:[%s577 + $0xf0] sm:$0xff] %vm615, %v4815
      %4848 = vst.msk [vmem:[%s577 + $0xf8] sm:$0xff] %vm615, %v4816
      %s4849 = smul.u32 32, %s29
      %p4850 = scmp.lt.s32.totalorder %s4849, 63
      %s4851 = scalar_select %p4850, %s4849, 63
      %s4852 = smul.addr %s4851, 8
      %s4853 = scalar_lea.vmem %s18, %s4852
      // Predicated region
      $region93: #{encoder_forward.1} parent=91 // pred_check
        %p4854 = pneg %p430
      $region94: #{encoder_forward.1} parent=91 // pred_check_branch
        %4856 = sbr.rel (%p4854) target = $region96
      $region95: #{encoder_forward.1} parent=91 // pred_region
        %s4857 = smul.u32 32, %s29
      $region96: #{encoder_forward.1} parent=91 // pred_fallthru
        _
    $region92: #{encoder_forward.1} parent=5 // pred_fallthru
      _
    %p4858 = scmp.le.s32.totalorder 2, %s24
    // Predicated region
    $region97: #{encoder_forward.1} parent=5 // pred_check
      %p4859 = pneg %p4858
    $region98: #{encoder_forward.1} parent=5 // pred_check_branch
      %4861 = sbr.rel (%p4859) target = $region100
    $region99: #{encoder_forward.1} parent=5 // pred_region
      %s4862 = ssub.s32 %s24, 2
      // Predicated region
      $region101: #{encoder_forward.1} parent=99 // pred_check
        %p4863 = pneg %p436
      $region102: #{encoder_forward.1} parent=99 // pred_check_branch
        %4865 = sbr.rel (%p4863) target = $region104
      $region103: #{encoder_forward.1} parent=99 // pred_region
        %s4866 = smul.u32 32, %s30
        %p4867 = scmp.lt.s32.totalorder %s4866, 63
        %s4868 = scalar_select %p4867, %s4866, 63
        %s4869 = smul.addr %s4868, 8
        %s4870 = scalar_lea.vmem %s18, %s4869
      $region104: #{encoder_forward.1} parent=99 // pred_fallthru
        _
    $region100: #{encoder_forward.1} parent=5 // pred_fallthru
      _
  $region6: #{encoder_forward.1} parent=0 // loop_footer
    %s28 = sadd.s32 1, %s24
  $region7: #{encoder_forward.1} parent=0 // loop_footer_branch
    %23 = sbr.rel target = $region3
  $region8: #{encoder_forward.1} parent=0 // loop_exit
    _

</llo_original>
